<compile_context>
chip_gen: v5e
topology: v5e:2x2
jax: 0.10.0
libtpu: 0.0.40
codegen_flags: <defaults>
</compile_context>

<pallas_src>
import jax
import jax.numpy as jnp
from jax.experimental import pallas as pl
from jax.experimental.pallas import tpu as pltpu


_TB_MAX = 128                      # batch tile: sized for v7x 64 MiB VMEM; raise on v5e/v6e
_VMEM_LIMIT = 48 * 1024 * 1024     # explicit scoped-VMEM limit (leaves headroom on v7x)


def _round_up(x, m):
    return (x + m - 1) // m * m


def _batch_tile(b):
    # Multiple of 8 so merging the batch dim into the matmul row (sublane) dim
    # inside the kernel is layout-preserving.
    return min(_TB_MAX, _round_up(b, 8))


# --------------------------------------------------------------------------
# Pallas kernels
# --------------------------------------------------------------------------

def conv_pool_relu_kernel(patches_ref, w_ref, b_ref, out_ref):
    """Fused conv (matmul over im2col patches) + 2x2 maxpool + bias + ReLU.

    patches_ref: (TB, P, N, K) bf16   P = 4 pool parities, N = pooled positions
    w_ref:       (K, C)        bf16   flattened conv weight (ki, kj, cin) x cout
    b_ref:       (1, C)        f32
    out_ref:     (TB, N, C)    bf16
    """
    TB, P, N, K = patches_ref.shape
    C = w_ref.shape[1]

    # One MXU matmul with the parities stacked into the row dimension.
    rows = patches_ref[...].reshape(TB * P * N, K)
    y = jnp.dot(rows, w_ref[...], preferred_element_type=jnp.float32)
    y4 = y.reshape(TB, P, N, C)

    # 2x2 maxpool == max over the parity axis (cheap VPU maxes over slabs).
    acc = y4[:, 0]
    for p in range(1, P):                      # static unroll (P = 4)
        acc = jnp.maximum(acc, y4[:, p])

    # Bias added once, after the max (max(x)+b == max(x+b)), then ReLU.
    acc = jnp.maximum(acc + b_ref[...], 0.0)
    out_ref[...] = acc.astype(out_ref.dtype)


def conv2_fc_head_kernel(patches_ref, w2_ref, b2_ref, fw1_ref, fb1_ref,
                         fw2_ref, fb2_ref, out_ref):
    """conv2 + 2x2 maxpool + ReLU fused with fc1 + ReLU + fc2 + log_softmax.

    patches_ref: (N, P, TB, K) bf16   N = 16 pooled positions, P = 4 parities
    w2_ref:      (K, C)  bf16         C = 20
    b2_ref:      (1, C)  f32
    fw1_ref:     (N, C, H1) bf16      fc1 weight regrouped as (pos, cin, out)
    fb1_ref:     (1, H1) f32
    fw2_ref:     (H1, O) bf16
    fb2_ref:     (1, O)  f32
    out_ref:     (TB, O) f32
    """
    N, P, TB, K = patches_ref.shape
    C = w2_ref.shape[1]
    H1 = fw1_ref.shape[2]

    # conv2 as one parity-stacked matmul, then parity max + bias + ReLU.
    rows = patches_ref[...].reshape(N * P * TB, K)
    y = jnp.dot(rows, w2_ref[...], preferred_element_type=jnp.float32)
    y4 = y.reshape(N, P, TB, C)
    acc = y4[:, 0]
    for p in range(1, P):                      # static unroll (P = 4)
        acc = jnp.maximum(acc, y4[:, p])
    acc = jnp.maximum(acc + b2_ref[...], 0.0)  # (N, TB, C)
    acc = acc.astype(fw1_ref.dtype)

    # fc1: contract over (position, channel) one position at a time; fw1 was
    # pre-permuted in the wrapper so this reproduces PyTorch's c*16+pos flatten
    # without any cross-lane reshape inside the kernel.
    h = jnp.zeros((TB, H1), jnp.float32)
    for pos in range(N):                       # static unroll (N = 16)
        h = h + jnp.dot(acc[pos], fw1_ref[pos],
                        preferred_element_type=jnp.float32)
    h = jnp.maximum(h + fb1_ref[...], 0.0)

    # TODO(synk): Dropout2d / Dropout are eval-mode identity here.
    logits = jnp.dot(h.astype(fw2_ref.dtype), fw2_ref[...],
                     preferred_element_type=jnp.float32) + fb2_ref[...]
    z = logits - jnp.max(logits, axis=-1, keepdims=True)
    out_ref[...] = z - jnp.log(jnp.sum(jnp.exp(z), axis=-1, keepdims=True))


# --------------------------------------------------------------------------
# Pallas call wrappers (batch-tiled grids, weights resident via constant maps)
# --------------------------------------------------------------------------

def conv_pool_relu(patches, w_flat, b_row, tb):
    B, P, N, K = patches.shape               # B is already padded to tb
    C = w_flat.shape[1]
    return pl.pallas_call(
        conv_pool_relu_kernel,
        out_shape=jax.ShapeDtypeStruct((B, N, C), jnp.bfloat16),
        grid=(B // tb,),
        in_specs=[
            pl.BlockSpec((tb, P, N, K), lambda i: (i, 0, 0, 0)),
            pl.BlockSpec((K, C), lambda i: (0, 0)),
            pl.BlockSpec((1, C), lambda i: (0, 0)),
        ],
        out_specs=pl.BlockSpec((tb, N, C), lambda i: (i, 0, 0)),
        compiler_params=pltpu.CompilerParams(
            dimension_semantics=("parallel",),
            vmem_limit_bytes=_VMEM_LIMIT),
    )(patches, w_flat, b_row)


def conv2_fc_head(patches, w2, b2, fw1, fb1, fw2, fb2, tb):
    N, P, B, K = patches.shape               # batch on dim 2, padded to tb
    C = w2.shape[1]
    H1, O = fw2.shape
    return pl.pallas_call(
        conv2_fc_head_kernel,
        out_shape=jax.ShapeDtypeStruct((B, O), jnp.float32),
        grid=(B // tb,),
        in_specs=[
            pl.BlockSpec((N, P, tb, K), lambda i: (0, 0, i, 0)),
            pl.BlockSpec((K, C), lambda i: (0, 0)),
            pl.BlockSpec((1, C), lambda i: (0, 0)),
            pl.BlockSpec((N, C, H1), lambda i: (0, 0, 0)),
            pl.BlockSpec((1, H1), lambda i: (0, 0)),
            pl.BlockSpec((H1, O), lambda i: (0, 0)),
            pl.BlockSpec((1, O), lambda i: (0, 0)),
        ],
        out_specs=pl.BlockSpec((tb, O), lambda i: (i, 0)),
        compiler_params=pltpu.CompilerParams(
            dimension_semantics=("parallel",),
            vmem_limit_bytes=_VMEM_LIMIT),
    )(patches, w2, b2, fw1, fb1, fw2, fb2)


# --------------------------------------------------------------------------
# JAX glue: im2col with pooling-parity grouping (data rearrangement only)
# --------------------------------------------------------------------------

def im2col_pooled(x_nhwc, ksize, pool):
    """Returns patches (B, pool*pool, PH*PW, ksize*ksize*Cin).

    patches[b, di*pool+dj, pi*PW+pj, (ki*ksize+kj)*Cin+cin] =
        x[b, pool*pi+di+ki, pool*pj+dj+kj, cin]
    i.e. the receptive field for conv-output position (pool*pi+di, pool*pj+dj),
    grouped so that max over the parity axis == 2x2 max-pool of the conv output.
    """
    B, H, W, Cin = x_nhwc.shape
    OH, OW = H - ksize + 1, W - ksize + 1
    PH, PW = OH // pool, OW // pool
    parts = []
    for di in range(pool):
        for dj in range(pool):
            cols = []
            for ki in range(ksize):
                for kj in range(ksize):
                    sl = x_nhwc[:,
                                di + ki: di + ki + pool * (PH - 1) + 1: pool,
                                dj + kj: dj + kj + pool * (PW - 1) + 1: pool,
                                :]  # (B, PH, PW, Cin)
                    cols.append(sl.reshape(B, PH * PW, Cin))
            parts.append(jnp.concatenate(cols, axis=-1))
    return jnp.stack(parts, axis=1)


# --------------------------------------------------------------------------
# Full forward pass
# --------------------------------------------------------------------------

def cnn_forward(x_nchw, params):
    B = x_nchw.shape[0]
    tb = _batch_tile(B)
    b_pad = _round_up(B, tb)

    x = jnp.transpose(x_nchw, (0, 2, 3, 1)).astype(jnp.bfloat16)  # NHWC bf16
    if b_pad != B:
        x = jnp.pad(x, ((0, b_pad - B), (0, 0), (0, 0), (0, 0)))

    # conv1 (1->10, k=5) + maxpool2 + relu
    p1 = im2col_pooled(x, ksize=5, pool=2)                        # (Bp, 4, 144, 25)
    w1 = jnp.transpose(params["conv1_w"], (2, 3, 1, 0)).reshape(25, 10)
    o1 = conv_pool_relu(p1,
                        w1.astype(jnp.bfloat16),
                        params["conv1_b"].reshape(1, 10).astype(jnp.float32),
                        tb)                                       # (Bp, 144, 10) bf16
    o1 = o1.reshape(b_pad, 12, 12, 10)                            # NHWC

    # conv2 (10->20, k=5) + [Dropout2d = identity, eval] + maxpool2 + relu,
    # fused with flatten + fc1 + relu + [Dropout = identity] + fc2 + log_softmax
    p2 = im2col_pooled(o1, ksize=5, pool=2)                       # (Bp, 4, 16, 250)
    p2 = jnp.transpose(p2, (2, 1, 0, 3))                          # (16, 4, Bp, 250)
    w2 = jnp.transpose(params["conv2_w"], (2, 3, 1, 0)).reshape(250, 20)
    # fc1 weight: PyTorch flattens the (20,4,4) activation as c*16 + pos; regroup
    # rows as (pos, cin, out) so the kernel can contract position-by-position.
    fw1 = jnp.transpose(params["fc1_w"].reshape(50, 20, 16), (2, 1, 0))  # (16, 20, 50)
    fw2 = params["fc2_w"].T                                       # (50, 10)

    out = conv2_fc_head(
        p2,
        w2.astype(jnp.bfloat16),
        params["conv2_b"].reshape(1, 20).astype(jnp.float32),
        fw1.astype(jnp.bfloat16),
        params["fc1_b"].reshape(1, 50).astype(jnp.float32),
        fw2.astype(jnp.bfloat16),
        params["fc2_b"].reshape(1, 10).astype(jnp.float32),
        tb)                                                       # (Bp, 10)
    return out[:B]


def init_params(key):
    ks = jax.random.split(key, 8)
    return {
        "conv1_w": 0.1 * jax.random.normal(ks[0], (10, 1, 5, 5), jnp.float32),
        "conv1_b": 0.1 * jax.random.normal(ks[1], (10,), jnp.float32),
        "conv2_w": 0.1 * jax.random.normal(ks[2], (20, 10, 5, 5), jnp.float32),
        "conv2_b": 0.1 * jax.random.normal(ks[3], (20,), jnp.float32),
        "fc1_w": 0.1 * jax.random.normal(ks[4], (50, 320), jnp.float32),
        "fc1_b": 0.1 * jax.random.normal(ks[5], (50,), jnp.float32),
        "fc2_w": 0.1 * jax.random.normal(ks[6], (10, 50), jnp.float32),
        "fc2_b": 0.1 * jax.random.normal(ks[7], (10,), jnp.float32),
    }


if __name__ == "__main__":
    key = jax.random.PRNGKey(0)
    pkey, xkey = jax.random.split(key)
    params = init_params(pkey)
    # Forward shape arithmetic (320 = 20*4*4) implies 28x28 single-channel input.
    x = jax.random.normal(xkey, (2, 1, 28, 28), jnp.float32)

    out = jax.jit(cnn_forward)(x, params)
    out = jax.block_until_ready(out)
    assert out.shape == (2, 10) and bool(jnp.all(jnp.isfinite(out)))
    print("KERNEL_OK")
</pallas_src>

<mosaic_0001>
module attributes {stable_mosaic.version = 11 : i64} {
  func.func @conv_pool_relu_kernel(%arg0: i32, %arg1: memref<8x4x144x25xbf16, #tpu.memory_space<vmem>>, %arg2: memref<25x10xbf16, #tpu.memory_space<vmem>>, %arg3: memref<1x10xf32, #tpu.memory_space<vmem>>, %arg4: memref<8x144x10xbf16, #tpu.memory_space<vmem>>) attributes {dimension_semantics = [#tpu.dimension_semantics<parallel>], iteration_bounds = array<i64: 1>, scalar_prefetch = 0 : i64, scratch_operands = 0 : i64, tpu.core_type = #tpu.core_type<tc>, window_params = [{transform_indices = @transform_0, window_bounds = array<i64: 8, 4, 144, 25>}, {pipeline_mode = #tpu.pipeline_mode<synchronous>, transform_indices = @transform_1, window_bounds = array<i64: 25, 10>}, {pipeline_mode = #tpu.pipeline_mode<synchronous>, transform_indices = @transform_2, window_bounds = array<i64: 1, 10>}, {transform_indices = @transform_3, window_bounds = array<i64: 8, 144, 10>}]} {
    %c0 = arith.constant 0 : index
    %c0_0 = arith.constant 0 : index
    %c0_1 = arith.constant 0 : index
    %c0_2 = arith.constant 0 : index
    %0 = vector.load %arg1[%c0, %c0_0, %c0_1, %c0_2] : memref<8x4x144x25xbf16, #tpu.memory_space<vmem>>, vector<8x4x144x25xbf16>
    %1 = vector.shape_cast %0 : vector<8x4x144x25xbf16> to vector<4608x25xbf16>
    %c0_3 = arith.constant 0 : index
    %c0_4 = arith.constant 0 : index
    %2 = vector.load %arg2[%c0_3, %c0_4] : memref<25x10xbf16, #tpu.memory_space<vmem>>, vector<25x10xbf16>
    %cst = arith.constant dense<0.000000e+00> : vector<4608x10xf32>
    %3 = tpu.matmul %1, %2, %cst {dimension_numbers = #tpu.dot_dimension_numbers<[1], [0], [0], [1], [0, 0, 1, 1], [], []>} : vector<4608x25xbf16>, vector<25x10xbf16>, vector<4608x10xf32> -> vector<4608x10xf32>
    %4 = vector.shape_cast %3 : vector<4608x10xf32> to vector<8x4x144x10xf32>
    %5 = vector.extract_strided_slice %4 {offsets = [0, 0, 0, 0], sizes = [8, 1, 144, 10], strides = [1, 1, 1, 1]} : vector<8x4x144x10xf32> to vector<8x1x144x10xf32>
    %6 = vector.shape_cast %5 : vector<8x1x144x10xf32> to vector<8x144x10xf32>
    %7 = vector.extract_strided_slice %4 {offsets = [0, 1, 0, 0], sizes = [8, 1, 144, 10], strides = [1, 1, 1, 1]} : vector<8x4x144x10xf32> to vector<8x1x144x10xf32>
    %8 = vector.shape_cast %7 : vector<8x1x144x10xf32> to vector<8x144x10xf32>
    %9 = arith.maximumf %6, %8 : vector<8x144x10xf32>
    %10 = vector.extract_strided_slice %4 {offsets = [0, 2, 0, 0], sizes = [8, 1, 144, 10], strides = [1, 1, 1, 1]} : vector<8x4x144x10xf32> to vector<8x1x144x10xf32>
    %11 = vector.shape_cast %10 : vector<8x1x144x10xf32> to vector<8x144x10xf32>
    %12 = arith.maximumf %9, %11 : vector<8x144x10xf32>
    %13 = vector.extract_strided_slice %4 {offsets = [0, 3, 0, 0], sizes = [8, 1, 144, 10], strides = [1, 1, 1, 1]} : vector<8x4x144x10xf32> to vector<8x1x144x10xf32>
    %14 = vector.shape_cast %13 : vector<8x1x144x10xf32> to vector<8x144x10xf32>
    %15 = arith.maximumf %12, %14 : vector<8x144x10xf32>
    %c0_5 = arith.constant 0 : index
    %c0_6 = arith.constant 0 : index
    %16 = vector.load %arg3[%c0_5, %c0_6] : memref<1x10xf32, #tpu.memory_space<vmem>>, vector<1x10xf32>
    %17 = vector.shape_cast %16 : vector<1x10xf32> to vector<1x1x10xf32>
    %18 = vector.broadcast %17 : vector<1x1x10xf32> to vector<8x144x10xf32>
    %19 = arith.addf %15, %18 : vector<8x144x10xf32>
    %cst_7 = arith.constant 0.000000e+00 : f32
    %20 = vector.broadcast %cst_7 : f32 to vector<8x144x10xf32>
    %21 = arith.maximumf %19, %20 : vector<8x144x10xf32>
    %22 = arith.truncf %21 : vector<8x144x10xf32> to vector<8x144x10xbf16>
    %c0_8 = arith.constant 0 : index
    %c0_9 = arith.constant 0 : index
    %c0_10 = arith.constant 0 : index
    %23 = vector.load %arg4[%c0_8, %c0_9, %c0_10] : memref<8x144x10xbf16, #tpu.memory_space<vmem>>, vector<8x144x10xbf16>
    tpu.vector_store %arg4[%c0_8, %c0_9, %c0_10], %22 {strides = array<i32>} : memref<8x144x10xbf16, #tpu.memory_space<vmem>>, vector<8x144x10xbf16>,
    return
  }
  func.func @transform_0(%arg0: i32) -> (i32, i32, i32, i32) {
    %c0_i32 = arith.constant 0 : i32
    %c0_i32_0 = arith.constant 0 : i32
    %c0_i32_1 = arith.constant 0 : i32
    %c0_i32_2 = arith.constant 0 : i32
    return %arg0, %c0_i32, %c0_i32_0, %c0_i32_1 : i32, i32, i32, i32
  }
  func.func @transform_1(%arg0: i32) -> (i32, i32) {
    %c0_i32 = arith.constant 0 : i32
    %c0_i32_0 = arith.constant 0 : i32
    %c0_i32_1 = arith.constant 0 : i32
    return %c0_i32, %c0_i32_0 : i32, i32
  }
  func.func @transform_2(%arg0: i32) -> (i32, i32) {
    %c0_i32 = arith.constant 0 : i32
    %c0_i32_0 = arith.constant 0 : i32
    %c0_i32_1 = arith.constant 0 : i32
    return %c0_i32, %c0_i32_0 : i32, i32
  }
  func.func @transform_3(%arg0: i32) -> (i32, i32, i32) {
    %c0_i32 = arith.constant 0 : i32
    %c0_i32_0 = arith.constant 0 : i32
    %c0_i32_1 = arith.constant 0 : i32
    return %arg0, %c0_i32, %c0_i32_0 : i32, i32, i32
  }
}

module attributes {stable_mosaic.version = 11 : i64} {
  func.func @conv2_fc_head_kernel(%arg0: i32, %arg1: memref<16x4x8x250xbf16, #tpu.memory_space<vmem>>, %arg2: memref<250x20xbf16, #tpu.memory_space<vmem>>, %arg3: memref<1x20xf32, #tpu.memory_space<vmem>>, %arg4: memref<16x20x50xbf16, #tpu.memory_space<vmem>>, %arg5: memref<1x50xf32, #tpu.memory_space<vmem>>, %arg6: memref<50x10xbf16, #tpu.memory_space<vmem>>, %arg7: memref<1x10xf32, #tpu.memory_space<vmem>>, %arg8: memref<8x10xf32, #tpu.memory_space<vmem>>) attributes {dimension_semantics = [#tpu.dimension_semantics<parallel>], iteration_bounds = array<i64: 1>, scalar_prefetch = 0 : i64, scratch_operands = 0 : i64, tpu.core_type = #tpu.core_type<tc>, window_params = [{transform_indices = @transform_0, window_bounds = array<i64: 16, 4, 8, 250>}, {pipeline_mode = #tpu.pipeline_mode<synchronous>, transform_indices = @transform_1, window_bounds = array<i64: 250, 20>}, {pipeline_mode = #tpu.pipeline_mode<synchronous>, transform_indices = @transform_2, window_bounds = array<i64: 1, 20>}, {pipeline_mode = #tpu.pipeline_mode<synchronous>, transform_indices = @transform_3, window_bounds = array<i64: 16, 20, 50>}, {pipeline_mode = #tpu.pipeline_mode<synchronous>, transform_indices = @transform_4, window_bounds = array<i64: 1, 50>}, {pipeline_mode = #tpu.pipeline_mode<synchronous>, transform_indices = @transform_5, window_bounds = array<i64: 50, 10>}, {pipeline_mode = #tpu.pipeline_mode<synchronous>, transform_indices = @transform_6, window_bounds = array<i64: 1, 10>}, {transform_indices = @transform_7, window_bounds = array<i64: 8, 10>}]} {
    %c0 = arith.constant 0 : index
    %c0_0 = arith.constant 0 : index
    %c0_1 = arith.constant 0 : index
    %c0_2 = arith.constant 0 : index
    %0 = vector.load %arg1[%c0, %c0_0, %c0_1, %c0_2] : memref<16x4x8x250xbf16, #tpu.memory_space<vmem>>, vector<16x4x8x250xbf16>
    %1 = vector.shape_cast %0 : vector<16x4x8x250xbf16> to vector<512x250xbf16>
    %c0_3 = arith.constant 0 : index
    %c0_4 = arith.constant 0 : index
    %2 = vector.load %arg2[%c0_3, %c0_4] : memref<250x20xbf16, #tpu.memory_space<vmem>>, vector<250x20xbf16>
    %cst = arith.constant dense<0.000000e+00> : vector<512x20xf32>
    %3 = tpu.matmul %1, %2, %cst {dimension_numbers = #tpu.dot_dimension_numbers<[1], [0], [0], [1], [0, 0, 1, 1], [], []>} : vector<512x250xbf16>, vector<250x20xbf16>, vector<512x20xf32> -> vector<512x20xf32>
    %4 = vector.shape_cast %3 : vector<512x20xf32> to vector<16x4x8x20xf32>
    %5 = vector.extract_strided_slice %4 {offsets = [0, 0, 0, 0], sizes = [16, 1, 8, 20], strides = [1, 1, 1, 1]} : vector<16x4x8x20xf32> to vector<16x1x8x20xf32>
    %6 = vector.shape_cast %5 : vector<16x1x8x20xf32> to vector<16x8x20xf32>
    %7 = vector.extract_strided_slice %4 {offsets = [0, 1, 0, 0], sizes = [16, 1, 8, 20], strides = [1, 1, 1, 1]} : vector<16x4x8x20xf32> to vector<16x1x8x20xf32>
    %8 = vector.shape_cast %7 : vector<16x1x8x20xf32> to vector<16x8x20xf32>
    %9 = arith.maximumf %6, %8 : vector<16x8x20xf32>
    %10 = vector.extract_strided_slice %4 {offsets = [0, 2, 0, 0], sizes = [16, 1, 8, 20], strides = [1, 1, 1, 1]} : vector<16x4x8x20xf32> to vector<16x1x8x20xf32>
    %11 = vector.shape_cast %10 : vector<16x1x8x20xf32> to vector<16x8x20xf32>
    %12 = arith.maximumf %9, %11 : vector<16x8x20xf32>
    %13 = vector.extract_strided_slice %4 {offsets = [0, 3, 0, 0], sizes = [16, 1, 8, 20], strides = [1, 1, 1, 1]} : vector<16x4x8x20xf32> to vector<16x1x8x20xf32>
    %14 = vector.shape_cast %13 : vector<16x1x8x20xf32> to vector<16x8x20xf32>
    %15 = arith.maximumf %12, %14 : vector<16x8x20xf32>
    %c0_5 = arith.constant 0 : index
    %c0_6 = arith.constant 0 : index
    %16 = vector.load %arg3[%c0_5, %c0_6] : memref<1x20xf32, #tpu.memory_space<vmem>>, vector<1x20xf32>
    %17 = vector.shape_cast %16 : vector<1x20xf32> to vector<1x1x20xf32>
    %18 = vector.broadcast %17 : vector<1x1x20xf32> to vector<16x8x20xf32>
    %19 = arith.addf %15, %18 : vector<16x8x20xf32>
    %cst_7 = arith.constant 0.000000e+00 : f32
    %20 = vector.broadcast %cst_7 : f32 to vector<16x8x20xf32>
    %21 = arith.maximumf %19, %20 : vector<16x8x20xf32>
    %22 = arith.truncf %21 : vector<16x8x20xf32> to vector<16x8x20xbf16>
    %cst_8 = arith.constant 0.000000e+00 : f32
    %23 = vector.broadcast %cst_8 : f32 to vector<8x50xf32>
    %24 = vector.extract_strided_slice %22 {offsets = [0, 0, 0], sizes = [1, 8, 20], strides = [1, 1, 1]} : vector<16x8x20xbf16> to vector<1x8x20xbf16>
    %25 = vector.shape_cast %24 : vector<1x8x20xbf16> to vector<8x20xbf16>
    %c0_9 = arith.constant 0 : index
    %c0_10 = arith.constant 0 : index
    %c0_11 = arith.constant 0 : index
    %26 = vector.load %arg4[%c0_9, %c0_10, %c0_11] : memref<16x20x50xbf16, #tpu.memory_space<vmem>>, vector<1x20x50xbf16>
    %27 = vector.shape_cast %26 : vector<1x20x50xbf16> to vector<20x50xbf16>
    %cst_12 = arith.constant dense<0.000000e+00> : vector<8x50xf32>
    %28 = tpu.matmul %25, %27, %cst_12 {dimension_numbers = #tpu.dot_dimension_numbers<[1], [0], [0], [1], [0, 0, 1, 1], [], []>} : vector<8x20xbf16>, vector<20x50xbf16>, vector<8x50xf32> -> vector<8x50xf32>
    %29 = arith.addf %23, %28 : vector<8x50xf32>
    %30 = vector.extract_strided_slice %22 {offsets = [1, 0, 0], sizes = [1, 8, 20], strides = [1, 1, 1]} : vector<16x8x20xbf16> to vector<1x8x20xbf16>
    %31 = vector.shape_cast %30 : vector<1x8x20xbf16> to vector<8x20xbf16>
    %c1 = arith.constant 1 : index
    %c0_13 = arith.constant 0 : index
    %c0_14 = arith.constant 0 : index
    %32 = vector.load %arg4[%c1, %c0_13, %c0_14] : memref<16x20x50xbf16, #tpu.memory_space<vmem>>, vector<1x20x50xbf16>
    %33 = vector.shape_cast %32 : vector<1x20x50xbf16> to vector<20x50xbf16>
    %cst_15 = arith.constant dense<0.000000e+00> : vector<8x50xf32>
    %34 = tpu.matmul %31, %33, %cst_15 {dimension_numbers = #tpu.dot_dimension_numbers<[1], [0], [0], [1], [0, 0, 1, 1], [], []>} : vector<8x20xbf16>, vector<20x50xbf16>, vector<8x50xf32> -> vector<8x50xf32>
    %35 = arith.addf %29, %34 : vector<8x50xf32>
    %36 = vector.extract_strided_slice %22 {offsets = [2, 0, 0], sizes = [1, 8, 20], strides = [1, 1, 1]} : vector<16x8x20xbf16> to vector<1x8x20xbf16>
    %37 = vector.shape_cast %36 : vector<1x8x20xbf16> to vector<8x20xbf16>
    %c2 = arith.constant 2 : index
    %c0_16 = arith.constant 0 : index
    %c0_17 = arith.constant 0 : index
    %38 = vector.load %arg4[%c2, %c0_16, %c0_17] : memref<16x20x50xbf16, #tpu.memory_space<vmem>>, vector<1x20x50xbf16>
    %39 = vector.shape_cast %38 : vector<1x20x50xbf16> to vector<20x50xbf16>
    %cst_18 = arith.constant dense<0.000000e+00> : vector<8x50xf32>
    %40 = tpu.matmul %37, %39, %cst_18 {dimension_numbers = #tpu.dot_dimension_numbers<[1], [0], [0], [1], [0, 0, 1, 1], [], []>} : vector<8x20xbf16>, vector<20x50xbf16>, vector<8x50xf32> -> vector<8x50xf32>
    %41 = arith.addf %35, %40 : vector<8x50xf32>
    %42 = vector.extract_strided_slice %22 {offsets = [3, 0, 0], sizes = [1, 8, 20], strides = [1, 1, 1]} : vector<16x8x20xbf16> to vector<1x8x20xbf16>
    %43 = vector.shape_cast %42 : vector<1x8x20xbf16> to vector<8x20xbf16>
    %c3 = arith.constant 3 : index
    %c0_19 = arith.constant 0 : index
    %c0_20 = arith.constant 0 : index
    %44 = vector.load %arg4[%c3, %c0_19, %c0_20] : memref<16x20x50xbf16, #tpu.memory_space<vmem>>, vector<1x20x50xbf16>
    %45 = vector.shape_cast %44 : vector<1x20x50xbf16> to vector<20x50xbf16>
    %cst_21 = arith.constant dense<0.000000e+00> : vector<8x50xf32>
    %46 = tpu.matmul %43, %45, %cst_21 {dimension_numbers = #tpu.dot_dimension_numbers<[1], [0], [0], [1], [0, 0, 1, 1], [], []>} : vector<8x20xbf16>, vector<20x50xbf16>, vector<8x50xf32> -> vector<8x50xf32>
    %47 = arith.addf %41, %46 : vector<8x50xf32>
    %48 = vector.extract_strided_slice %22 {offsets = [4, 0, 0], sizes = [1, 8, 20], strides = [1, 1, 1]} : vector<16x8x20xbf16> to vector<1x8x20xbf16>
    %49 = vector.shape_cast %48 : vector<1x8x20xbf16> to vector<8x20xbf16>
    %c4 = arith.constant 4 : index
    %c0_22 = arith.constant 0 : index
    %c0_23 = arith.constant 0 : index
    %50 = vector.load %arg4[%c4, %c0_22, %c0_23] : memref<16x20x50xbf16, #tpu.memory_space<vmem>>, vector<1x20x50xbf16>
    %51 = vector.shape_cast %50 : vector<1x20x50xbf16> to vector<20x50xbf16>
    %cst_24 = arith.constant dense<0.000000e+00> : vector<8x50xf32>
    %52 = tpu.matmul %49, %51, %cst_24 {dimension_numbers = #tpu.dot_dimension_numbers<[1], [0], [0], [1], [0, 0, 1, 1], [], []>} : vector<8x20xbf16>, vector<20x50xbf16>, vector<8x50xf32> -> vector<8x50xf32>
    %53 = arith.addf %47, %52 : vector<8x50xf32>
    %54 = vector.extract_strided_slice %22 {offsets = [5, 0, 0], sizes = [1, 8, 20], strides = [1, 1, 1]} : vector<16x8x20xbf16> to vector<1x8x20xbf16>
    %55 = vector.shape_cast %54 : vector<1x8x20xbf16> to vector<8x20xbf16>
    %c5 = arith.constant 5 : index
    %c0_25 = arith.constant 0 : index
    %c0_26 = arith.constant 0 : index
    %56 = vector.load %arg4[%c5, %c0_25, %c0_26] : memref<16x20x50xbf16, #tpu.memory_space<vmem>>, vector<1x20x50xbf16>
    %57 = vector.shape_cast %56 : vector<1x20x50xbf16> to vector<20x50xbf16>
    %cst_27 = arith.constant dense<0.000000e+00> : vector<8x50xf32>
    %58 = tpu.matmul %55, %57, %cst_27 {dimension_numbers = #tpu.dot_dimension_numbers<[1], [0], [0], [1], [0, 0, 1, 1], [], []>} : vector<8x20xbf16>, vector<20x50xbf16>, vector<8x50xf32> -> vector<8x50xf32>
    %59 = arith.addf %53, %58 : vector<8x50xf32>
    %60 = vector.extract_strided_slice %22 {offsets = [6, 0, 0], sizes = [1, 8, 20], strides = [1, 1, 1]} : vector<16x8x20xbf16> to vector<1x8x20xbf16>
    %61 = vector.shape_cast %60 : vector<1x8x20xbf16> to vector<8x20xbf16>
    %c6 = arith.constant 6 : index
    %c0_28 = arith.constant 0 : index
    %c0_29 = arith.constant 0 : index
    %62 = vector.load %arg4[%c6, %c0_28, %c0_29] : memref<16x20x50xbf16, #tpu.memory_space<vmem>>, vector<1x20x50xbf16>
    %63 = vector.shape_cast %62 : vector<1x20x50xbf16> to vector<20x50xbf16>
    %cst_30 = arith.constant dense<0.000000e+00> : vector<8x50xf32>
    %64 = tpu.matmul %61, %63, %cst_30 {dimension_numbers = #tpu.dot_dimension_numbers<[1], [0], [0], [1], [0, 0, 1, 1], [], []>} : vector<8x20xbf16>, vector<20x50xbf16>, vector<8x50xf32> -> vector<8x50xf32>
    %65 = arith.addf %59, %64 : vector<8x50xf32>
    %66 = vector.extract_strided_slice %22 {offsets = [7, 0, 0], sizes = [1, 8, 20], strides = [1, 1, 1]} : vector<16x8x20xbf16> to vector<1x8x20xbf16>
    %67 = vector.shape_cast %66 : vector<1x8x20xbf16> to vector<8x20xbf16>
    %c7 = arith.constant 7 : index
    %c0_31 = arith.constant 0 : index
    %c0_32 = arith.constant 0 : index
    %68 = vector.load %arg4[%c7, %c0_31, %c0_32] : memref<16x20x50xbf16, #tpu.memory_space<vmem>>, vector<1x20x50xbf16>
    %69 = vector.shape_cast %68 : vector<1x20x50xbf16> to vector<20x50xbf16>
    %cst_33 = arith.constant dense<0.000000e+00> : vector<8x50xf32>
    %70 = tpu.matmul %67, %69, %cst_33 {dimension_numbers = #tpu.dot_dimension_numbers<[1], [0], [0], [1], [0, 0, 1, 1], [], []>} : vector<8x20xbf16>, vector<20x50xbf16>, vector<8x50xf32> -> vector<8x50xf32>
    %71 = arith.addf %65, %70 : vector<8x50xf32>
    %72 = vector.extract_strided_slice %22 {offsets = [8, 0, 0], sizes = [1, 8, 20], strides = [1, 1, 1]} : vector<16x8x20xbf16> to vector<1x8x20xbf16>
    %73 = vector.shape_cast %72 : vector<1x8x20xbf16> to vector<8x20xbf16>
    %c8 = arith.constant 8 : index
    %c0_34 = arith.constant 0 : index
    %c0_35 = arith.constant 0 : index
    %74 = vector.load %arg4[%c8, %c0_34, %c0_35] : memref<16x20x50xbf16, #tpu.memory_space<vmem>>, vector<1x20x50xbf16>
    %75 = vector.shape_cast %74 : vector<1x20x50xbf16> to vector<20x50xbf16>
    %cst_36 = arith.constant dense<0.000000e+00> : vector<8x50xf32>
    %76 = tpu.matmul %73, %75, %cst_36 {dimension_numbers = #tpu.dot_dimension_numbers<[1], [0], [0], [1], [0, 0, 1, 1], [], []>} : vector<8x20xbf16>, vector<20x50xbf16>, vector<8x50xf32> -> vector<8x50xf32>
    %77 = arith.addf %71, %76 : vector<8x50xf32>
    %78 = vector.extract_strided_slice %22 {offsets = [9, 0, 0], sizes = [1, 8, 20], strides = [1, 1, 1]} : vector<16x8x20xbf16> to vector<1x8x20xbf16>
    %79 = vector.shape_cast %78 : vector<1x8x20xbf16> to vector<8x20xbf16>
    %c9 = arith.constant 9 : index
    %c0_37 = arith.constant 0 : index
    %c0_38 = arith.constant 0 : index
    %80 = vector.load %arg4[%c9, %c0_37, %c0_38] : memref<16x20x50xbf16, #tpu.memory_space<vmem>>, vector<1x20x50xbf16>
    %81 = vector.shape_cast %80 : vector<1x20x50xbf16> to vector<20x50xbf16>
    %cst_39 = arith.constant dense<0.000000e+00> : vector<8x50xf32>
    %82 = tpu.matmul %79, %81, %cst_39 {dimension_numbers = #tpu.dot_dimension_numbers<[1], [0], [0], [1], [0, 0, 1, 1], [], []>} : vector<8x20xbf16>, vector<20x50xbf16>, vector<8x50xf32> -> vector<8x50xf32>
    %83 = arith.addf %77, %82 : vector<8x50xf32>
    %84 = vector.extract_strided_slice %22 {offsets = [10, 0, 0], sizes = [1, 8, 20], strides = [1, 1, 1]} : vector<16x8x20xbf16> to vector<1x8x20xbf16>
    %85 = vector.shape_cast %84 : vector<1x8x20xbf16> to vector<8x20xbf16>
    %c10 = arith.constant 10 : index
    %c0_40 = arith.constant 0 : index
    %c0_41 = arith.constant 0 : index
    %86 = vector.load %arg4[%c10, %c0_40, %c0_41] : memref<16x20x50xbf16, #tpu.memory_space<vmem>>, vector<1x20x50xbf16>
    %87 = vector.shape_cast %86 : vector<1x20x50xbf16> to vector<20x50xbf16>
    %cst_42 = arith.constant dense<0.000000e+00> : vector<8x50xf32>
    %88 = tpu.matmul %85, %87, %cst_42 {dimension_numbers = #tpu.dot_dimension_numbers<[1], [0], [0], [1], [0, 0, 1, 1], [], []>} : vector<8x20xbf16>, vector<20x50xbf16>, vector<8x50xf32> -> vector<8x50xf32>
    %89 = arith.addf %83, %88 : vector<8x50xf32>
    %90 = vector.extract_strided_slice %22 {offsets = [11, 0, 0], sizes = [1, 8, 20], strides = [1, 1, 1]} : vector<16x8x20xbf16> to vector<1x8x20xbf16>
    %91 = vector.shape_cast %90 : vector<1x8x20xbf16> to vector<8x20xbf16>
    %c11 = arith.constant 11 : index
    %c0_43 = arith.constant 0 : index
    %c0_44 = arith.constant 0 : index
    %92 = vector.load %arg4[%c11, %c0_43, %c0_44] : memref<16x20x50xbf16, #tpu.memory_space<vmem>>, vector<1x20x50xbf16>
    %93 = vector.shape_cast %92 : vector<1x20x50xbf16> to vector<20x50xbf16>
    %cst_45 = arith.constant dense<0.000000e+00> : vector<8x50xf32>
    %94 = tpu.matmul %91, %93, %cst_45 {dimension_numbers = #tpu.dot_dimension_numbers<[1], [0], [0], [1], [0, 0, 1, 1], [], []>} : vector<8x20xbf16>, vector<20x50xbf16>, vector<8x50xf32> -> vector<8x50xf32>
    %95 = arith.addf %89, %94 : vector<8x50xf32>
    %96 = vector.extract_strided_slice %22 {offsets = [12, 0, 0], sizes = [1, 8, 20], strides = [1, 1, 1]} : vector<16x8x20xbf16> to vector<1x8x20xbf16>
    %97 = vector.shape_cast %96 : vector<1x8x20xbf16> to vector<8x20xbf16>
    %c12 = arith.constant 12 : index
    %c0_46 = arith.constant 0 : index
    %c0_47 = arith.constant 0 : index
    %98 = vector.load %arg4[%c12, %c0_46, %c0_47] : memref<16x20x50xbf16, #tpu.memory_space<vmem>>, vector<1x20x50xbf16>
    %99 = vector.shape_cast %98 : vector<1x20x50xbf16> to vector<20x50xbf16>
    %cst_48 = arith.constant dense<0.000000e+00> : vector<8x50xf32>
    %100 = tpu.matmul %97, %99, %cst_48 {dimension_numbers = #tpu.dot_dimension_numbers<[1], [0], [0], [1], [0, 0, 1, 1], [], []>} : vector<8x20xbf16>, vector<20x50xbf16>, vector<8x50xf32> -> vector<8x50xf32>
    %101 = arith.addf %95, %100 : vector<8x50xf32>
    %102 = vector.extract_strided_slice %22 {offsets = [13, 0, 0], sizes = [1, 8, 20], strides = [1, 1, 1]} : vector<16x8x20xbf16> to vector<1x8x20xbf16>
    %103 = vector.shape_cast %102 : vector<1x8x20xbf16> to vector<8x20xbf16>
    %c13 = arith.constant 13 : index
    %c0_49 = arith.constant 0 : index
    %c0_50 = arith.constant 0 : index
    %104 = vector.load %arg4[%c13, %c0_49, %c0_50] : memref<16x20x50xbf16, #tpu.memory_space<vmem>>, vector<1x20x50xbf16>
    %105 = vector.shape_cast %104 : vector<1x20x50xbf16> to vector<20x50xbf16>
    %cst_51 = arith.constant dense<0.000000e+00> : vector<8x50xf32>
    %106 = tpu.matmul %103, %105, %cst_51 {dimension_numbers = #tpu.dot_dimension_numbers<[1], [0], [0], [1], [0, 0, 1, 1], [], []>} : vector<8x20xbf16>, vector<20x50xbf16>, vector<8x50xf32> -> vector<8x50xf32>
    %107 = arith.addf %101, %106 : vector<8x50xf32>
    %108 = vector.extract_strided_slice %22 {offsets = [14, 0, 0], sizes = [1, 8, 20], strides = [1, 1, 1]} : vector<16x8x20xbf16> to vector<1x8x20xbf16>
    %109 = vector.shape_cast %108 : vector<1x8x20xbf16> to vector<8x20xbf16>
    %c14 = arith.constant 14 : index
    %c0_52 = arith.constant 0 : index
    %c0_53 = arith.constant 0 : index
    %110 = vector.load %arg4[%c14, %c0_52, %c0_53] : memref<16x20x50xbf16, #tpu.memory_space<vmem>>, vector<1x20x50xbf16>
    %111 = vector.shape_cast %110 : vector<1x20x50xbf16> to vector<20x50xbf16>
    %cst_54 = arith.constant dense<0.000000e+00> : vector<8x50xf32>
    %112 = tpu.matmul %109, %111, %cst_54 {dimension_numbers = #tpu.dot_dimension_numbers<[1], [0], [0], [1], [0, 0, 1, 1], [], []>} : vector<8x20xbf16>, vector<20x50xbf16>, vector<8x50xf32> -> vector<8x50xf32>
    %113 = arith.addf %107, %112 : vector<8x50xf32>
    %114 = vector.extract_strided_slice %22 {offsets = [15, 0, 0], sizes = [1, 8, 20], strides = [1, 1, 1]} : vector<16x8x20xbf16> to vector<1x8x20xbf16>
    %115 = vector.shape_cast %114 : vector<1x8x20xbf16> to vector<8x20xbf16>
    %c15 = arith.constant 15 : index
    %c0_55 = arith.constant 0 : index
    %c0_56 = arith.constant 0 : index
    %116 = vector.load %arg4[%c15, %c0_55, %c0_56] : memref<16x20x50xbf16, #tpu.memory_space<vmem>>, vector<1x20x50xbf16>
    %117 = vector.shape_cast %116 : vector<1x20x50xbf16> to vector<20x50xbf16>
    %cst_57 = arith.constant dense<0.000000e+00> : vector<8x50xf32>
    %118 = tpu.matmul %115, %117, %cst_57 {dimension_numbers = #tpu.dot_dimension_numbers<[1], [0], [0], [1], [0, 0, 1, 1], [], []>} : vector<8x20xbf16>, vector<20x50xbf16>, vector<8x50xf32> -> vector<8x50xf32>
    %119 = arith.addf %113, %118 : vector<8x50xf32>
    %c0_58 = arith.constant 0 : index
    %c0_59 = arith.constant 0 : index
    %120 = vector.load %arg5[%c0_58, %c0_59] : memref<1x50xf32, #tpu.memory_space<vmem>>, vector<1x50xf32>
    %121 = vector.broadcast %120 : vector<1x50xf32> to vector<8x50xf32>
    %122 = arith.addf %119, %121 : vector<8x50xf32>
    %cst_60 = arith.constant 0.000000e+00 : f32
    %123 = vector.broadcast %cst_60 : f32 to vector<8x50xf32>
    %124 = arith.maximumf %122, %123 : vector<8x50xf32>
    %125 = arith.truncf %124 : vector<8x50xf32> to vector<8x50xbf16>
    %c0_61 = arith.constant 0 : index
    %c0_62 = arith.constant 0 : index
    %126 = vector.load %arg6[%c0_61, %c0_62] : memref<50x10xbf16, #tpu.memory_space<vmem>>, vector<50x10xbf16>
    %cst_63 = arith.constant dense<0.000000e+00> : vector<8x10xf32>
    %127 = tpu.matmul %125, %126, %cst_63 {dimension_numbers = #tpu.dot_dimension_numbers<[1], [0], [0], [1], [0, 0, 1, 1], [], []>} : vector<8x50xbf16>, vector<50x10xbf16>, vector<8x10xf32> -> vector<8x10xf32>
    %c0_64 = arith.constant 0 : index
    %c0_65 = arith.constant 0 : index
    %128 = vector.load %arg7[%c0_64, %c0_65] : memref<1x10xf32, #tpu.memory_space<vmem>>, vector<1x10xf32>
    %129 = vector.broadcast %128 : vector<1x10xf32> to vector<8x10xf32>
    %130 = arith.addf %127, %129 : vector<8x10xf32>
    %cst_66 = arith.constant dense<0xFF800000> : vector<8xf32>
    %131 = vector.multi_reduction <maximumf>, %130, %cst_66 [1] : vector<8x10xf32> to vector<8xf32>
    %132 = vector.shape_cast %131 : vector<8xf32> to vector<8x1xf32>
    %133 = vector.broadcast %132 : vector<8x1xf32> to vector<8x10xf32>
    %134 = arith.subf %130, %133 : vector<8x10xf32>
    %135 = math.exp %134 : vector<8x10xf32>
    %cst_67 = arith.constant dense<0.000000e+00> : vector<8xf32>
    %136 = vector.multi_reduction <add>, %135, %cst_67 [1] : vector<8x10xf32> to vector<8xf32>
    %137 = vector.shape_cast %136 : vector<8xf32> to vector<8x1xf32>
    %138 = math.log %137 : vector<8x1xf32>
    %139 = vector.broadcast %138 : vector<8x1xf32> to vector<8x10xf32>
    %140 = arith.subf %134, %139 : vector<8x10xf32>
    %c0_68 = arith.constant 0 : index
    %c0_69 = arith.constant 0 : index
    %141 = vector.load %arg8[%c0_68, %c0_69] : memref<8x10xf32, #tpu.memory_space<vmem>>, vector<8x10xf32>
    tpu.vector_store %arg8[%c0_68, %c0_69], %140 {strides = array<i32>} : memref<8x10xf32, #tpu.memory_space<vmem>>, vector<8x10xf32>,
    return
  }
  func.func @transform_0(%arg0: i32) -> (i32, i32, i32, i32) {
    %c0_i32 = arith.constant 0 : i32
    %c0_i32_0 = arith.constant 0 : i32
    %c0_i32_1 = arith.constant 0 : i32
    %c0_i32_2 = arith.constant 0 : i32
    return %c0_i32, %c0_i32_0, %arg0, %c0_i32_1 : i32, i32, i32, i32
  }
  func.func @transform_1(%arg0: i32) -> (i32, i32) {
    %c0_i32 = arith.constant 0 : i32
    %c0_i32_0 = arith.constant 0 : i32
    %c0_i32_1 = arith.constant 0 : i32
    return %c0_i32, %c0_i32_0 : i32, i32
  }
  func.func @transform_2(%arg0: i32) -> (i32, i32) {
    %c0_i32 = arith.constant 0 : i32
    %c0_i32_0 = arith.constant 0 : i32
    %c0_i32_1 = arith.constant 0 : i32
    return %c0_i32, %c0_i32_0 : i32, i32
  }
  func.func @transform_3(%arg0: i32) -> (i32, i32, i32) {
    %c0_i32 = arith.constant 0 : i32
    %c0_i32_0 = arith.constant 0 : i32
    %c0_i32_1 = arith.constant 0 : i32
    %c0_i32_2 = arith.constant 0 : i32
    return %c0_i32, %c0_i32_0, %c0_i32_1 : i32, i32, i32
  }
  func.func @transform_4(%arg0: i32) -> (i32, i32) {
    %c0_i32 = arith.constant 0 : i32
    %c0_i32_0 = arith.constant 0 : i32
    %c0_i32_1 = arith.constant 0 : i32
    return %c0_i32, %c0_i32_0 : i32, i32
  }
  func.func @transform_5(%arg0: i32) -> (i32, i32) {
    %c0_i32 = arith.constant 0 : i32
    %c0_i32_0 = arith.constant 0 : i32
    %c0_i32_1 = arith.constant 0 : i32
    return %c0_i32, %c0_i32_0 : i32, i32
  }
  func.func @transform_6(%arg0: i32) -> (i32, i32) {
    %c0_i32 = arith.constant 0 : i32
    %c0_i32_0 = arith.constant 0 : i32
    %c0_i32_1 = arith.constant 0 : i32
    return %c0_i32, %c0_i32_0 : i32, i32
  }
  func.func @transform_7(%arg0: i32) -> (i32, i32) {
    %c0_i32 = arith.constant 0 : i32
    %c0_i32_0 = arith.constant 0 : i32
    return %arg0, %c0_i32 : i32, i32
  }
}

</mosaic_0001>

<llo_original>
// kernel: cnn_forward.2
$region0: #{cnn_forward.2}
  #allocation0 [shape = 'u32[]', space=smem, size = 0x4, offset = 0x4, fixed_abs, tag = 'smem constant byte address 0x4 - core index']
  #allocation1 [shape = 'u32[72,128]{1,0:T(1,128)}', space=vmem, size = 0x9000, scoped, tag = 'internal scratch']
  %s0 = inlined_call_operand.vmem [shape: bf16[8,4,144,25], index: 0, kind: input, shape index: {}]
  %s1 = inlined_call_operand.vmem [shape: bf16[25,10], index: 1, kind: input, shape index: {}]
  %s2 = inlined_call_operand.vmem [shape: f32[1,10], index: 2, kind: input, shape index: {}]
  %s3 = inlined_call_operand.vmem [shape: bf16[8,144,10], index: 3, kind: output, shape index: {}]
  %s4 = sld [smem:[#allocation0]]
  $region22: #{cnn_forward.2} parent=0
    _
  %s6 = ssub.s32 1, %s4
  %s7 = scalar_select 0, %s6, %s4
  // Predicated region
  $region2: #{cnn_forward.2} parent=0 // pred_check
    _
  $region3: #{cnn_forward.2} parent=0 // pred_check_branch
    %9 = sbr.rel (0) target = $region5
  $region4: #{cnn_forward.2} parent=0 // pred_region
    _
  $region5: #{cnn_forward.2} parent=0 // pred_fallthru
    _
  // Predicated region
  $region6: #{cnn_forward.2} parent=0 // pred_check
    _
  $region7: #{cnn_forward.2} parent=0 // pred_check_branch
    %11 = sbr.rel (0) target = $region9
  $region8: #{cnn_forward.2} parent=0 // pred_region
    _
  $region9: #{cnn_forward.2} parent=0 // pred_fallthru
    _
  // Predicated region
  $region10: #{cnn_forward.2} parent=0 // pred_check
    _
  $region11: #{cnn_forward.2} parent=0 // pred_check_branch
    %13 = sbr.rel (0) target = $region13
  $region12: #{cnn_forward.2} parent=0 // pred_region
    _
  $region13: #{cnn_forward.2} parent=0 // pred_fallthru
    _
  %v15 = vld [vmem:[%s0] sm:$0xf]
  %v16 = vld [vmem:[%s0 + $0x4] sm:$0xf]
  %v17 = vld [vmem:[%s0 + $0x8] sm:$0xf]
  %v18 = vld [vmem:[%s0 + $0xc] sm:$0xf]
  %v19 = vld [vmem:[%s0 + $0x10] sm:$0xf]
  %v20 = vld [vmem:[%s0 + $0x14] sm:$0xf]
  %v21 = vld [vmem:[%s0 + $0x18] sm:$0xf]
  %v22 = vld [vmem:[%s0 + $0x1c] sm:$0xf]
  %v23 = vld [vmem:[%s0 + $0x20] sm:$0xf]
  %v24 = vld [vmem:[%s0 + $0x24] sm:$0xf]
  %v25 = vld [vmem:[%s0 + $0x28] sm:$0xf]
  %v26 = vld [vmem:[%s0 + $0x2c] sm:$0xf]
  %v27 = vld [vmem:[%s0 + $0x30] sm:$0xf]
  %v28 = vld [vmem:[%s0 + $0x34] sm:$0xf]
  %v29 = vld [vmem:[%s0 + $0x38] sm:$0xf]
  %v30 = vld [vmem:[%s0 + $0x3c] sm:$0xf]
  %v31 = vld [vmem:[%s0 + $0x40] sm:$0xf]
  %v32 = vld [vmem:[%s0 + $0x44] sm:$0xf]
  %v33 = vld [vmem:[%s0 + $0x48] sm:$0xf]
  %v34 = vld [vmem:[%s0 + $0x4c] sm:$0xf]
  %v35 = vld [vmem:[%s0 + $0x50] sm:$0xf]
  %v36 = vld [vmem:[%s0 + $0x54] sm:$0xf]
  %v37 = vld [vmem:[%s0 + $0x58] sm:$0xf]
  %v38 = vld [vmem:[%s0 + $0x5c] sm:$0xf]
  %v39 = vld [vmem:[%s0 + $0x60] sm:$0xf]
  %v40 = vld [vmem:[%s0 + $0x64] sm:$0xf]
  %v41 = vld [vmem:[%s0 + $0x68] sm:$0xf]
  %v42 = vld [vmem:[%s0 + $0x6c] sm:$0xf]
  %v43 = vld [vmem:[%s0 + $0x70] sm:$0xf]
  %v44 = vld [vmem:[%s0 + $0x74] sm:$0xf]
  %v45 = vld [vmem:[%s0 + $0x78] sm:$0xf]
  %v46 = vld [vmem:[%s0 + $0x7c] sm:$0xf]
  %v47 = vld [vmem:[%s0 + $0x80] sm:$0xf]
  %v48 = vld [vmem:[%s0 + $0x84] sm:$0xf]
  %v49 = vld [vmem:[%s0 + $0x88] sm:$0xf]
  %v50 = vld [vmem:[%s0 + $0x8c] sm:$0xf]
  %v51 = vld [vmem:[%s0 + $0x90] sm:$0xf]
  %v52 = vld [vmem:[%s0 + $0x94] sm:$0xf]
  %v53 = vld [vmem:[%s0 + $0x98] sm:$0xf]
  %v54 = vld [vmem:[%s0 + $0x9c] sm:$0xf]
  %v55 = vld [vmem:[%s0 + $0xa0] sm:$0xf]
  %v56 = vld [vmem:[%s0 + $0xa4] sm:$0xf]
  %v57 = vld [vmem:[%s0 + $0xa8] sm:$0xf]
  %v58 = vld [vmem:[%s0 + $0xac] sm:$0xf]
  %v59 = vld [vmem:[%s0 + $0xb0] sm:$0xf]
  %v60 = vld [vmem:[%s0 + $0xb4] sm:$0xf]
  %v61 = vld [vmem:[%s0 + $0xb8] sm:$0xf]
  %v62 = vld [vmem:[%s0 + $0xbc] sm:$0xf]
  %v63 = vld [vmem:[%s0 + $0xc0] sm:$0xf]
  %v64 = vld [vmem:[%s0 + $0xc4] sm:$0xf]
  %v65 = vld [vmem:[%s0 + $0xc8] sm:$0xf]
  %v66 = vld [vmem:[%s0 + $0xcc] sm:$0xf]
  %v67 = vld [vmem:[%s0 + $0xd0] sm:$0xf]
  %v68 = vld [vmem:[%s0 + $0xd4] sm:$0xf]
  %v69 = vld [vmem:[%s0 + $0xd8] sm:$0xf]
  %v70 = vld [vmem:[%s0 + $0xdc] sm:$0xf]
  %v71 = vld [vmem:[%s0 + $0xe0] sm:$0xf]
  %v72 = vld [vmem:[%s0 + $0xe4] sm:$0xf]
  %v73 = vld [vmem:[%s0 + $0xe8] sm:$0xf]
  %v74 = vld [vmem:[%s0 + $0xec] sm:$0xf]
  %v75 = vld [vmem:[%s0 + $0xf0] sm:$0xf]
  %v76 = vld [vmem:[%s0 + $0xf4] sm:$0xf]
  %v77 = vld [vmem:[%s0 + $0xf8] sm:$0xf]
  %v78 = vld [vmem:[%s0 + $0xfc] sm:$0xf]
  %v79 = vld [vmem:[%s0 + $0x100] sm:$0xf]
  %v80 = vld [vmem:[%s0 + $0x104] sm:$0xf]
  %v81 = vld [vmem:[%s0 + $0x108] sm:$0xf]
  %v82 = vld [vmem:[%s0 + $0x10c] sm:$0xf]
  %v83 = vld [vmem:[%s0 + $0x110] sm:$0xf]
  %v84 = vld [vmem:[%s0 + $0x114] sm:$0xf]
  %v85 = vld [vmem:[%s0 + $0x118] sm:$0xf]
  %v86 = vld [vmem:[%s0 + $0x11c] sm:$0xf]
  %v87 = vld [vmem:[%s0 + $0x120] sm:$0xf]
  %v88 = vld [vmem:[%s0 + $0x124] sm:$0xf]
  %v89 = vld [vmem:[%s0 + $0x128] sm:$0xf]
  %v90 = vld [vmem:[%s0 + $0x12c] sm:$0xf]
  %v91 = vld [vmem:[%s0 + $0x130] sm:$0xf]
  %v92 = vld [vmem:[%s0 + $0x134] sm:$0xf]
  %v93 = vld [vmem:[%s0 + $0x138] sm:$0xf]
  %v94 = vld [vmem:[%s0 + $0x13c] sm:$0xf]
  %v95 = vld [vmem:[%s0 + $0x140] sm:$0xf]
  %v96 = vld [vmem:[%s0 + $0x144] sm:$0xf]
  %v97 = vld [vmem:[%s0 + $0x148] sm:$0xf]
  %v98 = vld [vmem:[%s0 + $0x14c] sm:$0xf]
  %v99 = vld [vmem:[%s0 + $0x150] sm:$0xf]
  %v100 = vld [vmem:[%s0 + $0x154] sm:$0xf]
  %v101 = vld [vmem:[%s0 + $0x158] sm:$0xf]
  %v102 = vld [vmem:[%s0 + $0x15c] sm:$0xf]
  %v103 = vld [vmem:[%s0 + $0x160] sm:$0xf]
  %v104 = vld [vmem:[%s0 + $0x164] sm:$0xf]
  %v105 = vld [vmem:[%s0 + $0x168] sm:$0xf]
  %v106 = vld [vmem:[%s0 + $0x16c] sm:$0xf]
  %v107 = vld [vmem:[%s0 + $0x170] sm:$0xf]
  %v108 = vld [vmem:[%s0 + $0x174] sm:$0xf]
  %v109 = vld [vmem:[%s0 + $0x178] sm:$0xf]
  %v110 = vld [vmem:[%s0 + $0x17c] sm:$0xf]
  %v111 = vld [vmem:[%s0 + $0x180] sm:$0xf]
  %v112 = vld [vmem:[%s0 + $0x184] sm:$0xf]
  %v113 = vld [vmem:[%s0 + $0x188] sm:$0xf]
  %v114 = vld [vmem:[%s0 + $0x18c] sm:$0xf]
  %v115 = vld [vmem:[%s0 + $0x190] sm:$0xf]
  %v116 = vld [vmem:[%s0 + $0x194] sm:$0xf]
  %v117 = vld [vmem:[%s0 + $0x198] sm:$0xf]
  %v118 = vld [vmem:[%s0 + $0x19c] sm:$0xf]
  %v119 = vld [vmem:[%s0 + $0x1a0] sm:$0xf]
  %v120 = vld [vmem:[%s0 + $0x1a4] sm:$0xf]
  %v121 = vld [vmem:[%s0 + $0x1a8] sm:$0xf]
  %v122 = vld [vmem:[%s0 + $0x1ac] sm:$0xf]
  %v123 = vld [vmem:[%s0 + $0x1b0] sm:$0xf]
  %v124 = vld [vmem:[%s0 + $0x1b4] sm:$0xf]
  %v125 = vld [vmem:[%s0 + $0x1b8] sm:$0xf]
  %v126 = vld [vmem:[%s0 + $0x1bc] sm:$0xf]
  %v127 = vld [vmem:[%s0 + $0x1c0] sm:$0xf]
  %v128 = vld [vmem:[%s0 + $0x1c4] sm:$0xf]
  %v129 = vld [vmem:[%s0 + $0x1c8] sm:$0xf]
  %v130 = vld [vmem:[%s0 + $0x1cc] sm:$0xf]
  %v131 = vld [vmem:[%s0 + $0x1d0] sm:$0xf]
  %v132 = vld [vmem:[%s0 + $0x1d4] sm:$0xf]
  %v133 = vld [vmem:[%s0 + $0x1d8] sm:$0xf]
  %v134 = vld [vmem:[%s0 + $0x1dc] sm:$0xf]
  %v135 = vld [vmem:[%s0 + $0x1e0] sm:$0xf]
  %v136 = vld [vmem:[%s0 + $0x1e4] sm:$0xf]
  %v137 = vld [vmem:[%s0 + $0x1e8] sm:$0xf]
  %v138 = vld [vmem:[%s0 + $0x1ec] sm:$0xf]
  %v139 = vld [vmem:[%s0 + $0x1f0] sm:$0xf]
  %v140 = vld [vmem:[%s0 + $0x1f4] sm:$0xf]
  %v141 = vld [vmem:[%s0 + $0x1f8] sm:$0xf]
  %v142 = vld [vmem:[%s0 + $0x1fc] sm:$0xf]
  %v143 = vld [vmem:[%s0 + $0x200] sm:$0xf]
  %v144 = vld [vmem:[%s0 + $0x204] sm:$0xf]
  %v145 = vld [vmem:[%s0 + $0x208] sm:$0xf]
  %v146 = vld [vmem:[%s0 + $0x20c] sm:$0xf]
  %v147 = vld [vmem:[%s0 + $0x210] sm:$0xf]
  %v148 = vld [vmem:[%s0 + $0x214] sm:$0xf]
  %v149 = vld [vmem:[%s0 + $0x218] sm:$0xf]
  %v150 = vld [vmem:[%s0 + $0x21c] sm:$0xf]
  %v151 = vld [vmem:[%s0 + $0x220] sm:$0xf]
  %v152 = vld [vmem:[%s0 + $0x224] sm:$0xf]
  %v153 = vld [vmem:[%s0 + $0x228] sm:$0xf]
  %v154 = vld [vmem:[%s0 + $0x22c] sm:$0xf]
  %v155 = vld [vmem:[%s0 + $0x230] sm:$0xf]
  %v156 = vld [vmem:[%s0 + $0x234] sm:$0xf]
  %v157 = vld [vmem:[%s0 + $0x238] sm:$0xf]
  %v158 = vld [vmem:[%s0 + $0x23c] sm:$0xf]
  %v159 = vld [vmem:[%s0 + $0x240] sm:$0xf]
  %v160 = vld [vmem:[%s0 + $0x244] sm:$0xf]
  %v161 = vld [vmem:[%s0 + $0x248] sm:$0xf]
  %v162 = vld [vmem:[%s0 + $0x24c] sm:$0xf]
  %v163 = vld [vmem:[%s0 + $0x250] sm:$0xf]
  %v164 = vld [vmem:[%s0 + $0x254] sm:$0xf]
  %v165 = vld [vmem:[%s0 + $0x258] sm:$0xf]
  %v166 = vld [vmem:[%s0 + $0x25c] sm:$0xf]
  %v167 = vld [vmem:[%s0 + $0x260] sm:$0xf]
  %v168 = vld [vmem:[%s0 + $0x264] sm:$0xf]
  %v169 = vld [vmem:[%s0 + $0x268] sm:$0xf]
  %v170 = vld [vmem:[%s0 + $0x26c] sm:$0xf]
  %v171 = vld [vmem:[%s0 + $0x270] sm:$0xf]
  %v172 = vld [vmem:[%s0 + $0x274] sm:$0xf]
  %v173 = vld [vmem:[%s0 + $0x278] sm:$0xf]
  %v174 = vld [vmem:[%s0 + $0x27c] sm:$0xf]
  %v175 = vld [vmem:[%s0 + $0x280] sm:$0xf]
  %v176 = vld [vmem:[%s0 + $0x284] sm:$0xf]
  %v177 = vld [vmem:[%s0 + $0x288] sm:$0xf]
  %v178 = vld [vmem:[%s0 + $0x28c] sm:$0xf]
  %v179 = vld [vmem:[%s0 + $0x290] sm:$0xf]
  %v180 = vld [vmem:[%s0 + $0x294] sm:$0xf]
  %v181 = vld [vmem:[%s0 + $0x298] sm:$0xf]
  %v182 = vld [vmem:[%s0 + $0x29c] sm:$0xf]
  %v183 = vld [vmem:[%s0 + $0x2a0] sm:$0xf]
  %v184 = vld [vmem:[%s0 + $0x2a4] sm:$0xf]
  %v185 = vld [vmem:[%s0 + $0x2a8] sm:$0xf]
  %v186 = vld [vmem:[%s0 + $0x2ac] sm:$0xf]
  %v187 = vld [vmem:[%s0 + $0x2b0] sm:$0xf]
  %v188 = vld [vmem:[%s0 + $0x2b4] sm:$0xf]
  %v189 = vld [vmem:[%s0 + $0x2b8] sm:$0xf]
  %v190 = vld [vmem:[%s0 + $0x2bc] sm:$0xf]
  %v191 = vld [vmem:[%s0 + $0x2c0] sm:$0xf]
  %v192 = vld [vmem:[%s0 + $0x2c4] sm:$0xf]
  %v193 = vld [vmem:[%s0 + $0x2c8] sm:$0xf]
  %v194 = vld [vmem:[%s0 + $0x2cc] sm:$0xf]
  %v195 = vld [vmem:[%s0 + $0x2d0] sm:$0xf]
  %v196 = vld [vmem:[%s0 + $0x2d4] sm:$0xf]
  %v197 = vld [vmem:[%s0 + $0x2d8] sm:$0xf]
  %v198 = vld [vmem:[%s0 + $0x2dc] sm:$0xf]
  %v199 = vld [vmem:[%s0 + $0x2e0] sm:$0xf]
  %v200 = vld [vmem:[%s0 + $0x2e4] sm:$0xf]
  %v201 = vld [vmem:[%s0 + $0x2e8] sm:$0xf]
  %v202 = vld [vmem:[%s0 + $0x2ec] sm:$0xf]
  %v203 = vld [vmem:[%s0 + $0x2f0] sm:$0xf]
  %v204 = vld [vmem:[%s0 + $0x2f4] sm:$0xf]
  %v205 = vld [vmem:[%s0 + $0x2f8] sm:$0xf]
  %v206 = vld [vmem:[%s0 + $0x2fc] sm:$0xf]
  %v207 = vld [vmem:[%s0 + $0x300] sm:$0xf]
  %v208 = vld [vmem:[%s0 + $0x304] sm:$0xf]
  %v209 = vld [vmem:[%s0 + $0x308] sm:$0xf]
  %v210 = vld [vmem:[%s0 + $0x30c] sm:$0xf]
  %v211 = vld [vmem:[%s0 + $0x310] sm:$0xf]
  %v212 = vld [vmem:[%s0 + $0x314] sm:$0xf]
  %v213 = vld [vmem:[%s0 + $0x318] sm:$0xf]
  %v214 = vld [vmem:[%s0 + $0x31c] sm:$0xf]
  %v215 = vld [vmem:[%s0 + $0x320] sm:$0xf]
  %v216 = vld [vmem:[%s0 + $0x324] sm:$0xf]
  %v217 = vld [vmem:[%s0 + $0x328] sm:$0xf]
  %v218 = vld [vmem:[%s0 + $0x32c] sm:$0xf]
  %v219 = vld [vmem:[%s0 + $0x330] sm:$0xf]
  %v220 = vld [vmem:[%s0 + $0x334] sm:$0xf]
  %v221 = vld [vmem:[%s0 + $0x338] sm:$0xf]
  %v222 = vld [vmem:[%s0 + $0x33c] sm:$0xf]
  %v223 = vld [vmem:[%s0 + $0x340] sm:$0xf]
  %v224 = vld [vmem:[%s0 + $0x344] sm:$0xf]
  %v225 = vld [vmem:[%s0 + $0x348] sm:$0xf]
  %v226 = vld [vmem:[%s0 + $0x34c] sm:$0xf]
  %v227 = vld [vmem:[%s0 + $0x350] sm:$0xf]
  %v228 = vld [vmem:[%s0 + $0x354] sm:$0xf]
  %v229 = vld [vmem:[%s0 + $0x358] sm:$0xf]
  %v230 = vld [vmem:[%s0 + $0x35c] sm:$0xf]
  %v231 = vld [vmem:[%s0 + $0x360] sm:$0xf]
  %v232 = vld [vmem:[%s0 + $0x364] sm:$0xf]
  %v233 = vld [vmem:[%s0 + $0x368] sm:$0xf]
  %v234 = vld [vmem:[%s0 + $0x36c] sm:$0xf]
  %v235 = vld [vmem:[%s0 + $0x370] sm:$0xf]
  %v236 = vld [vmem:[%s0 + $0x374] sm:$0xf]
  %v237 = vld [vmem:[%s0 + $0x378] sm:$0xf]
  %v238 = vld [vmem:[%s0 + $0x37c] sm:$0xf]
  %v239 = vld [vmem:[%s0 + $0x380] sm:$0xf]
  %v240 = vld [vmem:[%s0 + $0x384] sm:$0xf]
  %v241 = vld [vmem:[%s0 + $0x388] sm:$0xf]
  %v242 = vld [vmem:[%s0 + $0x38c] sm:$0xf]
  %v243 = vld [vmem:[%s0 + $0x390] sm:$0xf]
  %v244 = vld [vmem:[%s0 + $0x394] sm:$0xf]
  %v245 = vld [vmem:[%s0 + $0x398] sm:$0xf]
  %v246 = vld [vmem:[%s0 + $0x39c] sm:$0xf]
  %v247 = vld [vmem:[%s0 + $0x3a0] sm:$0xf]
  %v248 = vld [vmem:[%s0 + $0x3a4] sm:$0xf]
  %v249 = vld [vmem:[%s0 + $0x3a8] sm:$0xf]
  %v250 = vld [vmem:[%s0 + $0x3ac] sm:$0xf]
  %v251 = vld [vmem:[%s0 + $0x3b0] sm:$0xf]
  %v252 = vld [vmem:[%s0 + $0x3b4] sm:$0xf]
  %v253 = vld [vmem:[%s0 + $0x3b8] sm:$0xf]
  %v254 = vld [vmem:[%s0 + $0x3bc] sm:$0xf]
  %v255 = vld [vmem:[%s0 + $0x3c0] sm:$0xf]
  %v256 = vld [vmem:[%s0 + $0x3c4] sm:$0xf]
  %v257 = vld [vmem:[%s0 + $0x3c8] sm:$0xf]
  %v258 = vld [vmem:[%s0 + $0x3cc] sm:$0xf]
  %v259 = vld [vmem:[%s0 + $0x3d0] sm:$0xf]
  %v260 = vld [vmem:[%s0 + $0x3d4] sm:$0xf]
  %v261 = vld [vmem:[%s0 + $0x3d8] sm:$0xf]
  %v262 = vld [vmem:[%s0 + $0x3dc] sm:$0xf]
  %v263 = vld [vmem:[%s0 + $0x3e0] sm:$0xf]
  %v264 = vld [vmem:[%s0 + $0x3e4] sm:$0xf]
  %v265 = vld [vmem:[%s0 + $0x3e8] sm:$0xf]
  %v266 = vld [vmem:[%s0 + $0x3ec] sm:$0xf]
  %v267 = vld [vmem:[%s0 + $0x3f0] sm:$0xf]
  %v268 = vld [vmem:[%s0 + $0x3f4] sm:$0xf]
  %v269 = vld [vmem:[%s0 + $0x3f8] sm:$0xf]
  %v270 = vld [vmem:[%s0 + $0x3fc] sm:$0xf]
  %v271 = vld [vmem:[%s0 + $0x400] sm:$0xf]
  %v272 = vld [vmem:[%s0 + $0x404] sm:$0xf]
  %v273 = vld [vmem:[%s0 + $0x408] sm:$0xf]
  %v274 = vld [vmem:[%s0 + $0x40c] sm:$0xf]
  %v275 = vld [vmem:[%s0 + $0x410] sm:$0xf]
  %v276 = vld [vmem:[%s0 + $0x414] sm:$0xf]
  %v277 = vld [vmem:[%s0 + $0x418] sm:$0xf]
  %v278 = vld [vmem:[%s0 + $0x41c] sm:$0xf]
  %v279 = vld [vmem:[%s0 + $0x420] sm:$0xf]
  %v280 = vld [vmem:[%s0 + $0x424] sm:$0xf]
  %v281 = vld [vmem:[%s0 + $0x428] sm:$0xf]
  %v282 = vld [vmem:[%s0 + $0x42c] sm:$0xf]
  %v283 = vld [vmem:[%s0 + $0x430] sm:$0xf]
  %v284 = vld [vmem:[%s0 + $0x434] sm:$0xf]
  %v285 = vld [vmem:[%s0 + $0x438] sm:$0xf]
  %v286 = vld [vmem:[%s0 + $0x43c] sm:$0xf]
  %v287 = vld [vmem:[%s0 + $0x440] sm:$0xf]
  %v288 = vld [vmem:[%s0 + $0x444] sm:$0xf]
  %v289 = vld [vmem:[%s0 + $0x448] sm:$0xf]
  %v290 = vld [vmem:[%s0 + $0x44c] sm:$0xf]
  %v291 = vld [vmem:[%s0 + $0x450] sm:$0xf]
  %v292 = vld [vmem:[%s0 + $0x454] sm:$0xf]
  %v293 = vld [vmem:[%s0 + $0x458] sm:$0xf]
  %v294 = vld [vmem:[%s0 + $0x45c] sm:$0xf]
  %v295 = vld [vmem:[%s0 + $0x460] sm:$0xf]
  %v296 = vld [vmem:[%s0 + $0x464] sm:$0xf]
  %v297 = vld [vmem:[%s0 + $0x468] sm:$0xf]
  %v298 = vld [vmem:[%s0 + $0x46c] sm:$0xf]
  %v299 = vld [vmem:[%s0 + $0x470] sm:$0xf]
  %v300 = vld [vmem:[%s0 + $0x474] sm:$0xf]
  %v301 = vld [vmem:[%s0 + $0x478] sm:$0xf]
  %v302 = vld [vmem:[%s0 + $0x47c] sm:$0xf]
  %v303 = vld [vmem:[%s0 + $0x480] sm:$0xf]
  %v304 = vld [vmem:[%s0 + $0x484] sm:$0xf]
  %v305 = vld [vmem:[%s0 + $0x488] sm:$0xf]
  %v306 = vld [vmem:[%s0 + $0x48c] sm:$0xf]
  %v307 = vld [vmem:[%s0 + $0x490] sm:$0xf]
  %v308 = vld [vmem:[%s0 + $0x494] sm:$0xf]
  %v309 = vld [vmem:[%s0 + $0x498] sm:$0xf]
  %v310 = vld [vmem:[%s0 + $0x49c] sm:$0xf]
  %v311 = vld [vmem:[%s0 + $0x4a0] sm:$0xf]
  %v312 = vld [vmem:[%s0 + $0x4a4] sm:$0xf]
  %v313 = vld [vmem:[%s0 + $0x4a8] sm:$0xf]
  %v314 = vld [vmem:[%s0 + $0x4ac] sm:$0xf]
  %v315 = vld [vmem:[%s0 + $0x4b0] sm:$0xf]
  %v316 = vld [vmem:[%s0 + $0x4b4] sm:$0xf]
  %v317 = vld [vmem:[%s0 + $0x4b8] sm:$0xf]
  %v318 = vld [vmem:[%s0 + $0x4bc] sm:$0xf]
  %v319 = vld [vmem:[%s0 + $0x4c0] sm:$0xf]
  %v320 = vld [vmem:[%s0 + $0x4c4] sm:$0xf]
  %v321 = vld [vmem:[%s0 + $0x4c8] sm:$0xf]
  %v322 = vld [vmem:[%s0 + $0x4cc] sm:$0xf]
  %v323 = vld [vmem:[%s0 + $0x4d0] sm:$0xf]
  %v324 = vld [vmem:[%s0 + $0x4d4] sm:$0xf]
  %v325 = vld [vmem:[%s0 + $0x4d8] sm:$0xf]
  %v326 = vld [vmem:[%s0 + $0x4dc] sm:$0xf]
  %v327 = vld [vmem:[%s0 + $0x4e0] sm:$0xf]
  %v328 = vld [vmem:[%s0 + $0x4e4] sm:$0xf]
  %v329 = vld [vmem:[%s0 + $0x4e8] sm:$0xf]
  %v330 = vld [vmem:[%s0 + $0x4ec] sm:$0xf]
  %v331 = vld [vmem:[%s0 + $0x4f0] sm:$0xf]
  %v332 = vld [vmem:[%s0 + $0x4f4] sm:$0xf]
  %v333 = vld [vmem:[%s0 + $0x4f8] sm:$0xf]
  %v334 = vld [vmem:[%s0 + $0x4fc] sm:$0xf]
  %v335 = vld [vmem:[%s0 + $0x500] sm:$0xf]
  %v336 = vld [vmem:[%s0 + $0x504] sm:$0xf]
  %v337 = vld [vmem:[%s0 + $0x508] sm:$0xf]
  %v338 = vld [vmem:[%s0 + $0x50c] sm:$0xf]
  %v339 = vld [vmem:[%s0 + $0x510] sm:$0xf]
  %v340 = vld [vmem:[%s0 + $0x514] sm:$0xf]
  %v341 = vld [vmem:[%s0 + $0x518] sm:$0xf]
  %v342 = vld [vmem:[%s0 + $0x51c] sm:$0xf]
  %v343 = vld [vmem:[%s0 + $0x520] sm:$0xf]
  %v344 = vld [vmem:[%s0 + $0x524] sm:$0xf]
  %v345 = vld [vmem:[%s0 + $0x528] sm:$0xf]
  %v346 = vld [vmem:[%s0 + $0x52c] sm:$0xf]
  %v347 = vld [vmem:[%s0 + $0x530] sm:$0xf]
  %v348 = vld [vmem:[%s0 + $0x534] sm:$0xf]
  %v349 = vld [vmem:[%s0 + $0x538] sm:$0xf]
  %v350 = vld [vmem:[%s0 + $0x53c] sm:$0xf]
  %v351 = vld [vmem:[%s0 + $0x540] sm:$0xf]
  %v352 = vld [vmem:[%s0 + $0x544] sm:$0xf]
  %v353 = vld [vmem:[%s0 + $0x548] sm:$0xf]
  %v354 = vld [vmem:[%s0 + $0x54c] sm:$0xf]
  %v355 = vld [vmem:[%s0 + $0x550] sm:$0xf]
  %v356 = vld [vmem:[%s0 + $0x554] sm:$0xf]
  %v357 = vld [vmem:[%s0 + $0x558] sm:$0xf]
  %v358 = vld [vmem:[%s0 + $0x55c] sm:$0xf]
  %v359 = vld [vmem:[%s0 + $0x560] sm:$0xf]
  %v360 = vld [vmem:[%s0 + $0x564] sm:$0xf]
  %v361 = vld [vmem:[%s0 + $0x568] sm:$0xf]
  %v362 = vld [vmem:[%s0 + $0x56c] sm:$0xf]
  %v363 = vld [vmem:[%s0 + $0x570] sm:$0xf]
  %v364 = vld [vmem:[%s0 + $0x574] sm:$0xf]
  %v365 = vld [vmem:[%s0 + $0x578] sm:$0xf]
  %v366 = vld [vmem:[%s0 + $0x57c] sm:$0xf]
  %v367 = vld [vmem:[%s0 + $0x580] sm:$0xf]
  %v368 = vld [vmem:[%s0 + $0x584] sm:$0xf]
  %v369 = vld [vmem:[%s0 + $0x588] sm:$0xf]
  %v370 = vld [vmem:[%s0 + $0x58c] sm:$0xf]
  %v371 = vld [vmem:[%s0 + $0x590] sm:$0xf]
  %v372 = vld [vmem:[%s0 + $0x594] sm:$0xf]
  %v373 = vld [vmem:[%s0 + $0x598] sm:$0xf]
  %v374 = vld [vmem:[%s0 + $0x59c] sm:$0xf]
  %v375 = vld [vmem:[%s0 + $0x5a0] sm:$0xf]
  %v376 = vld [vmem:[%s0 + $0x5a4] sm:$0xf]
  %v377 = vld [vmem:[%s0 + $0x5a8] sm:$0xf]
  %v378 = vld [vmem:[%s0 + $0x5ac] sm:$0xf]
  %v379 = vld [vmem:[%s0 + $0x5b0] sm:$0xf]
  %v380 = vld [vmem:[%s0 + $0x5b4] sm:$0xf]
  %v381 = vld [vmem:[%s0 + $0x5b8] sm:$0xf]
  %v382 = vld [vmem:[%s0 + $0x5bc] sm:$0xf]
  %v383 = vld [vmem:[%s0 + $0x5c0] sm:$0xf]
  %v384 = vld [vmem:[%s0 + $0x5c4] sm:$0xf]
  %v385 = vld [vmem:[%s0 + $0x5c8] sm:$0xf]
  %v386 = vld [vmem:[%s0 + $0x5cc] sm:$0xf]
  %v387 = vld [vmem:[%s0 + $0x5d0] sm:$0xf]
  %v388 = vld [vmem:[%s0 + $0x5d4] sm:$0xf]
  %v389 = vld [vmem:[%s0 + $0x5d8] sm:$0xf]
  %v390 = vld [vmem:[%s0 + $0x5dc] sm:$0xf]
  %v391 = vld [vmem:[%s0 + $0x5e0] sm:$0xf]
  %v392 = vld [vmem:[%s0 + $0x5e4] sm:$0xf]
  %v393 = vld [vmem:[%s0 + $0x5e8] sm:$0xf]
  %v394 = vld [vmem:[%s0 + $0x5ec] sm:$0xf]
  %v395 = vld [vmem:[%s0 + $0x5f0] sm:$0xf]
  %v396 = vld [vmem:[%s0 + $0x5f4] sm:$0xf]
  %v397 = vld [vmem:[%s0 + $0x5f8] sm:$0xf]
  %v398 = vld [vmem:[%s0 + $0x5fc] sm:$0xf]
  %v399 = vld [vmem:[%s0 + $0x600] sm:$0xf]
  %v400 = vld [vmem:[%s0 + $0x604] sm:$0xf]
  %v401 = vld [vmem:[%s0 + $0x608] sm:$0xf]
  %v402 = vld [vmem:[%s0 + $0x60c] sm:$0xf]
  %v403 = vld [vmem:[%s0 + $0x610] sm:$0xf]
  %v404 = vld [vmem:[%s0 + $0x614] sm:$0xf]
  %v405 = vld [vmem:[%s0 + $0x618] sm:$0xf]
  %v406 = vld [vmem:[%s0 + $0x61c] sm:$0xf]
  %v407 = vld [vmem:[%s0 + $0x620] sm:$0xf]
  %v408 = vld [vmem:[%s0 + $0x624] sm:$0xf]
  %v409 = vld [vmem:[%s0 + $0x628] sm:$0xf]
  %v410 = vld [vmem:[%s0 + $0x62c] sm:$0xf]
  %v411 = vld [vmem:[%s0 + $0x630] sm:$0xf]
  %v412 = vld [vmem:[%s0 + $0x634] sm:$0xf]
  %v413 = vld [vmem:[%s0 + $0x638] sm:$0xf]
  %v414 = vld [vmem:[%s0 + $0x63c] sm:$0xf]
  %v415 = vld [vmem:[%s0 + $0x640] sm:$0xf]
  %v416 = vld [vmem:[%s0 + $0x644] sm:$0xf]
  %v417 = vld [vmem:[%s0 + $0x648] sm:$0xf]
  %v418 = vld [vmem:[%s0 + $0x64c] sm:$0xf]
  %v419 = vld [vmem:[%s0 + $0x650] sm:$0xf]
  %v420 = vld [vmem:[%s0 + $0x654] sm:$0xf]
  %v421 = vld [vmem:[%s0 + $0x658] sm:$0xf]
  %v422 = vld [vmem:[%s0 + $0x65c] sm:$0xf]
  %v423 = vld [vmem:[%s0 + $0x660] sm:$0xf]
  %v424 = vld [vmem:[%s0 + $0x664] sm:$0xf]
  %v425 = vld [vmem:[%s0 + $0x668] sm:$0xf]
  %v426 = vld [vmem:[%s0 + $0x66c] sm:$0xf]
  %v427 = vld [vmem:[%s0 + $0x670] sm:$0xf]
  %v428 = vld [vmem:[%s0 + $0x674] sm:$0xf]
  %v429 = vld [vmem:[%s0 + $0x678] sm:$0xf]
  %v430 = vld [vmem:[%s0 + $0x67c] sm:$0xf]
  %v431 = vld [vmem:[%s0 + $0x680] sm:$0xf]
  %v432 = vld [vmem:[%s0 + $0x684] sm:$0xf]
  %v433 = vld [vmem:[%s0 + $0x688] sm:$0xf]
  %v434 = vld [vmem:[%s0 + $0x68c] sm:$0xf]
  %v435 = vld [vmem:[%s0 + $0x690] sm:$0xf]
  %v436 = vld [vmem:[%s0 + $0x694] sm:$0xf]
  %v437 = vld [vmem:[%s0 + $0x698] sm:$0xf]
  %v438 = vld [vmem:[%s0 + $0x69c] sm:$0xf]
  %v439 = vld [vmem:[%s0 + $0x6a0] sm:$0xf]
  %v440 = vld [vmem:[%s0 + $0x6a4] sm:$0xf]
  %v441 = vld [vmem:[%s0 + $0x6a8] sm:$0xf]
  %v442 = vld [vmem:[%s0 + $0x6ac] sm:$0xf]
  %v443 = vld [vmem:[%s0 + $0x6b0] sm:$0xf]
  %v444 = vld [vmem:[%s0 + $0x6b4] sm:$0xf]
  %v445 = vld [vmem:[%s0 + $0x6b8] sm:$0xf]
  %v446 = vld [vmem:[%s0 + $0x6bc] sm:$0xf]
  %v447 = vld [vmem:[%s0 + $0x6c0] sm:$0xf]
  %v448 = vld [vmem:[%s0 + $0x6c4] sm:$0xf]
  %v449 = vld [vmem:[%s0 + $0x6c8] sm:$0xf]
  %v450 = vld [vmem:[%s0 + $0x6cc] sm:$0xf]
  %v451 = vld [vmem:[%s0 + $0x6d0] sm:$0xf]
  %v452 = vld [vmem:[%s0 + $0x6d4] sm:$0xf]
  %v453 = vld [vmem:[%s0 + $0x6d8] sm:$0xf]
  %v454 = vld [vmem:[%s0 + $0x6dc] sm:$0xf]
  %v455 = vld [vmem:[%s0 + $0x6e0] sm:$0xf]
  %v456 = vld [vmem:[%s0 + $0x6e4] sm:$0xf]
  %v457 = vld [vmem:[%s0 + $0x6e8] sm:$0xf]
  %v458 = vld [vmem:[%s0 + $0x6ec] sm:$0xf]
  %v459 = vld [vmem:[%s0 + $0x6f0] sm:$0xf]
  %v460 = vld [vmem:[%s0 + $0x6f4] sm:$0xf]
  %v461 = vld [vmem:[%s0 + $0x6f8] sm:$0xf]
  %v462 = vld [vmem:[%s0 + $0x6fc] sm:$0xf]
  %v463 = vld [vmem:[%s0 + $0x700] sm:$0xf]
  %v464 = vld [vmem:[%s0 + $0x704] sm:$0xf]
  %v465 = vld [vmem:[%s0 + $0x708] sm:$0xf]
  %v466 = vld [vmem:[%s0 + $0x70c] sm:$0xf]
  %v467 = vld [vmem:[%s0 + $0x710] sm:$0xf]
  %v468 = vld [vmem:[%s0 + $0x714] sm:$0xf]
  %v469 = vld [vmem:[%s0 + $0x718] sm:$0xf]
  %v470 = vld [vmem:[%s0 + $0x71c] sm:$0xf]
  %v471 = vld [vmem:[%s0 + $0x720] sm:$0xf]
  %v472 = vld [vmem:[%s0 + $0x724] sm:$0xf]
  %v473 = vld [vmem:[%s0 + $0x728] sm:$0xf]
  %v474 = vld [vmem:[%s0 + $0x72c] sm:$0xf]
  %v475 = vld [vmem:[%s0 + $0x730] sm:$0xf]
  %v476 = vld [vmem:[%s0 + $0x734] sm:$0xf]
  %v477 = vld [vmem:[%s0 + $0x738] sm:$0xf]
  %v478 = vld [vmem:[%s0 + $0x73c] sm:$0xf]
  %v479 = vld [vmem:[%s0 + $0x740] sm:$0xf]
  %v480 = vld [vmem:[%s0 + $0x744] sm:$0xf]
  %v481 = vld [vmem:[%s0 + $0x748] sm:$0xf]
  %v482 = vld [vmem:[%s0 + $0x74c] sm:$0xf]
  %v483 = vld [vmem:[%s0 + $0x750] sm:$0xf]
  %v484 = vld [vmem:[%s0 + $0x754] sm:$0xf]
  %v485 = vld [vmem:[%s0 + $0x758] sm:$0xf]
  %v486 = vld [vmem:[%s0 + $0x75c] sm:$0xf]
  %v487 = vld [vmem:[%s0 + $0x760] sm:$0xf]
  %v488 = vld [vmem:[%s0 + $0x764] sm:$0xf]
  %v489 = vld [vmem:[%s0 + $0x768] sm:$0xf]
  %v490 = vld [vmem:[%s0 + $0x76c] sm:$0xf]
  %v491 = vld [vmem:[%s0 + $0x770] sm:$0xf]
  %v492 = vld [vmem:[%s0 + $0x774] sm:$0xf]
  %v493 = vld [vmem:[%s0 + $0x778] sm:$0xf]
  %v494 = vld [vmem:[%s0 + $0x77c] sm:$0xf]
  %v495 = vld [vmem:[%s0 + $0x780] sm:$0xf]
  %v496 = vld [vmem:[%s0 + $0x784] sm:$0xf]
  %v497 = vld [vmem:[%s0 + $0x788] sm:$0xf]
  %v498 = vld [vmem:[%s0 + $0x78c] sm:$0xf]
  %v499 = vld [vmem:[%s0 + $0x790] sm:$0xf]
  %v500 = vld [vmem:[%s0 + $0x794] sm:$0xf]
  %v501 = vld [vmem:[%s0 + $0x798] sm:$0xf]
  %v502 = vld [vmem:[%s0 + $0x79c] sm:$0xf]
  %v503 = vld [vmem:[%s0 + $0x7a0] sm:$0xf]
  %v504 = vld [vmem:[%s0 + $0x7a4] sm:$0xf]
  %v505 = vld [vmem:[%s0 + $0x7a8] sm:$0xf]
  %v506 = vld [vmem:[%s0 + $0x7ac] sm:$0xf]
  %v507 = vld [vmem:[%s0 + $0x7b0] sm:$0xf]
  %v508 = vld [vmem:[%s0 + $0x7b4] sm:$0xf]
  %v509 = vld [vmem:[%s0 + $0x7b8] sm:$0xf]
  %v510 = vld [vmem:[%s0 + $0x7bc] sm:$0xf]
  %v511 = vld [vmem:[%s0 + $0x7c0] sm:$0xf]
  %v512 = vld [vmem:[%s0 + $0x7c4] sm:$0xf]
  %v513 = vld [vmem:[%s0 + $0x7c8] sm:$0xf]
  %v514 = vld [vmem:[%s0 + $0x7cc] sm:$0xf]
  %v515 = vld [vmem:[%s0 + $0x7d0] sm:$0xf]
  %v516 = vld [vmem:[%s0 + $0x7d4] sm:$0xf]
  %v517 = vld [vmem:[%s0 + $0x7d8] sm:$0xf]
  %v518 = vld [vmem:[%s0 + $0x7dc] sm:$0xf]
  %v519 = vld [vmem:[%s0 + $0x7e0] sm:$0xf]
  %v520 = vld [vmem:[%s0 + $0x7e4] sm:$0xf]
  %v521 = vld [vmem:[%s0 + $0x7e8] sm:$0xf]
  %v522 = vld [vmem:[%s0 + $0x7ec] sm:$0xf]
  %v523 = vld [vmem:[%s0 + $0x7f0] sm:$0xf]
  %v524 = vld [vmem:[%s0 + $0x7f4] sm:$0xf]
  %v525 = vld [vmem:[%s0 + $0x7f8] sm:$0xf]
  %v526 = vld [vmem:[%s0 + $0x7fc] sm:$0xf]
  %v527 = vld [vmem:[%s0 + $0x800] sm:$0xf]
  %v528 = vld [vmem:[%s0 + $0x804] sm:$0xf]
  %v529 = vld [vmem:[%s0 + $0x808] sm:$0xf]
  %v530 = vld [vmem:[%s0 + $0x80c] sm:$0xf]
  %v531 = vld [vmem:[%s0 + $0x810] sm:$0xf]
  %v532 = vld [vmem:[%s0 + $0x814] sm:$0xf]
  %v533 = vld [vmem:[%s0 + $0x818] sm:$0xf]
  %v534 = vld [vmem:[%s0 + $0x81c] sm:$0xf]
  %v535 = vld [vmem:[%s0 + $0x820] sm:$0xf]
  %v536 = vld [vmem:[%s0 + $0x824] sm:$0xf]
  %v537 = vld [vmem:[%s0 + $0x828] sm:$0xf]
  %v538 = vld [vmem:[%s0 + $0x82c] sm:$0xf]
  %v539 = vld [vmem:[%s0 + $0x830] sm:$0xf]
  %v540 = vld [vmem:[%s0 + $0x834] sm:$0xf]
  %v541 = vld [vmem:[%s0 + $0x838] sm:$0xf]
  %v542 = vld [vmem:[%s0 + $0x83c] sm:$0xf]
  %v543 = vld [vmem:[%s0 + $0x840] sm:$0xf]
  %v544 = vld [vmem:[%s0 + $0x844] sm:$0xf]
  %v545 = vld [vmem:[%s0 + $0x848] sm:$0xf]
  %v546 = vld [vmem:[%s0 + $0x84c] sm:$0xf]
  %v547 = vld [vmem:[%s0 + $0x850] sm:$0xf]
  %v548 = vld [vmem:[%s0 + $0x854] sm:$0xf]
  %v549 = vld [vmem:[%s0 + $0x858] sm:$0xf]
  %v550 = vld [vmem:[%s0 + $0x85c] sm:$0xf]
  %v551 = vld [vmem:[%s0 + $0x860] sm:$0xf]
  %v552 = vld [vmem:[%s0 + $0x864] sm:$0xf]
  %v553 = vld [vmem:[%s0 + $0x868] sm:$0xf]
  %v554 = vld [vmem:[%s0 + $0x86c] sm:$0xf]
  %v555 = vld [vmem:[%s0 + $0x870] sm:$0xf]
  %v556 = vld [vmem:[%s0 + $0x874] sm:$0xf]
  %v557 = vld [vmem:[%s0 + $0x878] sm:$0xf]
  %v558 = vld [vmem:[%s0 + $0x87c] sm:$0xf]
  %v559 = vld [vmem:[%s0 + $0x880] sm:$0xf]
  %v560 = vld [vmem:[%s0 + $0x884] sm:$0xf]
  %v561 = vld [vmem:[%s0 + $0x888] sm:$0xf]
  %v562 = vld [vmem:[%s0 + $0x88c] sm:$0xf]
  %v563 = vld [vmem:[%s0 + $0x890] sm:$0xf]
  %v564 = vld [vmem:[%s0 + $0x894] sm:$0xf]
  %v565 = vld [vmem:[%s0 + $0x898] sm:$0xf]
  %v566 = vld [vmem:[%s0 + $0x89c] sm:$0xf]
  %v567 = vld [vmem:[%s0 + $0x8a0] sm:$0xf]
  %v568 = vld [vmem:[%s0 + $0x8a4] sm:$0xf]
  %v569 = vld [vmem:[%s0 + $0x8a8] sm:$0xf]
  %v570 = vld [vmem:[%s0 + $0x8ac] sm:$0xf]
  %v571 = vld [vmem:[%s0 + $0x8b0] sm:$0xf]
  %v572 = vld [vmem:[%s0 + $0x8b4] sm:$0xf]
  %v573 = vld [vmem:[%s0 + $0x8b8] sm:$0xf]
  %v574 = vld [vmem:[%s0 + $0x8bc] sm:$0xf]
  %v575 = vld [vmem:[%s0 + $0x8c0] sm:$0xf]
  %v576 = vld [vmem:[%s0 + $0x8c4] sm:$0xf]
  %v577 = vld [vmem:[%s0 + $0x8c8] sm:$0xf]
  %v578 = vld [vmem:[%s0 + $0x8cc] sm:$0xf]
  %v579 = vld [vmem:[%s0 + $0x8d0] sm:$0xf]
  %v580 = vld [vmem:[%s0 + $0x8d4] sm:$0xf]
  %v581 = vld [vmem:[%s0 + $0x8d8] sm:$0xf]
  %v582 = vld [vmem:[%s0 + $0x8dc] sm:$0xf]
  %v583 = vld [vmem:[%s0 + $0x8e0] sm:$0xf]
  %v584 = vld [vmem:[%s0 + $0x8e4] sm:$0xf]
  %v585 = vld [vmem:[%s0 + $0x8e8] sm:$0xf]
  %v586 = vld [vmem:[%s0 + $0x8ec] sm:$0xf]
  %v587 = vld [vmem:[%s0 + $0x8f0] sm:$0xf]
  %v588 = vld [vmem:[%s0 + $0x8f4] sm:$0xf]
  %v589 = vld [vmem:[%s0 + $0x8f8] sm:$0xf]
  %v590 = vld [vmem:[%s0 + $0x8fc] sm:$0xf]
  %v591 = vld [vmem:[%s1] sm:$0xf]
  %v592 = vld [vmem:[%s1 + $0x4] sm:$0xf]
  %v593 = vld [vmem:[%s1 + $0x8] sm:$0xf]
  %v594 = vld [vmem:[%s1 + $0xc] sm:$0x1]
  %v1171 = vunpack.c.l.b16 %v15
  %v1172 = vunpack.c.l.b16 %v16
  %v1173 = vunpack.c.l.b16 %v17
  %v1174 = vunpack.c.l.b16 %v18
  %v1175 = vunpack.c.l.b16 %v19
  %v1176 = vunpack.c.l.b16 %v20
  %v1177 = vunpack.c.l.b16 %v21
  %v1178 = vunpack.c.l.b16 %v22
  %v1179 = vunpack.c.l.b16 %v23
  %v1180 = vunpack.c.l.b16 %v24
  %v1181 = vunpack.c.l.b16 %v25
  %v1182 = vunpack.c.l.b16 %v26
  %v1183 = vunpack.c.l.b16 %v27
  %v1184 = vunpack.c.l.b16 %v28
  %v1185 = vunpack.c.l.b16 %v29
  %v1186 = vunpack.c.l.b16 %v30
  %v1187 = vunpack.c.l.b16 %v31
  %v1188 = vunpack.c.l.b16 %v32
  %v1189 = vunpack.c.l.b16 %v33
  %v1190 = vunpack.c.l.b16 %v34
  %v1191 = vunpack.c.l.b16 %v35
  %v1192 = vunpack.c.l.b16 %v36
  %v1193 = vunpack.c.l.b16 %v37
  %v1194 = vunpack.c.l.b16 %v38
  %v1195 = vunpack.c.l.b16 %v39
  %v1196 = vunpack.c.l.b16 %v40
  %v1197 = vunpack.c.l.b16 %v41
  %v1198 = vunpack.c.l.b16 %v42
  %v1199 = vunpack.c.l.b16 %v43
  %v1200 = vunpack.c.l.b16 %v44
  %v1201 = vunpack.c.l.b16 %v45
  %v1202 = vunpack.c.l.b16 %v46
  %v1203 = vunpack.c.l.b16 %v47
  %v1204 = vunpack.c.l.b16 %v48
  %v1205 = vunpack.c.l.b16 %v49
  %v1206 = vunpack.c.l.b16 %v50
  %v1207 = vunpack.c.l.b16 %v51
  %v1208 = vunpack.c.l.b16 %v52
  %v1209 = vunpack.c.l.b16 %v53
  %v1210 = vunpack.c.l.b16 %v54
  %v1211 = vunpack.c.l.b16 %v55
  %v1212 = vunpack.c.l.b16 %v56
  %v1213 = vunpack.c.l.b16 %v57
  %v1214 = vunpack.c.l.b16 %v58
  %v1215 = vunpack.c.l.b16 %v59
  %v1216 = vunpack.c.l.b16 %v60
  %v1217 = vunpack.c.l.b16 %v61
  %v1218 = vunpack.c.l.b16 %v62
  %v1219 = vunpack.c.l.b16 %v63
  %v1220 = vunpack.c.l.b16 %v64
  %v1221 = vunpack.c.l.b16 %v65
  %v1222 = vunpack.c.l.b16 %v66
  %v1223 = vunpack.c.l.b16 %v67
  %v1224 = vunpack.c.l.b16 %v68
  %v1225 = vunpack.c.l.b16 %v69
  %v1226 = vunpack.c.l.b16 %v70
  %v1227 = vunpack.c.l.b16 %v71
  %v1228 = vunpack.c.l.b16 %v72
  %v1229 = vunpack.c.l.b16 %v73
  %v1230 = vunpack.c.l.b16 %v74
  %v1231 = vunpack.c.l.b16 %v75
  %v1232 = vunpack.c.l.b16 %v76
  %v1233 = vunpack.c.l.b16 %v77
  %v1234 = vunpack.c.l.b16 %v78
  %v1235 = vunpack.c.l.b16 %v79
  %v1236 = vunpack.c.l.b16 %v80
  %v1237 = vunpack.c.l.b16 %v81
  %v1238 = vunpack.c.l.b16 %v82
  %v1239 = vunpack.c.l.b16 %v83
  %v1240 = vunpack.c.l.b16 %v84
  %v1241 = vunpack.c.l.b16 %v85
  %v1242 = vunpack.c.l.b16 %v86
  %v1243 = vunpack.c.l.b16 %v87
  %v1244 = vunpack.c.l.b16 %v88
  %v1245 = vunpack.c.l.b16 %v89
  %v1246 = vunpack.c.l.b16 %v90
  %v1247 = vunpack.c.l.b16 %v91
  %v1248 = vunpack.c.l.b16 %v92
  %v1249 = vunpack.c.l.b16 %v93
  %v1250 = vunpack.c.l.b16 %v94
  %v1251 = vunpack.c.l.b16 %v95
  %v1252 = vunpack.c.l.b16 %v96
  %v1253 = vunpack.c.l.b16 %v97
  %v1254 = vunpack.c.l.b16 %v98
  %v1255 = vunpack.c.l.b16 %v99
  %v1256 = vunpack.c.l.b16 %v100
  %v1257 = vunpack.c.l.b16 %v101
  %v1258 = vunpack.c.l.b16 %v102
  %v1259 = vunpack.c.l.b16 %v103
  %v1260 = vunpack.c.l.b16 %v104
  %v1261 = vunpack.c.l.b16 %v105
  %v1262 = vunpack.c.l.b16 %v106
  %v1263 = vunpack.c.l.b16 %v107
  %v1264 = vunpack.c.l.b16 %v108
  %v1265 = vunpack.c.l.b16 %v109
  %v1266 = vunpack.c.l.b16 %v110
  %v1267 = vunpack.c.l.b16 %v111
  %v1268 = vunpack.c.l.b16 %v112
  %v1269 = vunpack.c.l.b16 %v113
  %v1270 = vunpack.c.l.b16 %v114
  %v1271 = vunpack.c.l.b16 %v115
  %v1272 = vunpack.c.l.b16 %v116
  %v1273 = vunpack.c.l.b16 %v117
  %v1274 = vunpack.c.l.b16 %v118
  %v1275 = vunpack.c.l.b16 %v119
  %v1276 = vunpack.c.l.b16 %v120
  %v1277 = vunpack.c.l.b16 %v121
  %v1278 = vunpack.c.l.b16 %v122
  %v1279 = vunpack.c.l.b16 %v123
  %v1280 = vunpack.c.l.b16 %v124
  %v1281 = vunpack.c.l.b16 %v125
  %v1282 = vunpack.c.l.b16 %v126
  %v1283 = vunpack.c.l.b16 %v127
  %v1284 = vunpack.c.l.b16 %v128
  %v1285 = vunpack.c.l.b16 %v129
  %v1286 = vunpack.c.l.b16 %v130
  %v1287 = vunpack.c.l.b16 %v131
  %v1288 = vunpack.c.l.b16 %v132
  %v1289 = vunpack.c.l.b16 %v133
  %v1290 = vunpack.c.l.b16 %v134
  %v1291 = vunpack.c.l.b16 %v135
  %v1292 = vunpack.c.l.b16 %v136
  %v1293 = vunpack.c.l.b16 %v137
  %v1294 = vunpack.c.l.b16 %v138
  %v1295 = vunpack.c.l.b16 %v139
  %v1296 = vunpack.c.l.b16 %v140
  %v1297 = vunpack.c.l.b16 %v141
  %v1298 = vunpack.c.l.b16 %v142
  %v1299 = vunpack.c.l.b16 %v143
  %v1300 = vunpack.c.l.b16 %v144
  %v1301 = vunpack.c.l.b16 %v145
  %v1302 = vunpack.c.l.b16 %v146
  %v1303 = vunpack.c.l.b16 %v147
  %v1304 = vunpack.c.l.b16 %v148
  %v1305 = vunpack.c.l.b16 %v149
  %v1306 = vunpack.c.l.b16 %v150
  %v1307 = vunpack.c.l.b16 %v151
  %v1308 = vunpack.c.l.b16 %v152
  %v1309 = vunpack.c.l.b16 %v153
  %v1310 = vunpack.c.l.b16 %v154
  %v1311 = vunpack.c.l.b16 %v155
  %v1312 = vunpack.c.l.b16 %v156
  %v1313 = vunpack.c.l.b16 %v157
  %v1314 = vunpack.c.l.b16 %v158
  %v1315 = vunpack.c.l.b16 %v159
  %v1316 = vunpack.c.l.b16 %v160
  %v1317 = vunpack.c.l.b16 %v161
  %v1318 = vunpack.c.l.b16 %v162
  %v1319 = vunpack.c.l.b16 %v163
  %v1320 = vunpack.c.l.b16 %v164
  %v1321 = vunpack.c.l.b16 %v165
  %v1322 = vunpack.c.l.b16 %v166
  %v1323 = vunpack.c.l.b16 %v167
  %v1324 = vunpack.c.l.b16 %v168
  %v1325 = vunpack.c.l.b16 %v169
  %v1326 = vunpack.c.l.b16 %v170
  %v1327 = vunpack.c.l.b16 %v171
  %v1328 = vunpack.c.l.b16 %v172
  %v1329 = vunpack.c.l.b16 %v173
  %v1330 = vunpack.c.l.b16 %v174
  %v1331 = vunpack.c.l.b16 %v175
  %v1332 = vunpack.c.l.b16 %v176
  %v1333 = vunpack.c.l.b16 %v177
  %v1334 = vunpack.c.l.b16 %v178
  %v1335 = vunpack.c.l.b16 %v179
  %v1336 = vunpack.c.l.b16 %v180
  %v1337 = vunpack.c.l.b16 %v181
  %v1338 = vunpack.c.l.b16 %v182
  %v1339 = vunpack.c.l.b16 %v183
  %v1340 = vunpack.c.l.b16 %v184
  %v1341 = vunpack.c.l.b16 %v185
  %v1342 = vunpack.c.l.b16 %v186
  %v1343 = vunpack.c.l.b16 %v187
  %v1344 = vunpack.c.l.b16 %v188
  %v1345 = vunpack.c.l.b16 %v189
  %v1346 = vunpack.c.l.b16 %v190
  %v1347 = vunpack.c.l.b16 %v191
  %v1348 = vunpack.c.l.b16 %v192
  %v1349 = vunpack.c.l.b16 %v193
  %v1350 = vunpack.c.l.b16 %v194
  %v1351 = vunpack.c.l.b16 %v195
  %v1352 = vunpack.c.l.b16 %v196
  %v1353 = vunpack.c.l.b16 %v197
  %v1354 = vunpack.c.l.b16 %v198
  %v1355 = vunpack.c.l.b16 %v199
  %v1356 = vunpack.c.l.b16 %v200
  %v1357 = vunpack.c.l.b16 %v201
  %v1358 = vunpack.c.l.b16 %v202
  %v1359 = vunpack.c.l.b16 %v203
  %v1360 = vunpack.c.l.b16 %v204
  %v1361 = vunpack.c.l.b16 %v205
  %v1362 = vunpack.c.l.b16 %v206
  %v1363 = vunpack.c.l.b16 %v207
  %v1364 = vunpack.c.l.b16 %v208
  %v1365 = vunpack.c.l.b16 %v209
  %v1366 = vunpack.c.l.b16 %v210
  %v1367 = vunpack.c.l.b16 %v211
  %v1368 = vunpack.c.l.b16 %v212
  %v1369 = vunpack.c.l.b16 %v213
  %v1370 = vunpack.c.l.b16 %v214
  %v1371 = vunpack.c.l.b16 %v215
  %v1372 = vunpack.c.l.b16 %v216
  %v1373 = vunpack.c.l.b16 %v217
  %v1374 = vunpack.c.l.b16 %v218
  %v1375 = vunpack.c.l.b16 %v219
  %v1376 = vunpack.c.l.b16 %v220
  %v1377 = vunpack.c.l.b16 %v221
  %v1378 = vunpack.c.l.b16 %v222
  %v1379 = vunpack.c.l.b16 %v223
  %v1380 = vunpack.c.l.b16 %v224
  %v1381 = vunpack.c.l.b16 %v225
  %v1382 = vunpack.c.l.b16 %v226
  %v1383 = vunpack.c.l.b16 %v227
  %v1384 = vunpack.c.l.b16 %v228
  %v1385 = vunpack.c.l.b16 %v229
  %v1386 = vunpack.c.l.b16 %v230
  %v1387 = vunpack.c.l.b16 %v231
  %v1388 = vunpack.c.l.b16 %v232
  %v1389 = vunpack.c.l.b16 %v233
  %v1390 = vunpack.c.l.b16 %v234
  %v1391 = vunpack.c.l.b16 %v235
  %v1392 = vunpack.c.l.b16 %v236
  %v1393 = vunpack.c.l.b16 %v237
  %v1394 = vunpack.c.l.b16 %v238
  %v1395 = vunpack.c.l.b16 %v239
  %v1396 = vunpack.c.l.b16 %v240
  %v1397 = vunpack.c.l.b16 %v241
  %v1398 = vunpack.c.l.b16 %v242
  %v1399 = vunpack.c.l.b16 %v243
  %v1400 = vunpack.c.l.b16 %v244
  %v1401 = vunpack.c.l.b16 %v245
  %v1402 = vunpack.c.l.b16 %v246
  %v1403 = vunpack.c.l.b16 %v247
  %v1404 = vunpack.c.l.b16 %v248
  %v1405 = vunpack.c.l.b16 %v249
  %v1406 = vunpack.c.l.b16 %v250
  %v1407 = vunpack.c.l.b16 %v251
  %v1408 = vunpack.c.l.b16 %v252
  %v1409 = vunpack.c.l.b16 %v253
  %v1410 = vunpack.c.l.b16 %v254
  %v1411 = vunpack.c.l.b16 %v255
  %v1412 = vunpack.c.l.b16 %v256
  %v1413 = vunpack.c.l.b16 %v257
  %v1414 = vunpack.c.l.b16 %v258
  %v1415 = vunpack.c.l.b16 %v259
  %v1416 = vunpack.c.l.b16 %v260
  %v1417 = vunpack.c.l.b16 %v261
  %v1418 = vunpack.c.l.b16 %v262
  %v1419 = vunpack.c.l.b16 %v263
  %v1420 = vunpack.c.l.b16 %v264
  %v1421 = vunpack.c.l.b16 %v265
  %v1422 = vunpack.c.l.b16 %v266
  %v1423 = vunpack.c.l.b16 %v267
  %v1424 = vunpack.c.l.b16 %v268
  %v1425 = vunpack.c.l.b16 %v269
  %v1426 = vunpack.c.l.b16 %v270
  %v1427 = vunpack.c.l.b16 %v271
  %v1428 = vunpack.c.l.b16 %v272
  %v1429 = vunpack.c.l.b16 %v273
  %v1430 = vunpack.c.l.b16 %v274
  %v1431 = vunpack.c.l.b16 %v275
  %v1432 = vunpack.c.l.b16 %v276
  %v1433 = vunpack.c.l.b16 %v277
  %v1434 = vunpack.c.l.b16 %v278
  %v1435 = vunpack.c.l.b16 %v279
  %v1436 = vunpack.c.l.b16 %v280
  %v1437 = vunpack.c.l.b16 %v281
  %v1438 = vunpack.c.l.b16 %v282
  %v1439 = vunpack.c.l.b16 %v283
  %v1440 = vunpack.c.l.b16 %v284
  %v1441 = vunpack.c.l.b16 %v285
  %v1442 = vunpack.c.l.b16 %v286
  %v1443 = vunpack.c.l.b16 %v287
  %v1444 = vunpack.c.l.b16 %v288
  %v1445 = vunpack.c.l.b16 %v289
  %v1446 = vunpack.c.l.b16 %v290
  %v1447 = vunpack.c.l.b16 %v291
  %v1448 = vunpack.c.l.b16 %v292
  %v1449 = vunpack.c.l.b16 %v293
  %v1450 = vunpack.c.l.b16 %v294
  %v1451 = vunpack.c.l.b16 %v295
  %v1452 = vunpack.c.l.b16 %v296
  %v1453 = vunpack.c.l.b16 %v297
  %v1454 = vunpack.c.l.b16 %v298
  %v1455 = vunpack.c.l.b16 %v299
  %v1456 = vunpack.c.l.b16 %v300
  %v1457 = vunpack.c.l.b16 %v301
  %v1458 = vunpack.c.l.b16 %v302
  %v1459 = vunpack.c.l.b16 %v303
  %v1460 = vunpack.c.l.b16 %v304
  %v1461 = vunpack.c.l.b16 %v305
  %v1462 = vunpack.c.l.b16 %v306
  %v1463 = vunpack.c.l.b16 %v307
  %v1464 = vunpack.c.l.b16 %v308
  %v1465 = vunpack.c.l.b16 %v309
  %v1466 = vunpack.c.l.b16 %v310
  %v1467 = vunpack.c.l.b16 %v311
  %v1468 = vunpack.c.l.b16 %v312
  %v1469 = vunpack.c.l.b16 %v313
  %v1470 = vunpack.c.l.b16 %v314
  %v1471 = vunpack.c.l.b16 %v315
  %v1472 = vunpack.c.l.b16 %v316
  %v1473 = vunpack.c.l.b16 %v317
  %v1474 = vunpack.c.l.b16 %v318
  %v1475 = vunpack.c.l.b16 %v319
  %v1476 = vunpack.c.l.b16 %v320
  %v1477 = vunpack.c.l.b16 %v321
  %v1478 = vunpack.c.l.b16 %v322
  %v1479 = vunpack.c.l.b16 %v323
  %v1480 = vunpack.c.l.b16 %v324
  %v1481 = vunpack.c.l.b16 %v325
  %v1482 = vunpack.c.l.b16 %v326
  %v1483 = vunpack.c.l.b16 %v327
  %v1484 = vunpack.c.l.b16 %v328
  %v1485 = vunpack.c.l.b16 %v329
  %v1486 = vunpack.c.l.b16 %v330
  %v1487 = vunpack.c.l.b16 %v331
  %v1488 = vunpack.c.l.b16 %v332
  %v1489 = vunpack.c.l.b16 %v333
  %v1490 = vunpack.c.l.b16 %v334
  %v1491 = vunpack.c.l.b16 %v335
  %v1492 = vunpack.c.l.b16 %v336
  %v1493 = vunpack.c.l.b16 %v337
  %v1494 = vunpack.c.l.b16 %v338
  %v1495 = vunpack.c.l.b16 %v339
  %v1496 = vunpack.c.l.b16 %v340
  %v1497 = vunpack.c.l.b16 %v341
  %v1498 = vunpack.c.l.b16 %v342
  %v1499 = vunpack.c.l.b16 %v343
  %v1500 = vunpack.c.l.b16 %v344
  %v1501 = vunpack.c.l.b16 %v345
  %v1502 = vunpack.c.l.b16 %v346
  %v1503 = vunpack.c.l.b16 %v347
  %v1504 = vunpack.c.l.b16 %v348
  %v1505 = vunpack.c.l.b16 %v349
  %v1506 = vunpack.c.l.b16 %v350
  %v1507 = vunpack.c.l.b16 %v351
  %v1508 = vunpack.c.l.b16 %v352
  %v1509 = vunpack.c.l.b16 %v353
  %v1510 = vunpack.c.l.b16 %v354
  %v1511 = vunpack.c.l.b16 %v355
  %v1512 = vunpack.c.l.b16 %v356
  %v1513 = vunpack.c.l.b16 %v357
  %v1514 = vunpack.c.l.b16 %v358
  %v1515 = vunpack.c.l.b16 %v359
  %v1516 = vunpack.c.l.b16 %v360
  %v1517 = vunpack.c.l.b16 %v361
  %v1518 = vunpack.c.l.b16 %v362
  %v1519 = vunpack.c.l.b16 %v363
  %v1520 = vunpack.c.l.b16 %v364
  %v1521 = vunpack.c.l.b16 %v365
  %v1522 = vunpack.c.l.b16 %v366
  %v1523 = vunpack.c.l.b16 %v367
  %v1524 = vunpack.c.l.b16 %v368
  %v1525 = vunpack.c.l.b16 %v369
  %v1526 = vunpack.c.l.b16 %v370
  %v1527 = vunpack.c.l.b16 %v371
  %v1528 = vunpack.c.l.b16 %v372
  %v1529 = vunpack.c.l.b16 %v373
  %v1530 = vunpack.c.l.b16 %v374
  %v1531 = vunpack.c.l.b16 %v375
  %v1532 = vunpack.c.l.b16 %v376
  %v1533 = vunpack.c.l.b16 %v377
  %v1534 = vunpack.c.l.b16 %v378
  %v1535 = vunpack.c.l.b16 %v379
  %v1536 = vunpack.c.l.b16 %v380
  %v1537 = vunpack.c.l.b16 %v381
  %v1538 = vunpack.c.l.b16 %v382
  %v1539 = vunpack.c.l.b16 %v383
  %v1540 = vunpack.c.l.b16 %v384
  %v1541 = vunpack.c.l.b16 %v385
  %v1542 = vunpack.c.l.b16 %v386
  %v1543 = vunpack.c.l.b16 %v387
  %v1544 = vunpack.c.l.b16 %v388
  %v1545 = vunpack.c.l.b16 %v389
  %v1546 = vunpack.c.l.b16 %v390
  %v1547 = vunpack.c.l.b16 %v391
  %v1548 = vunpack.c.l.b16 %v392
  %v1549 = vunpack.c.l.b16 %v393
  %v1550 = vunpack.c.l.b16 %v394
  %v1551 = vunpack.c.l.b16 %v395
  %v1552 = vunpack.c.l.b16 %v396
  %v1553 = vunpack.c.l.b16 %v397
  %v1554 = vunpack.c.l.b16 %v398
  %v1555 = vunpack.c.l.b16 %v399
  %v1556 = vunpack.c.l.b16 %v400
  %v1557 = vunpack.c.l.b16 %v401
  %v1558 = vunpack.c.l.b16 %v402
  %v1559 = vunpack.c.l.b16 %v403
  %v1560 = vunpack.c.l.b16 %v404
  %v1561 = vunpack.c.l.b16 %v405
  %v1562 = vunpack.c.l.b16 %v406
  %v1563 = vunpack.c.l.b16 %v407
  %v1564 = vunpack.c.l.b16 %v408
  %v1565 = vunpack.c.l.b16 %v409
  %v1566 = vunpack.c.l.b16 %v410
  %v1567 = vunpack.c.l.b16 %v411
  %v1568 = vunpack.c.l.b16 %v412
  %v1569 = vunpack.c.l.b16 %v413
  %v1570 = vunpack.c.l.b16 %v414
  %v1571 = vunpack.c.l.b16 %v415
  %v1572 = vunpack.c.l.b16 %v416
  %v1573 = vunpack.c.l.b16 %v417
  %v1574 = vunpack.c.l.b16 %v418
  %v1575 = vunpack.c.l.b16 %v419
  %v1576 = vunpack.c.l.b16 %v420
  %v1577 = vunpack.c.l.b16 %v421
  %v1578 = vunpack.c.l.b16 %v422
  %v1579 = vunpack.c.l.b16 %v423
  %v1580 = vunpack.c.l.b16 %v424
  %v1581 = vunpack.c.l.b16 %v425
  %v1582 = vunpack.c.l.b16 %v426
  %v1583 = vunpack.c.l.b16 %v427
  %v1584 = vunpack.c.l.b16 %v428
  %v1585 = vunpack.c.l.b16 %v429
  %v1586 = vunpack.c.l.b16 %v430
  %v1587 = vunpack.c.l.b16 %v431
  %v1588 = vunpack.c.l.b16 %v432
  %v1589 = vunpack.c.l.b16 %v433
  %v1590 = vunpack.c.l.b16 %v434
  %v1591 = vunpack.c.l.b16 %v435
  %v1592 = vunpack.c.l.b16 %v436
  %v1593 = vunpack.c.l.b16 %v437
  %v1594 = vunpack.c.l.b16 %v438
  %v1595 = vunpack.c.l.b16 %v439
  %v1596 = vunpack.c.l.b16 %v440
  %v1597 = vunpack.c.l.b16 %v441
  %v1598 = vunpack.c.l.b16 %v442
  %v1599 = vunpack.c.l.b16 %v443
  %v1600 = vunpack.c.l.b16 %v444
  %v1601 = vunpack.c.l.b16 %v445
  %v1602 = vunpack.c.l.b16 %v446
  %v1603 = vunpack.c.l.b16 %v447
  %v1604 = vunpack.c.l.b16 %v448
  %v1605 = vunpack.c.l.b16 %v449
  %v1606 = vunpack.c.l.b16 %v450
  %v1607 = vunpack.c.l.b16 %v451
  %v1608 = vunpack.c.l.b16 %v452
  %v1609 = vunpack.c.l.b16 %v453
  %v1610 = vunpack.c.l.b16 %v454
  %v1611 = vunpack.c.l.b16 %v455
  %v1612 = vunpack.c.l.b16 %v456
  %v1613 = vunpack.c.l.b16 %v457
  %v1614 = vunpack.c.l.b16 %v458
  %v1615 = vunpack.c.l.b16 %v459
  %v1616 = vunpack.c.l.b16 %v460
  %v1617 = vunpack.c.l.b16 %v461
  %v1618 = vunpack.c.l.b16 %v462
  %v1619 = vunpack.c.l.b16 %v463
  %v1620 = vunpack.c.l.b16 %v464
  %v1621 = vunpack.c.l.b16 %v465
  %v1622 = vunpack.c.l.b16 %v466
  %v1623 = vunpack.c.l.b16 %v467
  %v1624 = vunpack.c.l.b16 %v468
  %v1625 = vunpack.c.l.b16 %v469
  %v1626 = vunpack.c.l.b16 %v470
  %v1627 = vunpack.c.l.b16 %v471
  %v1628 = vunpack.c.l.b16 %v472
  %v1629 = vunpack.c.l.b16 %v473
  %v1630 = vunpack.c.l.b16 %v474
  %v1631 = vunpack.c.l.b16 %v475
  %v1632 = vunpack.c.l.b16 %v476
  %v1633 = vunpack.c.l.b16 %v477
  %v1634 = vunpack.c.l.b16 %v478
  %v1635 = vunpack.c.l.b16 %v479
  %v1636 = vunpack.c.l.b16 %v480
  %v1637 = vunpack.c.l.b16 %v481
  %v1638 = vunpack.c.l.b16 %v482
  %v1639 = vunpack.c.l.b16 %v483
  %v1640 = vunpack.c.l.b16 %v484
  %v1641 = vunpack.c.l.b16 %v485
  %v1642 = vunpack.c.l.b16 %v486
  %v1643 = vunpack.c.l.b16 %v487
  %v1644 = vunpack.c.l.b16 %v488
  %v1645 = vunpack.c.l.b16 %v489
  %v1646 = vunpack.c.l.b16 %v490
  %v1647 = vunpack.c.l.b16 %v491
  %v1648 = vunpack.c.l.b16 %v492
  %v1649 = vunpack.c.l.b16 %v493
  %v1650 = vunpack.c.l.b16 %v494
  %v1651 = vunpack.c.l.b16 %v495
  %v1652 = vunpack.c.l.b16 %v496
  %v1653 = vunpack.c.l.b16 %v497
  %v1654 = vunpack.c.l.b16 %v498
  %v1655 = vunpack.c.l.b16 %v499
  %v1656 = vunpack.c.l.b16 %v500
  %v1657 = vunpack.c.l.b16 %v501
  %v1658 = vunpack.c.l.b16 %v502
  %v1659 = vunpack.c.l.b16 %v503
  %v1660 = vunpack.c.l.b16 %v504
  %v1661 = vunpack.c.l.b16 %v505
  %v1662 = vunpack.c.l.b16 %v506
  %v1663 = vunpack.c.l.b16 %v507
  %v1664 = vunpack.c.l.b16 %v508
  %v1665 = vunpack.c.l.b16 %v509
  %v1666 = vunpack.c.l.b16 %v510
  %v1667 = vunpack.c.l.b16 %v511
  %v1668 = vunpack.c.l.b16 %v512
  %v1669 = vunpack.c.l.b16 %v513
  %v1670 = vunpack.c.l.b16 %v514
  %v1671 = vunpack.c.l.b16 %v515
  %v1672 = vunpack.c.l.b16 %v516
  %v1673 = vunpack.c.l.b16 %v517
  %v1674 = vunpack.c.l.b16 %v518
  %v1675 = vunpack.c.l.b16 %v519
  %v1676 = vunpack.c.l.b16 %v520
  %v1677 = vunpack.c.l.b16 %v521
  %v1678 = vunpack.c.l.b16 %v522
  %v1679 = vunpack.c.l.b16 %v523
  %v1680 = vunpack.c.l.b16 %v524
  %v1681 = vunpack.c.l.b16 %v525
  %v1682 = vunpack.c.l.b16 %v526
  %v1683 = vunpack.c.l.b16 %v527
  %v1684 = vunpack.c.l.b16 %v528
  %v1685 = vunpack.c.l.b16 %v529
  %v1686 = vunpack.c.l.b16 %v530
  %v1687 = vunpack.c.l.b16 %v531
  %v1688 = vunpack.c.l.b16 %v532
  %v1689 = vunpack.c.l.b16 %v533
  %v1690 = vunpack.c.l.b16 %v534
  %v1691 = vunpack.c.l.b16 %v535
  %v1692 = vunpack.c.l.b16 %v536
  %v1693 = vunpack.c.l.b16 %v537
  %v1694 = vunpack.c.l.b16 %v538
  %v1695 = vunpack.c.l.b16 %v539
  %v1696 = vunpack.c.l.b16 %v540
  %v1697 = vunpack.c.l.b16 %v541
  %v1698 = vunpack.c.l.b16 %v542
  %v1699 = vunpack.c.l.b16 %v543
  %v1700 = vunpack.c.l.b16 %v544
  %v1701 = vunpack.c.l.b16 %v545
  %v1702 = vunpack.c.l.b16 %v546
  %v1703 = vunpack.c.l.b16 %v547
  %v1704 = vunpack.c.l.b16 %v548
  %v1705 = vunpack.c.l.b16 %v549
  %v1706 = vunpack.c.l.b16 %v550
  %v1707 = vunpack.c.l.b16 %v551
  %v1708 = vunpack.c.l.b16 %v552
  %v1709 = vunpack.c.l.b16 %v553
  %v1710 = vunpack.c.l.b16 %v554
  %v1711 = vunpack.c.l.b16 %v555
  %v1712 = vunpack.c.l.b16 %v556
  %v1713 = vunpack.c.l.b16 %v557
  %v1714 = vunpack.c.l.b16 %v558
  %v1715 = vunpack.c.l.b16 %v559
  %v1716 = vunpack.c.l.b16 %v560
  %v1717 = vunpack.c.l.b16 %v561
  %v1718 = vunpack.c.l.b16 %v562
  %v1719 = vunpack.c.l.b16 %v563
  %v1720 = vunpack.c.l.b16 %v564
  %v1721 = vunpack.c.l.b16 %v565
  %v1722 = vunpack.c.l.b16 %v566
  %v1723 = vunpack.c.l.b16 %v567
  %v1724 = vunpack.c.l.b16 %v568
  %v1725 = vunpack.c.l.b16 %v569
  %v1726 = vunpack.c.l.b16 %v570
  %v1727 = vunpack.c.l.b16 %v571
  %v1728 = vunpack.c.l.b16 %v572
  %v1729 = vunpack.c.l.b16 %v573
  %v1730 = vunpack.c.l.b16 %v574
  %v1731 = vunpack.c.l.b16 %v575
  %v1732 = vunpack.c.l.b16 %v576
  %v1733 = vunpack.c.l.b16 %v577
  %v1734 = vunpack.c.l.b16 %v578
  %v1735 = vunpack.c.l.b16 %v579
  %v1736 = vunpack.c.l.b16 %v580
  %v1737 = vunpack.c.l.b16 %v581
  %v1738 = vunpack.c.l.b16 %v582
  %v1739 = vunpack.c.l.b16 %v583
  %v1740 = vunpack.c.l.b16 %v584
  %v1741 = vunpack.c.l.b16 %v585
  %v1742 = vunpack.c.l.b16 %v586
  %v1743 = vunpack.c.l.b16 %v587
  %v1744 = vunpack.c.l.b16 %v588
  %v1745 = vunpack.c.l.b16 %v589
  %v1746 = vunpack.c.l.b16 %v590
  %v1747 = vpack.c.b16 %v1172, %v1171
  %v1748 = vpack.c.b16 %v1174, %v1173
  %v1749 = vpack.c.b16 %v1176, %v1175
  %v1750 = vpack.c.b16 %v1178, %v1177
  %v1751 = vpack.c.b16 %v1180, %v1179
  %v1752 = vpack.c.b16 %v1182, %v1181
  %v1753 = vpack.c.b16 %v1184, %v1183
  %v1754 = vpack.c.b16 %v1186, %v1185
  %v1755 = vpack.c.b16 %v1188, %v1187
  %v1756 = vpack.c.b16 %v1190, %v1189
  %v1757 = vpack.c.b16 %v1192, %v1191
  %v1758 = vpack.c.b16 %v1194, %v1193
  %v1759 = vpack.c.b16 %v1196, %v1195
  %v1760 = vpack.c.b16 %v1198, %v1197
  %v1761 = vpack.c.b16 %v1200, %v1199
  %v1762 = vpack.c.b16 %v1202, %v1201
  %v1763 = vpack.c.b16 %v1204, %v1203
  %v1764 = vpack.c.b16 %v1206, %v1205
  %v1765 = vpack.c.b16 %v1208, %v1207
  %v1766 = vpack.c.b16 %v1210, %v1209
  %v1767 = vpack.c.b16 %v1212, %v1211
  %v1768 = vpack.c.b16 %v1214, %v1213
  %v1769 = vpack.c.b16 %v1216, %v1215
  %v1770 = vpack.c.b16 %v1218, %v1217
  %v1771 = vpack.c.b16 %v1220, %v1219
  %v1772 = vpack.c.b16 %v1222, %v1221
  %v1773 = vpack.c.b16 %v1224, %v1223
  %v1774 = vpack.c.b16 %v1226, %v1225
  %v1775 = vpack.c.b16 %v1228, %v1227
  %v1776 = vpack.c.b16 %v1230, %v1229
  %v1777 = vpack.c.b16 %v1232, %v1231
  %v1778 = vpack.c.b16 %v1234, %v1233
  %v1779 = vpack.c.b16 %v1236, %v1235
  %v1780 = vpack.c.b16 %v1238, %v1237
  %v1781 = vpack.c.b16 %v1240, %v1239
  %v1782 = vpack.c.b16 %v1242, %v1241
  %v1783 = vpack.c.b16 %v1244, %v1243
  %v1784 = vpack.c.b16 %v1246, %v1245
  %v1785 = vpack.c.b16 %v1248, %v1247
  %v1786 = vpack.c.b16 %v1250, %v1249
  %v1787 = vpack.c.b16 %v1252, %v1251
  %v1788 = vpack.c.b16 %v1254, %v1253
  %v1789 = vpack.c.b16 %v1256, %v1255
  %v1790 = vpack.c.b16 %v1258, %v1257
  %v1791 = vpack.c.b16 %v1260, %v1259
  %v1792 = vpack.c.b16 %v1262, %v1261
  %v1793 = vpack.c.b16 %v1264, %v1263
  %v1794 = vpack.c.b16 %v1266, %v1265
  %v1795 = vpack.c.b16 %v1268, %v1267
  %v1796 = vpack.c.b16 %v1270, %v1269
  %v1797 = vpack.c.b16 %v1272, %v1271
  %v1798 = vpack.c.b16 %v1274, %v1273
  %v1799 = vpack.c.b16 %v1276, %v1275
  %v1800 = vpack.c.b16 %v1278, %v1277
  %v1801 = vpack.c.b16 %v1280, %v1279
  %v1802 = vpack.c.b16 %v1282, %v1281
  %v1803 = vpack.c.b16 %v1284, %v1283
  %v1804 = vpack.c.b16 %v1286, %v1285
  %v1805 = vpack.c.b16 %v1288, %v1287
  %v1806 = vpack.c.b16 %v1290, %v1289
  %v1807 = vpack.c.b16 %v1292, %v1291
  %v1808 = vpack.c.b16 %v1294, %v1293
  %v1809 = vpack.c.b16 %v1296, %v1295
  %v1810 = vpack.c.b16 %v1298, %v1297
  %v1811 = vpack.c.b16 %v1300, %v1299
  %v1812 = vpack.c.b16 %v1302, %v1301
  %v1813 = vpack.c.b16 %v1304, %v1303
  %v1814 = vpack.c.b16 %v1306, %v1305
  %v1815 = vpack.c.b16 %v1308, %v1307
  %v1816 = vpack.c.b16 %v1310, %v1309
  %v1817 = vpack.c.b16 %v1312, %v1311
  %v1818 = vpack.c.b16 %v1314, %v1313
  %v1819 = vpack.c.b16 %v1316, %v1315
  %v1820 = vpack.c.b16 %v1318, %v1317
  %v1821 = vpack.c.b16 %v1320, %v1319
  %v1822 = vpack.c.b16 %v1322, %v1321
  %v1823 = vpack.c.b16 %v1324, %v1323
  %v1824 = vpack.c.b16 %v1326, %v1325
  %v1825 = vpack.c.b16 %v1328, %v1327
  %v1826 = vpack.c.b16 %v1330, %v1329
  %v1827 = vpack.c.b16 %v1332, %v1331
  %v1828 = vpack.c.b16 %v1334, %v1333
  %v1829 = vpack.c.b16 %v1336, %v1335
  %v1830 = vpack.c.b16 %v1338, %v1337
  %v1831 = vpack.c.b16 %v1340, %v1339
  %v1832 = vpack.c.b16 %v1342, %v1341
  %v1833 = vpack.c.b16 %v1344, %v1343
  %v1834 = vpack.c.b16 %v1346, %v1345
  %v1835 = vpack.c.b16 %v1348, %v1347
  %v1836 = vpack.c.b16 %v1350, %v1349
  %v1837 = vpack.c.b16 %v1352, %v1351
  %v1838 = vpack.c.b16 %v1354, %v1353
  %v1839 = vpack.c.b16 %v1356, %v1355
  %v1840 = vpack.c.b16 %v1358, %v1357
  %v1841 = vpack.c.b16 %v1360, %v1359
  %v1842 = vpack.c.b16 %v1362, %v1361
  %v1843 = vpack.c.b16 %v1364, %v1363
  %v1844 = vpack.c.b16 %v1366, %v1365
  %v1845 = vpack.c.b16 %v1368, %v1367
  %v1846 = vpack.c.b16 %v1370, %v1369
  %v1847 = vpack.c.b16 %v1372, %v1371
  %v1848 = vpack.c.b16 %v1374, %v1373
  %v1849 = vpack.c.b16 %v1376, %v1375
  %v1850 = vpack.c.b16 %v1378, %v1377
  %v1851 = vpack.c.b16 %v1380, %v1379
  %v1852 = vpack.c.b16 %v1382, %v1381
  %v1853 = vpack.c.b16 %v1384, %v1383
  %v1854 = vpack.c.b16 %v1386, %v1385
  %v1855 = vpack.c.b16 %v1388, %v1387
  %v1856 = vpack.c.b16 %v1390, %v1389
  %v1857 = vpack.c.b16 %v1392, %v1391
  %v1858 = vpack.c.b16 %v1394, %v1393
  %v1859 = vpack.c.b16 %v1396, %v1395
  %v1860 = vpack.c.b16 %v1398, %v1397
  %v1861 = vpack.c.b16 %v1400, %v1399
  %v1862 = vpack.c.b16 %v1402, %v1401
  %v1863 = vpack.c.b16 %v1404, %v1403
  %v1864 = vpack.c.b16 %v1406, %v1405
  %v1865 = vpack.c.b16 %v1408, %v1407
  %v1866 = vpack.c.b16 %v1410, %v1409
  %v1867 = vpack.c.b16 %v1412, %v1411
  %v1868 = vpack.c.b16 %v1414, %v1413
  %v1869 = vpack.c.b16 %v1416, %v1415
  %v1870 = vpack.c.b16 %v1418, %v1417
  %v1871 = vpack.c.b16 %v1420, %v1419
  %v1872 = vpack.c.b16 %v1422, %v1421
  %v1873 = vpack.c.b16 %v1424, %v1423
  %v1874 = vpack.c.b16 %v1426, %v1425
  %v1875 = vpack.c.b16 %v1428, %v1427
  %v1876 = vpack.c.b16 %v1430, %v1429
  %v1877 = vpack.c.b16 %v1432, %v1431
  %v1878 = vpack.c.b16 %v1434, %v1433
  %v1879 = vpack.c.b16 %v1436, %v1435
  %v1880 = vpack.c.b16 %v1438, %v1437
  %v1881 = vpack.c.b16 %v1440, %v1439
  %v1882 = vpack.c.b16 %v1442, %v1441
  %v1883 = vpack.c.b16 %v1444, %v1443
  %v1884 = vpack.c.b16 %v1446, %v1445
  %v1885 = vpack.c.b16 %v1448, %v1447
  %v1886 = vpack.c.b16 %v1450, %v1449
  %v1887 = vpack.c.b16 %v1452, %v1451
  %v1888 = vpack.c.b16 %v1454, %v1453
  %v1889 = vpack.c.b16 %v1456, %v1455
  %v1890 = vpack.c.b16 %v1458, %v1457
  %v1891 = vpack.c.b16 %v1460, %v1459
  %v1892 = vpack.c.b16 %v1462, %v1461
  %v1893 = vpack.c.b16 %v1464, %v1463
  %v1894 = vpack.c.b16 %v1466, %v1465
  %v1895 = vpack.c.b16 %v1468, %v1467
  %v1896 = vpack.c.b16 %v1470, %v1469
  %v1897 = vpack.c.b16 %v1472, %v1471
  %v1898 = vpack.c.b16 %v1474, %v1473
  %v1899 = vpack.c.b16 %v1476, %v1475
  %v1900 = vpack.c.b16 %v1478, %v1477
  %v1901 = vpack.c.b16 %v1480, %v1479
  %v1902 = vpack.c.b16 %v1482, %v1481
  %v1903 = vpack.c.b16 %v1484, %v1483
  %v1904 = vpack.c.b16 %v1486, %v1485
  %v1905 = vpack.c.b16 %v1488, %v1487
  %v1906 = vpack.c.b16 %v1490, %v1489
  %v1907 = vpack.c.b16 %v1492, %v1491
  %v1908 = vpack.c.b16 %v1494, %v1493
  %v1909 = vpack.c.b16 %v1496, %v1495
  %v1910 = vpack.c.b16 %v1498, %v1497
  %v1911 = vpack.c.b16 %v1500, %v1499
  %v1912 = vpack.c.b16 %v1502, %v1501
  %v1913 = vpack.c.b16 %v1504, %v1503
  %v1914 = vpack.c.b16 %v1506, %v1505
  %v1915 = vpack.c.b16 %v1508, %v1507
  %v1916 = vpack.c.b16 %v1510, %v1509
  %v1917 = vpack.c.b16 %v1512, %v1511
  %v1918 = vpack.c.b16 %v1514, %v1513
  %v1919 = vpack.c.b16 %v1516, %v1515
  %v1920 = vpack.c.b16 %v1518, %v1517
  %v1921 = vpack.c.b16 %v1520, %v1519
  %v1922 = vpack.c.b16 %v1522, %v1521
  %v1923 = vpack.c.b16 %v1524, %v1523
  %v1924 = vpack.c.b16 %v1526, %v1525
  %v1925 = vpack.c.b16 %v1528, %v1527
  %v1926 = vpack.c.b16 %v1530, %v1529
  %v1927 = vpack.c.b16 %v1532, %v1531
  %v1928 = vpack.c.b16 %v1534, %v1533
  %v1929 = vpack.c.b16 %v1536, %v1535
  %v1930 = vpack.c.b16 %v1538, %v1537
  %v1931 = vpack.c.b16 %v1540, %v1539
  %v1932 = vpack.c.b16 %v1542, %v1541
  %v1933 = vpack.c.b16 %v1544, %v1543
  %v1934 = vpack.c.b16 %v1546, %v1545
  %v1935 = vpack.c.b16 %v1548, %v1547
  %v1936 = vpack.c.b16 %v1550, %v1549
  %v1937 = vpack.c.b16 %v1552, %v1551
  %v1938 = vpack.c.b16 %v1554, %v1553
  %v1939 = vpack.c.b16 %v1556, %v1555
  %v1940 = vpack.c.b16 %v1558, %v1557
  %v1941 = vpack.c.b16 %v1560, %v1559
  %v1942 = vpack.c.b16 %v1562, %v1561
  %v1943 = vpack.c.b16 %v1564, %v1563
  %v1944 = vpack.c.b16 %v1566, %v1565
  %v1945 = vpack.c.b16 %v1568, %v1567
  %v1946 = vpack.c.b16 %v1570, %v1569
  %v1947 = vpack.c.b16 %v1572, %v1571
  %v1948 = vpack.c.b16 %v1574, %v1573
  %v1949 = vpack.c.b16 %v1576, %v1575
  %v1950 = vpack.c.b16 %v1578, %v1577
  %v1951 = vpack.c.b16 %v1580, %v1579
  %v1952 = vpack.c.b16 %v1582, %v1581
  %v1953 = vpack.c.b16 %v1584, %v1583
  %v1954 = vpack.c.b16 %v1586, %v1585
  %v1955 = vpack.c.b16 %v1588, %v1587
  %v1956 = vpack.c.b16 %v1590, %v1589
  %v1957 = vpack.c.b16 %v1592, %v1591
  %v1958 = vpack.c.b16 %v1594, %v1593
  %v1959 = vpack.c.b16 %v1596, %v1595
  %v1960 = vpack.c.b16 %v1598, %v1597
  %v1961 = vpack.c.b16 %v1600, %v1599
  %v1962 = vpack.c.b16 %v1602, %v1601
  %v1963 = vpack.c.b16 %v1604, %v1603
  %v1964 = vpack.c.b16 %v1606, %v1605
  %v1965 = vpack.c.b16 %v1608, %v1607
  %v1966 = vpack.c.b16 %v1610, %v1609
  %v1967 = vpack.c.b16 %v1612, %v1611
  %v1968 = vpack.c.b16 %v1614, %v1613
  %v1969 = vpack.c.b16 %v1616, %v1615
  %v1970 = vpack.c.b16 %v1618, %v1617
  %v1971 = vpack.c.b16 %v1620, %v1619
  %v1972 = vpack.c.b16 %v1622, %v1621
  %v1973 = vpack.c.b16 %v1624, %v1623
  %v1974 = vpack.c.b16 %v1626, %v1625
  %v1975 = vpack.c.b16 %v1628, %v1627
  %v1976 = vpack.c.b16 %v1630, %v1629
  %v1977 = vpack.c.b16 %v1632, %v1631
  %v1978 = vpack.c.b16 %v1634, %v1633
  %v1979 = vpack.c.b16 %v1636, %v1635
  %v1980 = vpack.c.b16 %v1638, %v1637
  %v1981 = vpack.c.b16 %v1640, %v1639
  %v1982 = vpack.c.b16 %v1642, %v1641
  %v1983 = vpack.c.b16 %v1644, %v1643
  %v1984 = vpack.c.b16 %v1646, %v1645
  %v1985 = vpack.c.b16 %v1648, %v1647
  %v1986 = vpack.c.b16 %v1650, %v1649
  %v1987 = vpack.c.b16 %v1652, %v1651
  %v1988 = vpack.c.b16 %v1654, %v1653
  %v1989 = vpack.c.b16 %v1656, %v1655
  %v1990 = vpack.c.b16 %v1658, %v1657
  %v1991 = vpack.c.b16 %v1660, %v1659
  %v1992 = vpack.c.b16 %v1662, %v1661
  %v1993 = vpack.c.b16 %v1664, %v1663
  %v1994 = vpack.c.b16 %v1666, %v1665
  %v1995 = vpack.c.b16 %v1668, %v1667
  %v1996 = vpack.c.b16 %v1670, %v1669
  %v1997 = vpack.c.b16 %v1672, %v1671
  %v1998 = vpack.c.b16 %v1674, %v1673
  %v1999 = vpack.c.b16 %v1676, %v1675
  %v2000 = vpack.c.b16 %v1678, %v1677
  %v2001 = vpack.c.b16 %v1680, %v1679
  %v2002 = vpack.c.b16 %v1682, %v1681
  %v2003 = vpack.c.b16 %v1684, %v1683
  %v2004 = vpack.c.b16 %v1686, %v1685
  %v2005 = vpack.c.b16 %v1688, %v1687
  %v2006 = vpack.c.b16 %v1690, %v1689
  %v2007 = vpack.c.b16 %v1692, %v1691
  %v2008 = vpack.c.b16 %v1694, %v1693
  %v2009 = vpack.c.b16 %v1696, %v1695
  %v2010 = vpack.c.b16 %v1698, %v1697
  %v2011 = vpack.c.b16 %v1700, %v1699
  %v2012 = vpack.c.b16 %v1702, %v1701
  %v2013 = vpack.c.b16 %v1704, %v1703
  %v2014 = vpack.c.b16 %v1706, %v1705
  %v2015 = vpack.c.b16 %v1708, %v1707
  %v2016 = vpack.c.b16 %v1710, %v1709
  %v2017 = vpack.c.b16 %v1712, %v1711
  %v2018 = vpack.c.b16 %v1714, %v1713
  %v2019 = vpack.c.b16 %v1716, %v1715
  %v2020 = vpack.c.b16 %v1718, %v1717
  %v2021 = vpack.c.b16 %v1720, %v1719
  %v2022 = vpack.c.b16 %v1722, %v1721
  %v2023 = vpack.c.b16 %v1724, %v1723
  %v2024 = vpack.c.b16 %v1726, %v1725
  %v2025 = vpack.c.b16 %v1728, %v1727
  %v2026 = vpack.c.b16 %v1730, %v1729
  %v2027 = vpack.c.b16 %v1732, %v1731
  %v2028 = vpack.c.b16 %v1734, %v1733
  %v2029 = vpack.c.b16 %v1736, %v1735
  %v2030 = vpack.c.b16 %v1738, %v1737
  %v2031 = vpack.c.b16 %v1740, %v1739
  %v2032 = vpack.c.b16 %v1742, %v1741
  %v2033 = vpack.c.b16 %v1744, %v1743
  %v2034 = vpack.c.b16 %v1746, %v1745
  %v2039 = vunpack.c.l.b16 %v591
  %v2040 = vunpack.c.l.b16 %v592
  %v2041 = vunpack.c.l.b16 %v593
  %v2042 = vunpack.c.l.b16 %v594
  %v2043 = vpack.c.b16 %v2040, %v2039
  %v2044 = vpack.c.b16 %v2042, %v2041
  %vm2046 = vcmask 203776
  %v2048 = vsel %vm2046, %v1747, 0
  %v2051 = vsel %vm2046, %v1748, 0
  %v2054 = vsel %vm2046, %v1749, 0
  %v2057 = vsel %vm2046, %v1750, 0
  %v2060 = vsel %vm2046, %v1751, 0
  %v2063 = vsel %vm2046, %v1752, 0
  %v2066 = vsel %vm2046, %v1753, 0
  %v2069 = vsel %vm2046, %v1754, 0
  %v2072 = vsel %vm2046, %v1755, 0
  %v2075 = vsel %vm2046, %v1756, 0
  %v2078 = vsel %vm2046, %v1757, 0
  %v2081 = vsel %vm2046, %v1758, 0
  %v2084 = vsel %vm2046, %v1759, 0
  %v2087 = vsel %vm2046, %v1760, 0
  %v2090 = vsel %vm2046, %v1761, 0
  %v2093 = vsel %vm2046, %v1762, 0
  %v2096 = vsel %vm2046, %v1763, 0
  %v2099 = vsel %vm2046, %v1764, 0
  %v2102 = vsel %vm2046, %v1765, 0
  %v2105 = vsel %vm2046, %v1766, 0
  %v2108 = vsel %vm2046, %v1767, 0
  %v2111 = vsel %vm2046, %v1768, 0
  %v2114 = vsel %vm2046, %v1769, 0
  %v2117 = vsel %vm2046, %v1770, 0
  %v2120 = vsel %vm2046, %v1771, 0
  %v2123 = vsel %vm2046, %v1772, 0
  %v2126 = vsel %vm2046, %v1773, 0
  %v2129 = vsel %vm2046, %v1774, 0
  %v2132 = vsel %vm2046, %v1775, 0
  %v2135 = vsel %vm2046, %v1776, 0
  %v2138 = vsel %vm2046, %v1777, 0
  %v2141 = vsel %vm2046, %v1778, 0
  %v2144 = vsel %vm2046, %v1779, 0
  %v2147 = vsel %vm2046, %v1780, 0
  %v2150 = vsel %vm2046, %v1781, 0
  %v2153 = vsel %vm2046, %v1782, 0
  %v2156 = vsel %vm2046, %v1783, 0
  %v2159 = vsel %vm2046, %v1784, 0
  %v2162 = vsel %vm2046, %v1785, 0
  %v2165 = vsel %vm2046, %v1786, 0
  %v2168 = vsel %vm2046, %v1787, 0
  %v2171 = vsel %vm2046, %v1788, 0
  %v2174 = vsel %vm2046, %v1789, 0
  %v2177 = vsel %vm2046, %v1790, 0
  %v2180 = vsel %vm2046, %v1791, 0
  %v2183 = vsel %vm2046, %v1792, 0
  %v2186 = vsel %vm2046, %v1793, 0
  %v2189 = vsel %vm2046, %v1794, 0
  %v2192 = vsel %vm2046, %v1795, 0
  %v2195 = vsel %vm2046, %v1796, 0
  %v2198 = vsel %vm2046, %v1797, 0
  %v2201 = vsel %vm2046, %v1798, 0
  %v2204 = vsel %vm2046, %v1799, 0
  %v2207 = vsel %vm2046, %v1800, 0
  %v2210 = vsel %vm2046, %v1801, 0
  %v2213 = vsel %vm2046, %v1802, 0
  %v2216 = vsel %vm2046, %v1803, 0
  %v2219 = vsel %vm2046, %v1804, 0
  %v2222 = vsel %vm2046, %v1805, 0
  %v2225 = vsel %vm2046, %v1806, 0
  %v2228 = vsel %vm2046, %v1807, 0
  %v2231 = vsel %vm2046, %v1808, 0
  %v2234 = vsel %vm2046, %v1809, 0
  %v2237 = vsel %vm2046, %v1810, 0
  %v2240 = vsel %vm2046, %v1811, 0
  %v2243 = vsel %vm2046, %v1812, 0
  %v2246 = vsel %vm2046, %v1813, 0
  %v2249 = vsel %vm2046, %v1814, 0
  %v2252 = vsel %vm2046, %v1815, 0
  %v2255 = vsel %vm2046, %v1816, 0
  %v2258 = vsel %vm2046, %v1817, 0
  %v2261 = vsel %vm2046, %v1818, 0
  %v2264 = vsel %vm2046, %v1819, 0
  %v2267 = vsel %vm2046, %v1820, 0
  %v2270 = vsel %vm2046, %v1821, 0
  %v2273 = vsel %vm2046, %v1822, 0
  %v2276 = vsel %vm2046, %v1823, 0
  %v2279 = vsel %vm2046, %v1824, 0
  %v2282 = vsel %vm2046, %v1825, 0
  %v2285 = vsel %vm2046, %v1826, 0
  %v2288 = vsel %vm2046, %v1827, 0
  %v2291 = vsel %vm2046, %v1828, 0
  %v2294 = vsel %vm2046, %v1829, 0
  %v2297 = vsel %vm2046, %v1830, 0
  %v2300 = vsel %vm2046, %v1831, 0
  %v2303 = vsel %vm2046, %v1832, 0
  %v2306 = vsel %vm2046, %v1833, 0
  %v2309 = vsel %vm2046, %v1834, 0
  %v2312 = vsel %vm2046, %v1835, 0
  %v2315 = vsel %vm2046, %v1836, 0
  %v2318 = vsel %vm2046, %v1837, 0
  %v2321 = vsel %vm2046, %v1838, 0
  %v2324 = vsel %vm2046, %v1839, 0
  %v2327 = vsel %vm2046, %v1840, 0
  %v2330 = vsel %vm2046, %v1841, 0
  %v2333 = vsel %vm2046, %v1842, 0
  %v2336 = vsel %vm2046, %v1843, 0
  %v2339 = vsel %vm2046, %v1844, 0
  %v2342 = vsel %vm2046, %v1845, 0
  %v2345 = vsel %vm2046, %v1846, 0
  %v2348 = vsel %vm2046, %v1847, 0
  %v2351 = vsel %vm2046, %v1848, 0
  %v2354 = vsel %vm2046, %v1849, 0
  %v2357 = vsel %vm2046, %v1850, 0
  %v2360 = vsel %vm2046, %v1851, 0
  %v2363 = vsel %vm2046, %v1852, 0
  %v2366 = vsel %vm2046, %v1853, 0
  %v2369 = vsel %vm2046, %v1854, 0
  %v2372 = vsel %vm2046, %v1855, 0
  %v2375 = vsel %vm2046, %v1856, 0
  %v2378 = vsel %vm2046, %v1857, 0
  %v2381 = vsel %vm2046, %v1858, 0
  %v2384 = vsel %vm2046, %v1859, 0
  %v2387 = vsel %vm2046, %v1860, 0
  %v2390 = vsel %vm2046, %v1861, 0
  %v2393 = vsel %vm2046, %v1862, 0
  %v2396 = vsel %vm2046, %v1863, 0
  %v2399 = vsel %vm2046, %v1864, 0
  %v2402 = vsel %vm2046, %v1865, 0
  %v2405 = vsel %vm2046, %v1866, 0
  %v2408 = vsel %vm2046, %v1867, 0
  %v2411 = vsel %vm2046, %v1868, 0
  %v2414 = vsel %vm2046, %v1869, 0
  %v2417 = vsel %vm2046, %v1870, 0
  %v2420 = vsel %vm2046, %v1871, 0
  %v2423 = vsel %vm2046, %v1872, 0
  %v2426 = vsel %vm2046, %v1873, 0
  %v2429 = vsel %vm2046, %v1874, 0
  %v2432 = vsel %vm2046, %v1875, 0
  %v2435 = vsel %vm2046, %v1876, 0
  %v2438 = vsel %vm2046, %v1877, 0
  %v2441 = vsel %vm2046, %v1878, 0
  %v2444 = vsel %vm2046, %v1879, 0
  %v2447 = vsel %vm2046, %v1880, 0
  %v2450 = vsel %vm2046, %v1881, 0
  %v2453 = vsel %vm2046, %v1882, 0
  %v2456 = vsel %vm2046, %v1883, 0
  %v2459 = vsel %vm2046, %v1884, 0
  %v2462 = vsel %vm2046, %v1885, 0
  %v2465 = vsel %vm2046, %v1886, 0
  %v2468 = vsel %vm2046, %v1887, 0
  %v2471 = vsel %vm2046, %v1888, 0
  %v2474 = vsel %vm2046, %v1889, 0
  %v2477 = vsel %vm2046, %v1890, 0
  %v2480 = vsel %vm2046, %v1891, 0
  %v2483 = vsel %vm2046, %v1892, 0
  %v2486 = vsel %vm2046, %v1893, 0
  %v2489 = vsel %vm2046, %v1894, 0
  %v2492 = vsel %vm2046, %v1895, 0
  %v2495 = vsel %vm2046, %v1896, 0
  %v2498 = vsel %vm2046, %v1897, 0
  %v2501 = vsel %vm2046, %v1898, 0
  %v2504 = vsel %vm2046, %v1899, 0
  %v2507 = vsel %vm2046, %v1900, 0
  %v2510 = vsel %vm2046, %v1901, 0
  %v2513 = vsel %vm2046, %v1902, 0
  %v2516 = vsel %vm2046, %v1903, 0
  %v2519 = vsel %vm2046, %v1904, 0
  %v2522 = vsel %vm2046, %v1905, 0
  %v2525 = vsel %vm2046, %v1906, 0
  %v2528 = vsel %vm2046, %v1907, 0
  %v2531 = vsel %vm2046, %v1908, 0
  %v2534 = vsel %vm2046, %v1909, 0
  %v2537 = vsel %vm2046, %v1910, 0
  %v2540 = vsel %vm2046, %v1911, 0
  %v2543 = vsel %vm2046, %v1912, 0
  %v2546 = vsel %vm2046, %v1913, 0
  %v2549 = vsel %vm2046, %v1914, 0
  %v2552 = vsel %vm2046, %v1915, 0
  %v2555 = vsel %vm2046, %v1916, 0
  %v2558 = vsel %vm2046, %v1917, 0
  %v2561 = vsel %vm2046, %v1918, 0
  %v2564 = vsel %vm2046, %v1919, 0
  %v2567 = vsel %vm2046, %v1920, 0
  %v2570 = vsel %vm2046, %v1921, 0
  %v2573 = vsel %vm2046, %v1922, 0
  %v2576 = vsel %vm2046, %v1923, 0
  %v2579 = vsel %vm2046, %v1924, 0
  %v2582 = vsel %vm2046, %v1925, 0
  %v2585 = vsel %vm2046, %v1926, 0
  %v2588 = vsel %vm2046, %v1927, 0
  %v2591 = vsel %vm2046, %v1928, 0
  %v2594 = vsel %vm2046, %v1929, 0
  %v2597 = vsel %vm2046, %v1930, 0
  %v2600 = vsel %vm2046, %v1931, 0
  %v2603 = vsel %vm2046, %v1932, 0
  %v2606 = vsel %vm2046, %v1933, 0
  %v2609 = vsel %vm2046, %v1934, 0
  %v2612 = vsel %vm2046, %v1935, 0
  %v2615 = vsel %vm2046, %v1936, 0
  %v2618 = vsel %vm2046, %v1937, 0
  %v2621 = vsel %vm2046, %v1938, 0
  %v2624 = vsel %vm2046, %v1939, 0
  %v2627 = vsel %vm2046, %v1940, 0
  %v2630 = vsel %vm2046, %v1941, 0
  %v2633 = vsel %vm2046, %v1942, 0
  %v2636 = vsel %vm2046, %v1943, 0
  %v2639 = vsel %vm2046, %v1944, 0
  %v2642 = vsel %vm2046, %v1945, 0
  %v2645 = vsel %vm2046, %v1946, 0
  %v2648 = vsel %vm2046, %v1947, 0
  %v2651 = vsel %vm2046, %v1948, 0
  %v2654 = vsel %vm2046, %v1949, 0
  %v2657 = vsel %vm2046, %v1950, 0
  %v2660 = vsel %vm2046, %v1951, 0
  %v2663 = vsel %vm2046, %v1952, 0
  %v2666 = vsel %vm2046, %v1953, 0
  %v2669 = vsel %vm2046, %v1954, 0
  %v2672 = vsel %vm2046, %v1955, 0
  %v2675 = vsel %vm2046, %v1956, 0
  %v2678 = vsel %vm2046, %v1957, 0
  %v2681 = vsel %vm2046, %v1958, 0
  %v2684 = vsel %vm2046, %v1959, 0
  %v2687 = vsel %vm2046, %v1960, 0
  %v2690 = vsel %vm2046, %v1961, 0
  %v2693 = vsel %vm2046, %v1962, 0
  %v2696 = vsel %vm2046, %v1963, 0
  %v2699 = vsel %vm2046, %v1964, 0
  %v2702 = vsel %vm2046, %v1965, 0
  %v2705 = vsel %vm2046, %v1966, 0
  %v2708 = vsel %vm2046, %v1967, 0
  %v2711 = vsel %vm2046, %v1968, 0
  %v2714 = vsel %vm2046, %v1969, 0
  %v2717 = vsel %vm2046, %v1970, 0
  %v2720 = vsel %vm2046, %v1971, 0
  %v2723 = vsel %vm2046, %v1972, 0
  %v2726 = vsel %vm2046, %v1973, 0
  %v2729 = vsel %vm2046, %v1974, 0
  %v2732 = vsel %vm2046, %v1975, 0
  %v2735 = vsel %vm2046, %v1976, 0
  %v2738 = vsel %vm2046, %v1977, 0
  %v2741 = vsel %vm2046, %v1978, 0
  %v2744 = vsel %vm2046, %v1979, 0
  %v2747 = vsel %vm2046, %v1980, 0
  %v2750 = vsel %vm2046, %v1981, 0
  %v2753 = vsel %vm2046, %v1982, 0
  %v2756 = vsel %vm2046, %v1983, 0
  %v2759 = vsel %vm2046, %v1984, 0
  %v2762 = vsel %vm2046, %v1985, 0
  %v2765 = vsel %vm2046, %v1986, 0
  %v2768 = vsel %vm2046, %v1987, 0
  %v2771 = vsel %vm2046, %v1988, 0
  %v2774 = vsel %vm2046, %v1989, 0
  %v2777 = vsel %vm2046, %v1990, 0
  %v2780 = vsel %vm2046, %v1991, 0
  %v2783 = vsel %vm2046, %v1992, 0
  %v2786 = vsel %vm2046, %v1993, 0
  %v2789 = vsel %vm2046, %v1994, 0
  %v2792 = vsel %vm2046, %v1995, 0
  %v2795 = vsel %vm2046, %v1996, 0
  %v2798 = vsel %vm2046, %v1997, 0
  %v2801 = vsel %vm2046, %v1998, 0
  %v2804 = vsel %vm2046, %v1999, 0
  %v2807 = vsel %vm2046, %v2000, 0
  %v2810 = vsel %vm2046, %v2001, 0
  %v2813 = vsel %vm2046, %v2002, 0
  %v2816 = vsel %vm2046, %v2003, 0
  %v2819 = vsel %vm2046, %v2004, 0
  %v2822 = vsel %vm2046, %v2005, 0
  %v2825 = vsel %vm2046, %v2006, 0
  %v2828 = vsel %vm2046, %v2007, 0
  %v2831 = vsel %vm2046, %v2008, 0
  %v2834 = vsel %vm2046, %v2009, 0
  %v2837 = vsel %vm2046, %v2010, 0
  %v2840 = vsel %vm2046, %v2011, 0
  %v2843 = vsel %vm2046, %v2012, 0
  %v2846 = vsel %vm2046, %v2013, 0
  %v2849 = vsel %vm2046, %v2014, 0
  %v2852 = vsel %vm2046, %v2015, 0
  %v2855 = vsel %vm2046, %v2016, 0
  %v2858 = vsel %vm2046, %v2017, 0
  %v2861 = vsel %vm2046, %v2018, 0
  %v2864 = vsel %vm2046, %v2019, 0
  %v2867 = vsel %vm2046, %v2020, 0
  %v2870 = vsel %vm2046, %v2021, 0
  %v2873 = vsel %vm2046, %v2022, 0
  %v2876 = vsel %vm2046, %v2023, 0
  %v2879 = vsel %vm2046, %v2024, 0
  %v2882 = vsel %vm2046, %v2025, 0
  %v2885 = vsel %vm2046, %v2026, 0
  %v2888 = vsel %vm2046, %v2027, 0
  %v2891 = vsel %vm2046, %v2028, 0
  %v2894 = vsel %vm2046, %v2029, 0
  %v2897 = vsel %vm2046, %v2030, 0
  %v2900 = vsel %vm2046, %v2031, 0
  %v2903 = vsel %vm2046, %v2032, 0
  %v2906 = vsel %vm2046, %v2033, 0
  %v2909 = vsel %vm2046, %v2034, 0
  %vm2911 = vcmask 1043456
  %vm2912 = vcmask 1044480
  %v2913 = vsel %vm2911, 4294967295, 65535
  %v2914 = vsel %vm2912, %v2913, 0
  %v2916 = vand.u32 %v2044, %v2914
  %2918 = vmatpush.bf16.msra.mxu0 0
  %2919 = vmatpush.bf16.msra.mxu0 0
  %2920 = vmatpush.bf16.msra.mxu0 0
  %2921 = vmatpush.bf16.msra.mxu0 0
  %2922 = vmatpush.bf16.msra.mxu0 0
  %2923 = vmatpush.bf16.msra.mxu0 0
  %2924 = vmatpush.bf16.msra.mxu0 %v2916
  %2925 = vmatpush.bf16.msra.mxu0 %v2043
  %2926 = vmatmul.bf16.gmra.mxu0 %v2048
  %v2927 = vpop.f32.mrf.mxu0
  %v2928 = vadd.f32 0.0, %v2927
  %v2929 = vpop.f32.mrf.mxu0
  %v2930 = vadd.f32 0.0, %v2929
  %2931 = vmatmul.bf16.gmra.mxu0 %v2051
  %v2932 = vpop.f32.mrf.mxu0
  %v2933 = vadd.f32 0.0, %v2932
  %v2934 = vpop.f32.mrf.mxu0
  %v2935 = vadd.f32 0.0, %v2934
  %2936 = vmatmul.bf16.gmra.mxu0 %v2054
  %v2937 = vpop.f32.mrf.mxu0
  %v2938 = vadd.f32 0.0, %v2937
  %v2939 = vpop.f32.mrf.mxu0
  %v2940 = vadd.f32 0.0, %v2939
  %2941 = vmatmul.bf16.gmra.mxu0 %v2057
  %v2942 = vpop.f32.mrf.mxu0
  %v2943 = vadd.f32 0.0, %v2942
  %v2944 = vpop.f32.mrf.mxu0
  %v2945 = vadd.f32 0.0, %v2944
  %2946 = vmatmul.bf16.gmra.mxu0 %v2060
  %v2947 = vpop.f32.mrf.mxu0
  %v2948 = vadd.f32 0.0, %v2947
  %v2949 = vpop.f32.mrf.mxu0
  %v2950 = vadd.f32 0.0, %v2949
  %2951 = vmatmul.bf16.gmra.mxu0 %v2063
  %v2952 = vpop.f32.mrf.mxu0
  %v2953 = vadd.f32 0.0, %v2952
  %v2954 = vpop.f32.mrf.mxu0
  %v2955 = vadd.f32 0.0, %v2954
  %2956 = vmatmul.bf16.gmra.mxu0 %v2066
  %v2957 = vpop.f32.mrf.mxu0
  %v2958 = vadd.f32 0.0, %v2957
  %v2959 = vpop.f32.mrf.mxu0
  %v2960 = vadd.f32 0.0, %v2959
  %2961 = vmatmul.bf16.gmra.mxu0 %v2069
  %v2962 = vpop.f32.mrf.mxu0
  %v2963 = vadd.f32 0.0, %v2962
  %v2964 = vpop.f32.mrf.mxu0
  %v2965 = vadd.f32 0.0, %v2964
  %2966 = vmatmul.bf16.gmra.mxu0 %v2072
  %v2967 = vpop.f32.mrf.mxu0
  %v2968 = vadd.f32 0.0, %v2967
  %v2969 = vpop.f32.mrf.mxu0
  %v2970 = vadd.f32 0.0, %v2969
  %2971 = vmatmul.bf16.gmra.mxu0 %v2075
  %v2972 = vpop.f32.mrf.mxu0
  %v2973 = vadd.f32 0.0, %v2972
  %v2974 = vpop.f32.mrf.mxu0
  %v2975 = vadd.f32 0.0, %v2974
  %2976 = vmatmul.bf16.gmra.mxu0 %v2078
  %v2977 = vpop.f32.mrf.mxu0
  %v2978 = vadd.f32 0.0, %v2977
  %v2979 = vpop.f32.mrf.mxu0
  %v2980 = vadd.f32 0.0, %v2979
  %2981 = vmatmul.bf16.gmra.mxu0 %v2081
  %v2982 = vpop.f32.mrf.mxu0
  %v2983 = vadd.f32 0.0, %v2982
  %v2984 = vpop.f32.mrf.mxu0
  %v2985 = vadd.f32 0.0, %v2984
  %2986 = vmatmul.bf16.gmra.mxu0 %v2084
  %v2987 = vpop.f32.mrf.mxu0
  %v2988 = vadd.f32 0.0, %v2987
  %v2989 = vpop.f32.mrf.mxu0
  %v2990 = vadd.f32 0.0, %v2989
  %2991 = vmatmul.bf16.gmra.mxu0 %v2087
  %v2992 = vpop.f32.mrf.mxu0
  %v2993 = vadd.f32 0.0, %v2992
  %v2994 = vpop.f32.mrf.mxu0
  %v2995 = vadd.f32 0.0, %v2994
  %2996 = vmatmul.bf16.gmra.mxu0 %v2090
  %v2997 = vpop.f32.mrf.mxu0
  %v2998 = vadd.f32 0.0, %v2997
  %v2999 = vpop.f32.mrf.mxu0
  %v3000 = vadd.f32 0.0, %v2999
  %3001 = vmatmul.bf16.gmra.mxu0 %v2093
  %v3002 = vpop.f32.mrf.mxu0
  %v3003 = vadd.f32 0.0, %v3002
  %v3004 = vpop.f32.mrf.mxu0
  %v3005 = vadd.f32 0.0, %v3004
  %3006 = vmatmul.bf16.gmra.mxu0 %v2096
  %v3007 = vpop.f32.mrf.mxu0
  %v3008 = vadd.f32 0.0, %v3007
  %v3009 = vpop.f32.mrf.mxu0
  %v3010 = vadd.f32 0.0, %v3009
  %3011 = vmatmul.bf16.gmra.mxu0 %v2099
  %v3012 = vpop.f32.mrf.mxu0
  %v3013 = vadd.f32 0.0, %v3012
  %v3014 = vpop.f32.mrf.mxu0
  %v3015 = vadd.f32 0.0, %v3014
  %3016 = vmatmul.bf16.gmra.mxu0 %v2102
  %v3017 = vpop.f32.mrf.mxu0
  %v3018 = vadd.f32 0.0, %v3017
  %v3019 = vpop.f32.mrf.mxu0
  %v3020 = vadd.f32 0.0, %v3019
  %3021 = vmatmul.bf16.gmra.mxu0 %v2105
  %v3022 = vpop.f32.mrf.mxu0
  %v3023 = vadd.f32 0.0, %v3022
  %v3024 = vpop.f32.mrf.mxu0
  %v3025 = vadd.f32 0.0, %v3024
  %3026 = vmatmul.bf16.gmra.mxu0 %v2108
  %v3027 = vpop.f32.mrf.mxu0
  %v3028 = vadd.f32 0.0, %v3027
  %v3029 = vpop.f32.mrf.mxu0
  %v3030 = vadd.f32 0.0, %v3029
  %3031 = vmatmul.bf16.gmra.mxu0 %v2111
  %v3032 = vpop.f32.mrf.mxu0
  %v3033 = vadd.f32 0.0, %v3032
  %v3034 = vpop.f32.mrf.mxu0
  %v3035 = vadd.f32 0.0, %v3034
  %3036 = vmatmul.bf16.gmra.mxu0 %v2114
  %v3037 = vpop.f32.mrf.mxu0
  %v3038 = vadd.f32 0.0, %v3037
  %v3039 = vpop.f32.mrf.mxu0
  %v3040 = vadd.f32 0.0, %v3039
  %3041 = vmatmul.bf16.gmra.mxu0 %v2117
  %v3042 = vpop.f32.mrf.mxu0
  %v3043 = vadd.f32 0.0, %v3042
  %v3044 = vpop.f32.mrf.mxu0
  %v3045 = vadd.f32 0.0, %v3044
  %3046 = vmatmul.bf16.gmra.mxu0 %v2120
  %v3047 = vpop.f32.mrf.mxu0
  %v3048 = vadd.f32 0.0, %v3047
  %v3049 = vpop.f32.mrf.mxu0
  %v3050 = vadd.f32 0.0, %v3049
  %3051 = vmatmul.bf16.gmra.mxu0 %v2123
  %v3052 = vpop.f32.mrf.mxu0
  %v3053 = vadd.f32 0.0, %v3052
  %v3054 = vpop.f32.mrf.mxu0
  %v3055 = vadd.f32 0.0, %v3054
  %3056 = vmatmul.bf16.gmra.mxu0 %v2126
  %v3057 = vpop.f32.mrf.mxu0
  %v3058 = vadd.f32 0.0, %v3057
  %v3059 = vpop.f32.mrf.mxu0
  %v3060 = vadd.f32 0.0, %v3059
  %3061 = vmatmul.bf16.gmra.mxu0 %v2129
  %v3062 = vpop.f32.mrf.mxu0
  %v3063 = vadd.f32 0.0, %v3062
  %v3064 = vpop.f32.mrf.mxu0
  %v3065 = vadd.f32 0.0, %v3064
  %3066 = vmatmul.bf16.gmra.mxu0 %v2132
  %v3067 = vpop.f32.mrf.mxu0
  %v3068 = vadd.f32 0.0, %v3067
  %v3069 = vpop.f32.mrf.mxu0
  %v3070 = vadd.f32 0.0, %v3069
  %3071 = vmatmul.bf16.gmra.mxu0 %v2135
  %v3072 = vpop.f32.mrf.mxu0
  %v3073 = vadd.f32 0.0, %v3072
  %v3074 = vpop.f32.mrf.mxu0
  %v3075 = vadd.f32 0.0, %v3074
  %3076 = vmatmul.bf16.gmra.mxu0 %v2138
  %v3077 = vpop.f32.mrf.mxu0
  %v3078 = vadd.f32 0.0, %v3077
  %v3079 = vpop.f32.mrf.mxu0
  %v3080 = vadd.f32 0.0, %v3079
  %3081 = vmatmul.bf16.gmra.mxu0 %v2141
  %v3082 = vpop.f32.mrf.mxu0
  %v3083 = vadd.f32 0.0, %v3082
  %v3084 = vpop.f32.mrf.mxu0
  %v3085 = vadd.f32 0.0, %v3084
  %3086 = vmatmul.bf16.gmra.mxu0 %v2144
  %v3087 = vpop.f32.mrf.mxu0
  %v3088 = vadd.f32 0.0, %v3087
  %v3089 = vpop.f32.mrf.mxu0
  %v3090 = vadd.f32 0.0, %v3089
  %3091 = vmatmul.bf16.gmra.mxu0 %v2147
  %v3092 = vpop.f32.mrf.mxu0
  %v3093 = vadd.f32 0.0, %v3092
  %v3094 = vpop.f32.mrf.mxu0
  %v3095 = vadd.f32 0.0, %v3094
  %3096 = vmatmul.bf16.gmra.mxu0 %v2150
  %v3097 = vpop.f32.mrf.mxu0
  %v3098 = vadd.f32 0.0, %v3097
  %v3099 = vpop.f32.mrf.mxu0
  %v3100 = vadd.f32 0.0, %v3099
  %3101 = vmatmul.bf16.gmra.mxu0 %v2153
  %v3102 = vpop.f32.mrf.mxu0
  %v3103 = vadd.f32 0.0, %v3102
  %v3104 = vpop.f32.mrf.mxu0
  %v3105 = vadd.f32 0.0, %v3104
  %3106 = vmatmul.bf16.gmra.mxu0 %v2156
  %v3107 = vpop.f32.mrf.mxu0
  %v3108 = vadd.f32 0.0, %v3107
  %v3109 = vpop.f32.mrf.mxu0
  %v3110 = vadd.f32 0.0, %v3109
  %3111 = vmatmul.bf16.gmra.mxu0 %v2159
  %v3112 = vpop.f32.mrf.mxu0
  %v3113 = vadd.f32 0.0, %v3112
  %v3114 = vpop.f32.mrf.mxu0
  %v3115 = vadd.f32 0.0, %v3114
  %3116 = vmatmul.bf16.gmra.mxu0 %v2162
  %v3117 = vpop.f32.mrf.mxu0
  %v3118 = vadd.f32 0.0, %v3117
  %v3119 = vpop.f32.mrf.mxu0
  %v3120 = vadd.f32 0.0, %v3119
  %3121 = vmatmul.bf16.gmra.mxu0 %v2165
  %v3122 = vpop.f32.mrf.mxu0
  %v3123 = vadd.f32 0.0, %v3122
  %v3124 = vpop.f32.mrf.mxu0
  %v3125 = vadd.f32 0.0, %v3124
  %3126 = vmatmul.bf16.gmra.mxu0 %v2168
  %v3127 = vpop.f32.mrf.mxu0
  %v3128 = vadd.f32 0.0, %v3127
  %v3129 = vpop.f32.mrf.mxu0
  %v3130 = vadd.f32 0.0, %v3129
  %3131 = vmatmul.bf16.gmra.mxu0 %v2171
  %v3132 = vpop.f32.mrf.mxu0
  %v3133 = vadd.f32 0.0, %v3132
  %v3134 = vpop.f32.mrf.mxu0
  %v3135 = vadd.f32 0.0, %v3134
  %3136 = vmatmul.bf16.gmra.mxu0 %v2174
  %v3137 = vpop.f32.mrf.mxu0
  %v3138 = vadd.f32 0.0, %v3137
  %v3139 = vpop.f32.mrf.mxu0
  %v3140 = vadd.f32 0.0, %v3139
  %3141 = vmatmul.bf16.gmra.mxu0 %v2177
  %v3142 = vpop.f32.mrf.mxu0
  %v3143 = vadd.f32 0.0, %v3142
  %v3144 = vpop.f32.mrf.mxu0
  %v3145 = vadd.f32 0.0, %v3144
  %3146 = vmatmul.bf16.gmra.mxu0 %v2180
  %v3147 = vpop.f32.mrf.mxu0
  %v3148 = vadd.f32 0.0, %v3147
  %v3149 = vpop.f32.mrf.mxu0
  %v3150 = vadd.f32 0.0, %v3149
  %3151 = vmatmul.bf16.gmra.mxu0 %v2183
  %v3152 = vpop.f32.mrf.mxu0
  %v3153 = vadd.f32 0.0, %v3152
  %v3154 = vpop.f32.mrf.mxu0
  %v3155 = vadd.f32 0.0, %v3154
  %3156 = vmatmul.bf16.gmra.mxu0 %v2186
  %v3157 = vpop.f32.mrf.mxu0
  %v3158 = vadd.f32 0.0, %v3157
  %v3159 = vpop.f32.mrf.mxu0
  %v3160 = vadd.f32 0.0, %v3159
  %3161 = vmatmul.bf16.gmra.mxu0 %v2189
  %v3162 = vpop.f32.mrf.mxu0
  %v3163 = vadd.f32 0.0, %v3162
  %v3164 = vpop.f32.mrf.mxu0
  %v3165 = vadd.f32 0.0, %v3164
  %3166 = vmatmul.bf16.gmra.mxu0 %v2192
  %v3167 = vpop.f32.mrf.mxu0
  %v3168 = vadd.f32 0.0, %v3167
  %v3169 = vpop.f32.mrf.mxu0
  %v3170 = vadd.f32 0.0, %v3169
  %3171 = vmatmul.bf16.gmra.mxu0 %v2195
  %v3172 = vpop.f32.mrf.mxu0
  %v3173 = vadd.f32 0.0, %v3172
  %v3174 = vpop.f32.mrf.mxu0
  %v3175 = vadd.f32 0.0, %v3174
  %3176 = vmatmul.bf16.gmra.mxu0 %v2198
  %v3177 = vpop.f32.mrf.mxu0
  %v3178 = vadd.f32 0.0, %v3177
  %v3179 = vpop.f32.mrf.mxu0
  %v3180 = vadd.f32 0.0, %v3179
  %3181 = vmatmul.bf16.gmra.mxu0 %v2201
  %v3182 = vpop.f32.mrf.mxu0
  %v3183 = vadd.f32 0.0, %v3182
  %v3184 = vpop.f32.mrf.mxu0
  %v3185 = vadd.f32 0.0, %v3184
  %3186 = vmatmul.bf16.gmra.mxu0 %v2204
  %v3187 = vpop.f32.mrf.mxu0
  %v3188 = vadd.f32 0.0, %v3187
  %v3189 = vpop.f32.mrf.mxu0
  %v3190 = vadd.f32 0.0, %v3189
  %3191 = vmatmul.bf16.gmra.mxu0 %v2207
  %v3192 = vpop.f32.mrf.mxu0
  %v3193 = vadd.f32 0.0, %v3192
  %v3194 = vpop.f32.mrf.mxu0
  %v3195 = vadd.f32 0.0, %v3194
  %3196 = vmatmul.bf16.gmra.mxu0 %v2210
  %v3197 = vpop.f32.mrf.mxu0
  %v3198 = vadd.f32 0.0, %v3197
  %v3199 = vpop.f32.mrf.mxu0
  %v3200 = vadd.f32 0.0, %v3199
  %3201 = vmatmul.bf16.gmra.mxu0 %v2213
  %v3202 = vpop.f32.mrf.mxu0
  %v3203 = vadd.f32 0.0, %v3202
  %v3204 = vpop.f32.mrf.mxu0
  %v3205 = vadd.f32 0.0, %v3204
  %3206 = vmatmul.bf16.gmra.mxu0 %v2216
  %v3207 = vpop.f32.mrf.mxu0
  %v3208 = vadd.f32 0.0, %v3207
  %v3209 = vpop.f32.mrf.mxu0
  %v3210 = vadd.f32 0.0, %v3209
  %3211 = vmatmul.bf16.gmra.mxu0 %v2219
  %v3212 = vpop.f32.mrf.mxu0
  %v3213 = vadd.f32 0.0, %v3212
  %v3214 = vpop.f32.mrf.mxu0
  %v3215 = vadd.f32 0.0, %v3214
  %3216 = vmatmul.bf16.gmra.mxu0 %v2222
  %v3217 = vpop.f32.mrf.mxu0
  %v3218 = vadd.f32 0.0, %v3217
  %v3219 = vpop.f32.mrf.mxu0
  %v3220 = vadd.f32 0.0, %v3219
  %3221 = vmatmul.bf16.gmra.mxu0 %v2225
  %v3222 = vpop.f32.mrf.mxu0
  %v3223 = vadd.f32 0.0, %v3222
  %v3224 = vpop.f32.mrf.mxu0
  %v3225 = vadd.f32 0.0, %v3224
  %3226 = vmatmul.bf16.gmra.mxu0 %v2228
  %v3227 = vpop.f32.mrf.mxu0
  %v3228 = vadd.f32 0.0, %v3227
  %v3229 = vpop.f32.mrf.mxu0
  %v3230 = vadd.f32 0.0, %v3229
  %3231 = vmatmul.bf16.gmra.mxu0 %v2231
  %v3232 = vpop.f32.mrf.mxu0
  %v3233 = vadd.f32 0.0, %v3232
  %v3234 = vpop.f32.mrf.mxu0
  %v3235 = vadd.f32 0.0, %v3234
  %3236 = vmatmul.bf16.gmra.mxu0 %v2234
  %v3237 = vpop.f32.mrf.mxu0
  %v3238 = vadd.f32 0.0, %v3237
  %v3239 = vpop.f32.mrf.mxu0
  %v3240 = vadd.f32 0.0, %v3239
  %3241 = vmatmul.bf16.gmra.mxu0 %v2237
  %v3242 = vpop.f32.mrf.mxu0
  %v3243 = vadd.f32 0.0, %v3242
  %v3244 = vpop.f32.mrf.mxu0
  %v3245 = vadd.f32 0.0, %v3244
  %3246 = vmatmul.bf16.gmra.mxu0 %v2240
  %v3247 = vpop.f32.mrf.mxu0
  %v3248 = vadd.f32 0.0, %v3247
  %v3249 = vpop.f32.mrf.mxu0
  %v3250 = vadd.f32 0.0, %v3249
  %3251 = vmatmul.bf16.gmra.mxu0 %v2243
  %v3252 = vpop.f32.mrf.mxu0
  %v3253 = vadd.f32 0.0, %v3252
  %v3254 = vpop.f32.mrf.mxu0
  %v3255 = vadd.f32 0.0, %v3254
  %3256 = vmatmul.bf16.gmra.mxu0 %v2246
  %v3257 = vpop.f32.mrf.mxu0
  %v3258 = vadd.f32 0.0, %v3257
  %v3259 = vpop.f32.mrf.mxu0
  %v3260 = vadd.f32 0.0, %v3259
  %3261 = vmatmul.bf16.gmra.mxu0 %v2249
  %v3262 = vpop.f32.mrf.mxu0
  %v3263 = vadd.f32 0.0, %v3262
  %v3264 = vpop.f32.mrf.mxu0
  %v3265 = vadd.f32 0.0, %v3264
  %3266 = vmatmul.bf16.gmra.mxu0 %v2252
  %v3267 = vpop.f32.mrf.mxu0
  %v3268 = vadd.f32 0.0, %v3267
  %v3269 = vpop.f32.mrf.mxu0
  %v3270 = vadd.f32 0.0, %v3269
  %3271 = vmatmul.bf16.gmra.mxu0 %v2255
  %v3272 = vpop.f32.mrf.mxu0
  %v3273 = vadd.f32 0.0, %v3272
  %v3274 = vpop.f32.mrf.mxu0
  %v3275 = vadd.f32 0.0, %v3274
  %3276 = vmatmul.bf16.gmra.mxu0 %v2258
  %v3277 = vpop.f32.mrf.mxu0
  %v3278 = vadd.f32 0.0, %v3277
  %v3279 = vpop.f32.mrf.mxu0
  %v3280 = vadd.f32 0.0, %v3279
  %3281 = vmatmul.bf16.gmra.mxu0 %v2261
  %v3282 = vpop.f32.mrf.mxu0
  %v3283 = vadd.f32 0.0, %v3282
  %v3284 = vpop.f32.mrf.mxu0
  %v3285 = vadd.f32 0.0, %v3284
  %3286 = vmatmul.bf16.gmra.mxu0 %v2264
  %v3287 = vpop.f32.mrf.mxu0
  %v3288 = vadd.f32 0.0, %v3287
  %v3289 = vpop.f32.mrf.mxu0
  %v3290 = vadd.f32 0.0, %v3289
  %3291 = vmatmul.bf16.gmra.mxu0 %v2267
  %v3292 = vpop.f32.mrf.mxu0
  %v3293 = vadd.f32 0.0, %v3292
  %v3294 = vpop.f32.mrf.mxu0
  %v3295 = vadd.f32 0.0, %v3294
  %3296 = vmatmul.bf16.gmra.mxu0 %v2270
  %v3297 = vpop.f32.mrf.mxu0
  %v3298 = vadd.f32 0.0, %v3297
  %v3299 = vpop.f32.mrf.mxu0
  %v3300 = vadd.f32 0.0, %v3299
  %3301 = vmatmul.bf16.gmra.mxu0 %v2273
  %v3302 = vpop.f32.mrf.mxu0
  %v3303 = vadd.f32 0.0, %v3302
  %v3304 = vpop.f32.mrf.mxu0
  %v3305 = vadd.f32 0.0, %v3304
  %3306 = vmatmul.bf16.gmra.mxu0 %v2276
  %v3307 = vpop.f32.mrf.mxu0
  %v3308 = vadd.f32 0.0, %v3307
  %v3309 = vpop.f32.mrf.mxu0
  %v3310 = vadd.f32 0.0, %v3309
  %3311 = vmatmul.bf16.gmra.mxu0 %v2279
  %v3312 = vpop.f32.mrf.mxu0
  %v3313 = vadd.f32 0.0, %v3312
  %v3314 = vpop.f32.mrf.mxu0
  %v3315 = vadd.f32 0.0, %v3314
  %3316 = vmatmul.bf16.gmra.mxu0 %v2282
  %v3317 = vpop.f32.mrf.mxu0
  %v3318 = vadd.f32 0.0, %v3317
  %v3319 = vpop.f32.mrf.mxu0
  %v3320 = vadd.f32 0.0, %v3319
  %3321 = vmatmul.bf16.gmra.mxu0 %v2285
  %v3322 = vpop.f32.mrf.mxu0
  %v3323 = vadd.f32 0.0, %v3322
  %v3324 = vpop.f32.mrf.mxu0
  %v3325 = vadd.f32 0.0, %v3324
  %3326 = vmatmul.bf16.gmra.mxu0 %v2288
  %v3327 = vpop.f32.mrf.mxu0
  %v3328 = vadd.f32 0.0, %v3327
  %v3329 = vpop.f32.mrf.mxu0
  %v3330 = vadd.f32 0.0, %v3329
  %3331 = vmatmul.bf16.gmra.mxu0 %v2291
  %v3332 = vpop.f32.mrf.mxu0
  %v3333 = vadd.f32 0.0, %v3332
  %v3334 = vpop.f32.mrf.mxu0
  %v3335 = vadd.f32 0.0, %v3334
  %3336 = vmatmul.bf16.gmra.mxu0 %v2294
  %v3337 = vpop.f32.mrf.mxu0
  %v3338 = vadd.f32 0.0, %v3337
  %v3339 = vpop.f32.mrf.mxu0
  %v3340 = vadd.f32 0.0, %v3339
  %3341 = vmatmul.bf16.gmra.mxu0 %v2297
  %v3342 = vpop.f32.mrf.mxu0
  %v3343 = vadd.f32 0.0, %v3342
  %v3344 = vpop.f32.mrf.mxu0
  %v3345 = vadd.f32 0.0, %v3344
  %3346 = vmatmul.bf16.gmra.mxu0 %v2300
  %v3347 = vpop.f32.mrf.mxu0
  %v3348 = vadd.f32 0.0, %v3347
  %v3349 = vpop.f32.mrf.mxu0
  %v3350 = vadd.f32 0.0, %v3349
  %3351 = vmatmul.bf16.gmra.mxu0 %v2303
  %v3352 = vpop.f32.mrf.mxu0
  %v3353 = vadd.f32 0.0, %v3352
  %v3354 = vpop.f32.mrf.mxu0
  %v3355 = vadd.f32 0.0, %v3354
  %3356 = vmatmul.bf16.gmra.mxu0 %v2306
  %v3357 = vpop.f32.mrf.mxu0
  %v3358 = vadd.f32 0.0, %v3357
  %v3359 = vpop.f32.mrf.mxu0
  %v3360 = vadd.f32 0.0, %v3359
  %3361 = vmatmul.bf16.gmra.mxu0 %v2309
  %v3362 = vpop.f32.mrf.mxu0
  %v3363 = vadd.f32 0.0, %v3362
  %v3364 = vpop.f32.mrf.mxu0
  %v3365 = vadd.f32 0.0, %v3364
  %3366 = vmatmul.bf16.gmra.mxu0 %v2312
  %v3367 = vpop.f32.mrf.mxu0
  %v3368 = vadd.f32 0.0, %v3367
  %v3369 = vpop.f32.mrf.mxu0
  %v3370 = vadd.f32 0.0, %v3369
  %3371 = vmatmul.bf16.gmra.mxu0 %v2315
  %v3372 = vpop.f32.mrf.mxu0
  %v3373 = vadd.f32 0.0, %v3372
  %v3374 = vpop.f32.mrf.mxu0
  %v3375 = vadd.f32 0.0, %v3374
  %3376 = vmatmul.bf16.gmra.mxu0 %v2318
  %v3377 = vpop.f32.mrf.mxu0
  %v3378 = vadd.f32 0.0, %v3377
  %v3379 = vpop.f32.mrf.mxu0
  %v3380 = vadd.f32 0.0, %v3379
  %3381 = vmatmul.bf16.gmra.mxu0 %v2321
  %v3382 = vpop.f32.mrf.mxu0
  %v3383 = vadd.f32 0.0, %v3382
  %v3384 = vpop.f32.mrf.mxu0
  %v3385 = vadd.f32 0.0, %v3384
  %3386 = vmatmul.bf16.gmra.mxu0 %v2324
  %v3387 = vpop.f32.mrf.mxu0
  %v3388 = vadd.f32 0.0, %v3387
  %v3389 = vpop.f32.mrf.mxu0
  %v3390 = vadd.f32 0.0, %v3389
  %3391 = vmatmul.bf16.gmra.mxu0 %v2327
  %v3392 = vpop.f32.mrf.mxu0
  %v3393 = vadd.f32 0.0, %v3392
  %v3394 = vpop.f32.mrf.mxu0
  %v3395 = vadd.f32 0.0, %v3394
  %3396 = vmatmul.bf16.gmra.mxu0 %v2330
  %v3397 = vpop.f32.mrf.mxu0
  %v3398 = vadd.f32 0.0, %v3397
  %v3399 = vpop.f32.mrf.mxu0
  %v3400 = vadd.f32 0.0, %v3399
  %3401 = vmatmul.bf16.gmra.mxu0 %v2333
  %v3402 = vpop.f32.mrf.mxu0
  %v3403 = vadd.f32 0.0, %v3402
  %v3404 = vpop.f32.mrf.mxu0
  %v3405 = vadd.f32 0.0, %v3404
  %3406 = vmatmul.bf16.gmra.mxu0 %v2336
  %v3407 = vpop.f32.mrf.mxu0
  %v3408 = vadd.f32 0.0, %v3407
  %v3409 = vpop.f32.mrf.mxu0
  %v3410 = vadd.f32 0.0, %v3409
  %3411 = vmatmul.bf16.gmra.mxu0 %v2339
  %v3412 = vpop.f32.mrf.mxu0
  %v3413 = vadd.f32 0.0, %v3412
  %v3414 = vpop.f32.mrf.mxu0
  %v3415 = vadd.f32 0.0, %v3414
  %3416 = vmatmul.bf16.gmra.mxu0 %v2342
  %v3417 = vpop.f32.mrf.mxu0
  %v3418 = vadd.f32 0.0, %v3417
  %v3419 = vpop.f32.mrf.mxu0
  %v3420 = vadd.f32 0.0, %v3419
  %3421 = vmatmul.bf16.gmra.mxu0 %v2345
  %v3422 = vpop.f32.mrf.mxu0
  %v3423 = vadd.f32 0.0, %v3422
  %v3424 = vpop.f32.mrf.mxu0
  %v3425 = vadd.f32 0.0, %v3424
  %3426 = vmatmul.bf16.gmra.mxu0 %v2348
  %v3427 = vpop.f32.mrf.mxu0
  %v3428 = vadd.f32 0.0, %v3427
  %v3429 = vpop.f32.mrf.mxu0
  %v3430 = vadd.f32 0.0, %v3429
  %3431 = vmatmul.bf16.gmra.mxu0 %v2351
  %v3432 = vpop.f32.mrf.mxu0
  %v3433 = vadd.f32 0.0, %v3432
  %v3434 = vpop.f32.mrf.mxu0
  %v3435 = vadd.f32 0.0, %v3434
  %3436 = vmatmul.bf16.gmra.mxu0 %v2354
  %v3437 = vpop.f32.mrf.mxu0
  %v3438 = vadd.f32 0.0, %v3437
  %v3439 = vpop.f32.mrf.mxu0
  %v3440 = vadd.f32 0.0, %v3439
  %3441 = vmatmul.bf16.gmra.mxu0 %v2357
  %v3442 = vpop.f32.mrf.mxu0
  %v3443 = vadd.f32 0.0, %v3442
  %v3444 = vpop.f32.mrf.mxu0
  %v3445 = vadd.f32 0.0, %v3444
  %3446 = vmatmul.bf16.gmra.mxu0 %v2360
  %v3447 = vpop.f32.mrf.mxu0
  %v3448 = vadd.f32 0.0, %v3447
  %v3449 = vpop.f32.mrf.mxu0
  %v3450 = vadd.f32 0.0, %v3449
  %3451 = vmatmul.bf16.gmra.mxu0 %v2363
  %v3452 = vpop.f32.mrf.mxu0
  %v3453 = vadd.f32 0.0, %v3452
  %v3454 = vpop.f32.mrf.mxu0
  %v3455 = vadd.f32 0.0, %v3454
  %3456 = vmatmul.bf16.gmra.mxu0 %v2366
  %v3457 = vpop.f32.mrf.mxu0
  %v3458 = vadd.f32 0.0, %v3457
  %v3459 = vpop.f32.mrf.mxu0
  %v3460 = vadd.f32 0.0, %v3459
  %3461 = vmatmul.bf16.gmra.mxu0 %v2369
  %v3462 = vpop.f32.mrf.mxu0
  %v3463 = vadd.f32 0.0, %v3462
  %v3464 = vpop.f32.mrf.mxu0
  %v3465 = vadd.f32 0.0, %v3464
  %3466 = vmatmul.bf16.gmra.mxu0 %v2372
  %v3467 = vpop.f32.mrf.mxu0
  %v3468 = vadd.f32 0.0, %v3467
  %v3469 = vpop.f32.mrf.mxu0
  %v3470 = vadd.f32 0.0, %v3469
  %3471 = vmatmul.bf16.gmra.mxu0 %v2375
  %v3472 = vpop.f32.mrf.mxu0
  %v3473 = vadd.f32 0.0, %v3472
  %v3474 = vpop.f32.mrf.mxu0
  %v3475 = vadd.f32 0.0, %v3474
  %3476 = vmatmul.bf16.gmra.mxu0 %v2378
  %v3477 = vpop.f32.mrf.mxu0
  %v3478 = vadd.f32 0.0, %v3477
  %v3479 = vpop.f32.mrf.mxu0
  %v3480 = vadd.f32 0.0, %v3479
  %3481 = vmatmul.bf16.gmra.mxu0 %v2381
  %v3482 = vpop.f32.mrf.mxu0
  %v3483 = vadd.f32 0.0, %v3482
  %v3484 = vpop.f32.mrf.mxu0
  %v3485 = vadd.f32 0.0, %v3484
  %3486 = vmatmul.bf16.gmra.mxu0 %v2384
  %v3487 = vpop.f32.mrf.mxu0
  %v3488 = vadd.f32 0.0, %v3487
  %v3489 = vpop.f32.mrf.mxu0
  %v3490 = vadd.f32 0.0, %v3489
  %3491 = vmatmul.bf16.gmra.mxu0 %v2387
  %v3492 = vpop.f32.mrf.mxu0
  %v3493 = vadd.f32 0.0, %v3492
  %v3494 = vpop.f32.mrf.mxu0
  %v3495 = vadd.f32 0.0, %v3494
  %3496 = vmatmul.bf16.gmra.mxu0 %v2390
  %v3497 = vpop.f32.mrf.mxu0
  %v3498 = vadd.f32 0.0, %v3497
  %v3499 = vpop.f32.mrf.mxu0
  %v3500 = vadd.f32 0.0, %v3499
  %3501 = vmatmul.bf16.gmra.mxu0 %v2393
  %v3502 = vpop.f32.mrf.mxu0
  %v3503 = vadd.f32 0.0, %v3502
  %v3504 = vpop.f32.mrf.mxu0
  %v3505 = vadd.f32 0.0, %v3504
  %3506 = vmatmul.bf16.gmra.mxu0 %v2396
  %v3507 = vpop.f32.mrf.mxu0
  %v3508 = vadd.f32 0.0, %v3507
  %v3509 = vpop.f32.mrf.mxu0
  %v3510 = vadd.f32 0.0, %v3509
  %3511 = vmatmul.bf16.gmra.mxu0 %v2399
  %v3512 = vpop.f32.mrf.mxu0
  %v3513 = vadd.f32 0.0, %v3512
  %v3514 = vpop.f32.mrf.mxu0
  %v3515 = vadd.f32 0.0, %v3514
  %3516 = vmatmul.bf16.gmra.mxu0 %v2402
  %v3517 = vpop.f32.mrf.mxu0
  %v3518 = vadd.f32 0.0, %v3517
  %v3519 = vpop.f32.mrf.mxu0
  %v3520 = vadd.f32 0.0, %v3519
  %3521 = vmatmul.bf16.gmra.mxu0 %v2405
  %v3522 = vpop.f32.mrf.mxu0
  %v3523 = vadd.f32 0.0, %v3522
  %v3524 = vpop.f32.mrf.mxu0
  %v3525 = vadd.f32 0.0, %v3524
  %3526 = vmatmul.bf16.gmra.mxu0 %v2408
  %v3527 = vpop.f32.mrf.mxu0
  %v3528 = vadd.f32 0.0, %v3527
  %v3529 = vpop.f32.mrf.mxu0
  %v3530 = vadd.f32 0.0, %v3529
  %3531 = vmatmul.bf16.gmra.mxu0 %v2411
  %v3532 = vpop.f32.mrf.mxu0
  %v3533 = vadd.f32 0.0, %v3532
  %v3534 = vpop.f32.mrf.mxu0
  %v3535 = vadd.f32 0.0, %v3534
  %3536 = vmatmul.bf16.gmra.mxu0 %v2414
  %v3537 = vpop.f32.mrf.mxu0
  %v3538 = vadd.f32 0.0, %v3537
  %v3539 = vpop.f32.mrf.mxu0
  %v3540 = vadd.f32 0.0, %v3539
  %3541 = vmatmul.bf16.gmra.mxu0 %v2417
  %v3542 = vpop.f32.mrf.mxu0
  %v3543 = vadd.f32 0.0, %v3542
  %v3544 = vpop.f32.mrf.mxu0
  %v3545 = vadd.f32 0.0, %v3544
  %3546 = vmatmul.bf16.gmra.mxu0 %v2420
  %v3547 = vpop.f32.mrf.mxu0
  %v3548 = vadd.f32 0.0, %v3547
  %v3549 = vpop.f32.mrf.mxu0
  %v3550 = vadd.f32 0.0, %v3549
  %3551 = vmatmul.bf16.gmra.mxu0 %v2423
  %v3552 = vpop.f32.mrf.mxu0
  %v3553 = vadd.f32 0.0, %v3552
  %v3554 = vpop.f32.mrf.mxu0
  %v3555 = vadd.f32 0.0, %v3554
  %3556 = vmatmul.bf16.gmra.mxu0 %v2426
  %v3557 = vpop.f32.mrf.mxu0
  %v3558 = vadd.f32 0.0, %v3557
  %v3559 = vpop.f32.mrf.mxu0
  %v3560 = vadd.f32 0.0, %v3559
  %3561 = vmatmul.bf16.gmra.mxu0 %v2429
  %v3562 = vpop.f32.mrf.mxu0
  %v3563 = vadd.f32 0.0, %v3562
  %v3564 = vpop.f32.mrf.mxu0
  %v3565 = vadd.f32 0.0, %v3564
  %3566 = vmatmul.bf16.gmra.mxu0 %v2432
  %v3567 = vpop.f32.mrf.mxu0
  %v3568 = vadd.f32 0.0, %v3567
  %v3569 = vpop.f32.mrf.mxu0
  %v3570 = vadd.f32 0.0, %v3569
  %3571 = vmatmul.bf16.gmra.mxu0 %v2435
  %v3572 = vpop.f32.mrf.mxu0
  %v3573 = vadd.f32 0.0, %v3572
  %v3574 = vpop.f32.mrf.mxu0
  %v3575 = vadd.f32 0.0, %v3574
  %3576 = vmatmul.bf16.gmra.mxu0 %v2438
  %v3577 = vpop.f32.mrf.mxu0
  %v3578 = vadd.f32 0.0, %v3577
  %v3579 = vpop.f32.mrf.mxu0
  %v3580 = vadd.f32 0.0, %v3579
  %3581 = vmatmul.bf16.gmra.mxu0 %v2441
  %v3582 = vpop.f32.mrf.mxu0
  %v3583 = vadd.f32 0.0, %v3582
  %v3584 = vpop.f32.mrf.mxu0
  %v3585 = vadd.f32 0.0, %v3584
  %3586 = vmatmul.bf16.gmra.mxu0 %v2444
  %v3587 = vpop.f32.mrf.mxu0
  %v3588 = vadd.f32 0.0, %v3587
  %v3589 = vpop.f32.mrf.mxu0
  %v3590 = vadd.f32 0.0, %v3589
  %3591 = vmatmul.bf16.gmra.mxu0 %v2447
  %v3592 = vpop.f32.mrf.mxu0
  %v3593 = vadd.f32 0.0, %v3592
  %v3594 = vpop.f32.mrf.mxu0
  %v3595 = vadd.f32 0.0, %v3594
  %3596 = vmatmul.bf16.gmra.mxu0 %v2450
  %v3597 = vpop.f32.mrf.mxu0
  %v3598 = vadd.f32 0.0, %v3597
  %v3599 = vpop.f32.mrf.mxu0
  %v3600 = vadd.f32 0.0, %v3599
  %3601 = vmatmul.bf16.gmra.mxu0 %v2453
  %v3602 = vpop.f32.mrf.mxu0
  %v3603 = vadd.f32 0.0, %v3602
  %v3604 = vpop.f32.mrf.mxu0
  %v3605 = vadd.f32 0.0, %v3604
  %3606 = vmatmul.bf16.gmra.mxu0 %v2456
  %v3607 = vpop.f32.mrf.mxu0
  %v3608 = vadd.f32 0.0, %v3607
  %v3609 = vpop.f32.mrf.mxu0
  %v3610 = vadd.f32 0.0, %v3609
  %3611 = vmatmul.bf16.gmra.mxu0 %v2459
  %v3612 = vpop.f32.mrf.mxu0
  %v3613 = vadd.f32 0.0, %v3612
  %v3614 = vpop.f32.mrf.mxu0
  %v3615 = vadd.f32 0.0, %v3614
  %3616 = vmatmul.bf16.gmra.mxu0 %v2462
  %v3617 = vpop.f32.mrf.mxu0
  %v3618 = vadd.f32 0.0, %v3617
  %v3619 = vpop.f32.mrf.mxu0
  %v3620 = vadd.f32 0.0, %v3619
  %3621 = vmatmul.bf16.gmra.mxu0 %v2465
  %v3622 = vpop.f32.mrf.mxu0
  %v3623 = vadd.f32 0.0, %v3622
  %v3624 = vpop.f32.mrf.mxu0
  %v3625 = vadd.f32 0.0, %v3624
  %3626 = vmatmul.bf16.gmra.mxu0 %v2468
  %v3627 = vpop.f32.mrf.mxu0
  %v3628 = vadd.f32 0.0, %v3627
  %v3629 = vpop.f32.mrf.mxu0
  %v3630 = vadd.f32 0.0, %v3629
  %3631 = vmatmul.bf16.gmra.mxu0 %v2471
  %v3632 = vpop.f32.mrf.mxu0
  %v3633 = vadd.f32 0.0, %v3632
  %v3634 = vpop.f32.mrf.mxu0
  %v3635 = vadd.f32 0.0, %v3634
  %3636 = vmatmul.bf16.gmra.mxu0 %v2474
  %v3637 = vpop.f32.mrf.mxu0
  %v3638 = vadd.f32 0.0, %v3637
  %v3639 = vpop.f32.mrf.mxu0
  %v3640 = vadd.f32 0.0, %v3639
  %3641 = vmatmul.bf16.gmra.mxu0 %v2477
  %v3642 = vpop.f32.mrf.mxu0
  %v3643 = vadd.f32 0.0, %v3642
  %v3644 = vpop.f32.mrf.mxu0
  %v3645 = vadd.f32 0.0, %v3644
  %3646 = vmatmul.bf16.gmra.mxu0 %v2480
  %v3647 = vpop.f32.mrf.mxu0
  %v3648 = vadd.f32 0.0, %v3647
  %v3649 = vpop.f32.mrf.mxu0
  %v3650 = vadd.f32 0.0, %v3649
  %3651 = vmatmul.bf16.gmra.mxu0 %v2483
  %v3652 = vpop.f32.mrf.mxu0
  %v3653 = vadd.f32 0.0, %v3652
  %v3654 = vpop.f32.mrf.mxu0
  %v3655 = vadd.f32 0.0, %v3654
  %3656 = vmatmul.bf16.gmra.mxu0 %v2486
  %v3657 = vpop.f32.mrf.mxu0
  %v3658 = vadd.f32 0.0, %v3657
  %v3659 = vpop.f32.mrf.mxu0
  %v3660 = vadd.f32 0.0, %v3659
  %3661 = vmatmul.bf16.gmra.mxu0 %v2489
  %v3662 = vpop.f32.mrf.mxu0
  %v3663 = vadd.f32 0.0, %v3662
  %v3664 = vpop.f32.mrf.mxu0
  %v3665 = vadd.f32 0.0, %v3664
  %3666 = vmatmul.bf16.gmra.mxu0 %v2492
  %v3667 = vpop.f32.mrf.mxu0
  %v3668 = vadd.f32 0.0, %v3667
  %v3669 = vpop.f32.mrf.mxu0
  %v3670 = vadd.f32 0.0, %v3669
  %3671 = vmatmul.bf16.gmra.mxu0 %v2495
  %v3672 = vpop.f32.mrf.mxu0
  %v3673 = vadd.f32 0.0, %v3672
  %v3674 = vpop.f32.mrf.mxu0
  %v3675 = vadd.f32 0.0, %v3674
  %3676 = vmatmul.bf16.gmra.mxu0 %v2498
  %v3677 = vpop.f32.mrf.mxu0
  %v3678 = vadd.f32 0.0, %v3677
  %v3679 = vpop.f32.mrf.mxu0
  %v3680 = vadd.f32 0.0, %v3679
  %3681 = vmatmul.bf16.gmra.mxu0 %v2501
  %v3682 = vpop.f32.mrf.mxu0
  %v3683 = vadd.f32 0.0, %v3682
  %v3684 = vpop.f32.mrf.mxu0
  %v3685 = vadd.f32 0.0, %v3684
  %3686 = vmatmul.bf16.gmra.mxu0 %v2504
  %v3687 = vpop.f32.mrf.mxu0
  %v3688 = vadd.f32 0.0, %v3687
  %v3689 = vpop.f32.mrf.mxu0
  %v3690 = vadd.f32 0.0, %v3689
  %3691 = vmatmul.bf16.gmra.mxu0 %v2507
  %v3692 = vpop.f32.mrf.mxu0
  %v3693 = vadd.f32 0.0, %v3692
  %v3694 = vpop.f32.mrf.mxu0
  %v3695 = vadd.f32 0.0, %v3694
  %3696 = vmatmul.bf16.gmra.mxu0 %v2510
  %v3697 = vpop.f32.mrf.mxu0
  %v3698 = vadd.f32 0.0, %v3697
  %v3699 = vpop.f32.mrf.mxu0
  %v3700 = vadd.f32 0.0, %v3699
  %3701 = vmatmul.bf16.gmra.mxu0 %v2513
  %v3702 = vpop.f32.mrf.mxu0
  %v3703 = vadd.f32 0.0, %v3702
  %v3704 = vpop.f32.mrf.mxu0
  %v3705 = vadd.f32 0.0, %v3704
  %3706 = vmatmul.bf16.gmra.mxu0 %v2516
  %v3707 = vpop.f32.mrf.mxu0
  %v3708 = vadd.f32 0.0, %v3707
  %v3709 = vpop.f32.mrf.mxu0
  %v3710 = vadd.f32 0.0, %v3709
  %3711 = vmatmul.bf16.gmra.mxu0 %v2519
  %v3712 = vpop.f32.mrf.mxu0
  %v3713 = vadd.f32 0.0, %v3712
  %v3714 = vpop.f32.mrf.mxu0
  %v3715 = vadd.f32 0.0, %v3714
  %3716 = vmatmul.bf16.gmra.mxu0 %v2522
  %v3717 = vpop.f32.mrf.mxu0
  %v3718 = vadd.f32 0.0, %v3717
  %v3719 = vpop.f32.mrf.mxu0
  %v3720 = vadd.f32 0.0, %v3719
  %3721 = vmatmul.bf16.gmra.mxu0 %v2525
  %v3722 = vpop.f32.mrf.mxu0
  %v3723 = vadd.f32 0.0, %v3722
  %v3724 = vpop.f32.mrf.mxu0
  %v3725 = vadd.f32 0.0, %v3724
  %3726 = vmatmul.bf16.gmra.mxu0 %v2528
  %v3727 = vpop.f32.mrf.mxu0
  %v3728 = vadd.f32 0.0, %v3727
  %v3729 = vpop.f32.mrf.mxu0
  %v3730 = vadd.f32 0.0, %v3729
  %3731 = vmatmul.bf16.gmra.mxu0 %v2531
  %v3732 = vpop.f32.mrf.mxu0
  %v3733 = vadd.f32 0.0, %v3732
  %v3734 = vpop.f32.mrf.mxu0
  %v3735 = vadd.f32 0.0, %v3734
  %3736 = vmatmul.bf16.gmra.mxu0 %v2534
  %v3737 = vpop.f32.mrf.mxu0
  %v3738 = vadd.f32 0.0, %v3737
  %v3739 = vpop.f32.mrf.mxu0
  %v3740 = vadd.f32 0.0, %v3739
  %3741 = vmatmul.bf16.gmra.mxu0 %v2537
  %v3742 = vpop.f32.mrf.mxu0
  %v3743 = vadd.f32 0.0, %v3742
  %v3744 = vpop.f32.mrf.mxu0
  %v3745 = vadd.f32 0.0, %v3744
  %3746 = vmatmul.bf16.gmra.mxu0 %v2540
  %v3747 = vpop.f32.mrf.mxu0
  %v3748 = vadd.f32 0.0, %v3747
  %v3749 = vpop.f32.mrf.mxu0
  %v3750 = vadd.f32 0.0, %v3749
  %3751 = vmatmul.bf16.gmra.mxu0 %v2543
  %v3752 = vpop.f32.mrf.mxu0
  %v3753 = vadd.f32 0.0, %v3752
  %v3754 = vpop.f32.mrf.mxu0
  %v3755 = vadd.f32 0.0, %v3754
  %3756 = vmatmul.bf16.gmra.mxu0 %v2546
  %v3757 = vpop.f32.mrf.mxu0
  %v3758 = vadd.f32 0.0, %v3757
  %v3759 = vpop.f32.mrf.mxu0
  %v3760 = vadd.f32 0.0, %v3759
  %3761 = vmatmul.bf16.gmra.mxu0 %v2549
  %v3762 = vpop.f32.mrf.mxu0
  %v3763 = vadd.f32 0.0, %v3762
  %v3764 = vpop.f32.mrf.mxu0
  %v3765 = vadd.f32 0.0, %v3764
  %3766 = vmatmul.bf16.gmra.mxu0 %v2552
  %v3767 = vpop.f32.mrf.mxu0
  %v3768 = vadd.f32 0.0, %v3767
  %v3769 = vpop.f32.mrf.mxu0
  %v3770 = vadd.f32 0.0, %v3769
  %3771 = vmatmul.bf16.gmra.mxu0 %v2555
  %v3772 = vpop.f32.mrf.mxu0
  %v3773 = vadd.f32 0.0, %v3772
  %v3774 = vpop.f32.mrf.mxu0
  %v3775 = vadd.f32 0.0, %v3774
  %3776 = vmatmul.bf16.gmra.mxu0 %v2558
  %v3777 = vpop.f32.mrf.mxu0
  %v3778 = vadd.f32 0.0, %v3777
  %v3779 = vpop.f32.mrf.mxu0
  %v3780 = vadd.f32 0.0, %v3779
  %3781 = vmatmul.bf16.gmra.mxu0 %v2561
  %v3782 = vpop.f32.mrf.mxu0
  %v3783 = vadd.f32 0.0, %v3782
  %v3784 = vpop.f32.mrf.mxu0
  %v3785 = vadd.f32 0.0, %v3784
  %3786 = vmatmul.bf16.gmra.mxu0 %v2564
  %v3787 = vpop.f32.mrf.mxu0
  %v3788 = vadd.f32 0.0, %v3787
  %v3789 = vpop.f32.mrf.mxu0
  %v3790 = vadd.f32 0.0, %v3789
  %3791 = vmatmul.bf16.gmra.mxu0 %v2567
  %v3792 = vpop.f32.mrf.mxu0
  %v3793 = vadd.f32 0.0, %v3792
  %v3794 = vpop.f32.mrf.mxu0
  %v3795 = vadd.f32 0.0, %v3794
  %3796 = vmatmul.bf16.gmra.mxu0 %v2570
  %v3797 = vpop.f32.mrf.mxu0
  %v3798 = vadd.f32 0.0, %v3797
  %v3799 = vpop.f32.mrf.mxu0
  %v3800 = vadd.f32 0.0, %v3799
  %3801 = vmatmul.bf16.gmra.mxu0 %v2573
  %v3802 = vpop.f32.mrf.mxu0
  %v3803 = vadd.f32 0.0, %v3802
  %v3804 = vpop.f32.mrf.mxu0
  %v3805 = vadd.f32 0.0, %v3804
  %3806 = vmatmul.bf16.gmra.mxu0 %v2576
  %v3807 = vpop.f32.mrf.mxu0
  %v3808 = vadd.f32 0.0, %v3807
  %v3809 = vpop.f32.mrf.mxu0
  %v3810 = vadd.f32 0.0, %v3809
  %3811 = vmatmul.bf16.gmra.mxu0 %v2579
  %v3812 = vpop.f32.mrf.mxu0
  %v3813 = vadd.f32 0.0, %v3812
  %v3814 = vpop.f32.mrf.mxu0
  %v3815 = vadd.f32 0.0, %v3814
  %3816 = vmatmul.bf16.gmra.mxu0 %v2582
  %v3817 = vpop.f32.mrf.mxu0
  %v3818 = vadd.f32 0.0, %v3817
  %v3819 = vpop.f32.mrf.mxu0
  %v3820 = vadd.f32 0.0, %v3819
  %3821 = vmatmul.bf16.gmra.mxu0 %v2585
  %v3822 = vpop.f32.mrf.mxu0
  %v3823 = vadd.f32 0.0, %v3822
  %v3824 = vpop.f32.mrf.mxu0
  %v3825 = vadd.f32 0.0, %v3824
  %3826 = vmatmul.bf16.gmra.mxu0 %v2588
  %v3827 = vpop.f32.mrf.mxu0
  %v3828 = vadd.f32 0.0, %v3827
  %v3829 = vpop.f32.mrf.mxu0
  %v3830 = vadd.f32 0.0, %v3829
  %3831 = vmatmul.bf16.gmra.mxu0 %v2591
  %v3832 = vpop.f32.mrf.mxu0
  %v3833 = vadd.f32 0.0, %v3832
  %v3834 = vpop.f32.mrf.mxu0
  %v3835 = vadd.f32 0.0, %v3834
  %3836 = vmatmul.bf16.gmra.mxu0 %v2594
  %v3837 = vpop.f32.mrf.mxu0
  %v3838 = vadd.f32 0.0, %v3837
  %v3839 = vpop.f32.mrf.mxu0
  %v3840 = vadd.f32 0.0, %v3839
  %3841 = vmatmul.bf16.gmra.mxu0 %v2597
  %v3842 = vpop.f32.mrf.mxu0
  %v3843 = vadd.f32 0.0, %v3842
  %v3844 = vpop.f32.mrf.mxu0
  %v3845 = vadd.f32 0.0, %v3844
  %3846 = vmatmul.bf16.gmra.mxu0 %v2600
  %v3847 = vpop.f32.mrf.mxu0
  %v3848 = vadd.f32 0.0, %v3847
  %v3849 = vpop.f32.mrf.mxu0
  %v3850 = vadd.f32 0.0, %v3849
  %3851 = vmatmul.bf16.gmra.mxu0 %v2603
  %v3852 = vpop.f32.mrf.mxu0
  %v3853 = vadd.f32 0.0, %v3852
  %v3854 = vpop.f32.mrf.mxu0
  %v3855 = vadd.f32 0.0, %v3854
  %3856 = vmatmul.bf16.gmra.mxu0 %v2606
  %v3857 = vpop.f32.mrf.mxu0
  %v3858 = vadd.f32 0.0, %v3857
  %v3859 = vpop.f32.mrf.mxu0
  %v3860 = vadd.f32 0.0, %v3859
  %3861 = vmatmul.bf16.gmra.mxu0 %v2609
  %v3862 = vpop.f32.mrf.mxu0
  %v3863 = vadd.f32 0.0, %v3862
  %v3864 = vpop.f32.mrf.mxu0
  %v3865 = vadd.f32 0.0, %v3864
  %3866 = vmatmul.bf16.gmra.mxu0 %v2612
  %v3867 = vpop.f32.mrf.mxu0
  %v3868 = vadd.f32 0.0, %v3867
  %v3869 = vpop.f32.mrf.mxu0
  %v3870 = vadd.f32 0.0, %v3869
  %3871 = vmatmul.bf16.gmra.mxu0 %v2615
  %v3872 = vpop.f32.mrf.mxu0
  %v3873 = vadd.f32 0.0, %v3872
  %v3874 = vpop.f32.mrf.mxu0
  %v3875 = vadd.f32 0.0, %v3874
  %3876 = vmatmul.bf16.gmra.mxu0 %v2618
  %v3877 = vpop.f32.mrf.mxu0
  %v3878 = vadd.f32 0.0, %v3877
  %v3879 = vpop.f32.mrf.mxu0
  %v3880 = vadd.f32 0.0, %v3879
  %3881 = vmatmul.bf16.gmra.mxu0 %v2621
  %v3882 = vpop.f32.mrf.mxu0
  %v3883 = vadd.f32 0.0, %v3882
  %v3884 = vpop.f32.mrf.mxu0
  %v3885 = vadd.f32 0.0, %v3884
  %3886 = vmatmul.bf16.gmra.mxu0 %v2624
  %v3887 = vpop.f32.mrf.mxu0
  %v3888 = vadd.f32 0.0, %v3887
  %v3889 = vpop.f32.mrf.mxu0
  %v3890 = vadd.f32 0.0, %v3889
  %3891 = vmatmul.bf16.gmra.mxu0 %v2627
  %v3892 = vpop.f32.mrf.mxu0
  %v3893 = vadd.f32 0.0, %v3892
  %v3894 = vpop.f32.mrf.mxu0
  %v3895 = vadd.f32 0.0, %v3894
  %3896 = vmatmul.bf16.gmra.mxu0 %v2630
  %v3897 = vpop.f32.mrf.mxu0
  %v3898 = vadd.f32 0.0, %v3897
  %v3899 = vpop.f32.mrf.mxu0
  %v3900 = vadd.f32 0.0, %v3899
  %3901 = vmatmul.bf16.gmra.mxu0 %v2633
  %v3902 = vpop.f32.mrf.mxu0
  %v3903 = vadd.f32 0.0, %v3902
  %v3904 = vpop.f32.mrf.mxu0
  %v3905 = vadd.f32 0.0, %v3904
  %3906 = vmatmul.bf16.gmra.mxu0 %v2636
  %v3907 = vpop.f32.mrf.mxu0
  %v3908 = vadd.f32 0.0, %v3907
  %v3909 = vpop.f32.mrf.mxu0
  %v3910 = vadd.f32 0.0, %v3909
  %3911 = vmatmul.bf16.gmra.mxu0 %v2639
  %v3912 = vpop.f32.mrf.mxu0
  %v3913 = vadd.f32 0.0, %v3912
  %v3914 = vpop.f32.mrf.mxu0
  %v3915 = vadd.f32 0.0, %v3914
  %3916 = vmatmul.bf16.gmra.mxu0 %v2642
  %v3917 = vpop.f32.mrf.mxu0
  %v3918 = vadd.f32 0.0, %v3917
  %v3919 = vpop.f32.mrf.mxu0
  %v3920 = vadd.f32 0.0, %v3919
  %3921 = vmatmul.bf16.gmra.mxu0 %v2645
  %v3922 = vpop.f32.mrf.mxu0
  %v3923 = vadd.f32 0.0, %v3922
  %v3924 = vpop.f32.mrf.mxu0
  %v3925 = vadd.f32 0.0, %v3924
  %3926 = vmatmul.bf16.gmra.mxu0 %v2648
  %v3927 = vpop.f32.mrf.mxu0
  %v3928 = vadd.f32 0.0, %v3927
  %v3929 = vpop.f32.mrf.mxu0
  %v3930 = vadd.f32 0.0, %v3929
  %3931 = vmatmul.bf16.gmra.mxu0 %v2651
  %v3932 = vpop.f32.mrf.mxu0
  %v3933 = vadd.f32 0.0, %v3932
  %v3934 = vpop.f32.mrf.mxu0
  %v3935 = vadd.f32 0.0, %v3934
  %3936 = vmatmul.bf16.gmra.mxu0 %v2654
  %v3937 = vpop.f32.mrf.mxu0
  %v3938 = vadd.f32 0.0, %v3937
  %v3939 = vpop.f32.mrf.mxu0
  %v3940 = vadd.f32 0.0, %v3939
  %3941 = vmatmul.bf16.gmra.mxu0 %v2657
  %v3942 = vpop.f32.mrf.mxu0
  %v3943 = vadd.f32 0.0, %v3942
  %v3944 = vpop.f32.mrf.mxu0
  %v3945 = vadd.f32 0.0, %v3944
  %3946 = vmatmul.bf16.gmra.mxu0 %v2660
  %v3947 = vpop.f32.mrf.mxu0
  %v3948 = vadd.f32 0.0, %v3947
  %v3949 = vpop.f32.mrf.mxu0
  %v3950 = vadd.f32 0.0, %v3949
  %3951 = vmatmul.bf16.gmra.mxu0 %v2663
  %v3952 = vpop.f32.mrf.mxu0
  %v3953 = vadd.f32 0.0, %v3952
  %v3954 = vpop.f32.mrf.mxu0
  %v3955 = vadd.f32 0.0, %v3954
  %3956 = vmatmul.bf16.gmra.mxu0 %v2666
  %v3957 = vpop.f32.mrf.mxu0
  %v3958 = vadd.f32 0.0, %v3957
  %v3959 = vpop.f32.mrf.mxu0
  %v3960 = vadd.f32 0.0, %v3959
  %3961 = vmatmul.bf16.gmra.mxu0 %v2669
  %v3962 = vpop.f32.mrf.mxu0
  %v3963 = vadd.f32 0.0, %v3962
  %v3964 = vpop.f32.mrf.mxu0
  %v3965 = vadd.f32 0.0, %v3964
  %3966 = vmatmul.bf16.gmra.mxu0 %v2672
  %v3967 = vpop.f32.mrf.mxu0
  %v3968 = vadd.f32 0.0, %v3967
  %v3969 = vpop.f32.mrf.mxu0
  %v3970 = vadd.f32 0.0, %v3969
  %3971 = vmatmul.bf16.gmra.mxu0 %v2675
  %v3972 = vpop.f32.mrf.mxu0
  %v3973 = vadd.f32 0.0, %v3972
  %v3974 = vpop.f32.mrf.mxu0
  %v3975 = vadd.f32 0.0, %v3974
  %3976 = vmatmul.bf16.gmra.mxu0 %v2678
  %v3977 = vpop.f32.mrf.mxu0
  %v3978 = vadd.f32 0.0, %v3977
  %v3979 = vpop.f32.mrf.mxu0
  %v3980 = vadd.f32 0.0, %v3979
  %3981 = vmatmul.bf16.gmra.mxu0 %v2681
  %v3982 = vpop.f32.mrf.mxu0
  %v3983 = vadd.f32 0.0, %v3982
  %v3984 = vpop.f32.mrf.mxu0
  %v3985 = vadd.f32 0.0, %v3984
  %3986 = vmatmul.bf16.gmra.mxu0 %v2684
  %v3987 = vpop.f32.mrf.mxu0
  %v3988 = vadd.f32 0.0, %v3987
  %v3989 = vpop.f32.mrf.mxu0
  %v3990 = vadd.f32 0.0, %v3989
  %3991 = vmatmul.bf16.gmra.mxu0 %v2687
  %v3992 = vpop.f32.mrf.mxu0
  %v3993 = vadd.f32 0.0, %v3992
  %v3994 = vpop.f32.mrf.mxu0
  %v3995 = vadd.f32 0.0, %v3994
  %3996 = vmatmul.bf16.gmra.mxu0 %v2690
  %v3997 = vpop.f32.mrf.mxu0
  %v3998 = vadd.f32 0.0, %v3997
  %v3999 = vpop.f32.mrf.mxu0
  %v4000 = vadd.f32 0.0, %v3999
  %4001 = vmatmul.bf16.gmra.mxu0 %v2693
  %v4002 = vpop.f32.mrf.mxu0
  %v4003 = vadd.f32 0.0, %v4002
  %v4004 = vpop.f32.mrf.mxu0
  %v4005 = vadd.f32 0.0, %v4004
  %4006 = vmatmul.bf16.gmra.mxu0 %v2696
  %v4007 = vpop.f32.mrf.mxu0
  %v4008 = vadd.f32 0.0, %v4007
  %v4009 = vpop.f32.mrf.mxu0
  %v4010 = vadd.f32 0.0, %v4009
  %4011 = vmatmul.bf16.gmra.mxu0 %v2699
  %v4012 = vpop.f32.mrf.mxu0
  %v4013 = vadd.f32 0.0, %v4012
  %v4014 = vpop.f32.mrf.mxu0
  %v4015 = vadd.f32 0.0, %v4014
  %4016 = vmatmul.bf16.gmra.mxu0 %v2702
  %v4017 = vpop.f32.mrf.mxu0
  %v4018 = vadd.f32 0.0, %v4017
  %v4019 = vpop.f32.mrf.mxu0
  %v4020 = vadd.f32 0.0, %v4019
  %4021 = vmatmul.bf16.gmra.mxu0 %v2705
  %v4022 = vpop.f32.mrf.mxu0
  %v4023 = vadd.f32 0.0, %v4022
  %v4024 = vpop.f32.mrf.mxu0
  %v4025 = vadd.f32 0.0, %v4024
  %4026 = vmatmul.bf16.gmra.mxu0 %v2708
  %v4027 = vpop.f32.mrf.mxu0
  %v4028 = vadd.f32 0.0, %v4027
  %v4029 = vpop.f32.mrf.mxu0
  %v4030 = vadd.f32 0.0, %v4029
  %4031 = vmatmul.bf16.gmra.mxu0 %v2711
  %v4032 = vpop.f32.mrf.mxu0
  %v4033 = vadd.f32 0.0, %v4032
  %v4034 = vpop.f32.mrf.mxu0
  %v4035 = vadd.f32 0.0, %v4034
  %4036 = vmatmul.bf16.gmra.mxu0 %v2714
  %v4037 = vpop.f32.mrf.mxu0
  %v4038 = vadd.f32 0.0, %v4037
  %v4039 = vpop.f32.mrf.mxu0
  %v4040 = vadd.f32 0.0, %v4039
  %4041 = vmatmul.bf16.gmra.mxu0 %v2717
  %v4042 = vpop.f32.mrf.mxu0
  %v4043 = vadd.f32 0.0, %v4042
  %v4044 = vpop.f32.mrf.mxu0
  %v4045 = vadd.f32 0.0, %v4044
  %4046 = vmatmul.bf16.gmra.mxu0 %v2720
  %v4047 = vpop.f32.mrf.mxu0
  %v4048 = vadd.f32 0.0, %v4047
  %v4049 = vpop.f32.mrf.mxu0
  %v4050 = vadd.f32 0.0, %v4049
  %4051 = vmatmul.bf16.gmra.mxu0 %v2723
  %v4052 = vpop.f32.mrf.mxu0
  %v4053 = vadd.f32 0.0, %v4052
  %v4054 = vpop.f32.mrf.mxu0
  %v4055 = vadd.f32 0.0, %v4054
  %4056 = vmatmul.bf16.gmra.mxu0 %v2726
  %v4057 = vpop.f32.mrf.mxu0
  %v4058 = vadd.f32 0.0, %v4057
  %v4059 = vpop.f32.mrf.mxu0
  %v4060 = vadd.f32 0.0, %v4059
  %4061 = vmatmul.bf16.gmra.mxu0 %v2729
  %v4062 = vpop.f32.mrf.mxu0
  %v4063 = vadd.f32 0.0, %v4062
  %v4064 = vpop.f32.mrf.mxu0
  %v4065 = vadd.f32 0.0, %v4064
  %4066 = vmatmul.bf16.gmra.mxu0 %v2732
  %v4067 = vpop.f32.mrf.mxu0
  %v4068 = vadd.f32 0.0, %v4067
  %v4069 = vpop.f32.mrf.mxu0
  %v4070 = vadd.f32 0.0, %v4069
  %4071 = vmatmul.bf16.gmra.mxu0 %v2735
  %v4072 = vpop.f32.mrf.mxu0
  %v4073 = vadd.f32 0.0, %v4072
  %v4074 = vpop.f32.mrf.mxu0
  %v4075 = vadd.f32 0.0, %v4074
  %4076 = vmatmul.bf16.gmra.mxu0 %v2738
  %v4077 = vpop.f32.mrf.mxu0
  %v4078 = vadd.f32 0.0, %v4077
  %v4079 = vpop.f32.mrf.mxu0
  %v4080 = vadd.f32 0.0, %v4079
  %4081 = vmatmul.bf16.gmra.mxu0 %v2741
  %v4082 = vpop.f32.mrf.mxu0
  %v4083 = vadd.f32 0.0, %v4082
  %v4084 = vpop.f32.mrf.mxu0
  %v4085 = vadd.f32 0.0, %v4084
  %4086 = vmatmul.bf16.gmra.mxu0 %v2744
  %v4087 = vpop.f32.mrf.mxu0
  %v4088 = vadd.f32 0.0, %v4087
  %v4089 = vpop.f32.mrf.mxu0
  %v4090 = vadd.f32 0.0, %v4089
  %4091 = vmatmul.bf16.gmra.mxu0 %v2747
  %v4092 = vpop.f32.mrf.mxu0
  %v4093 = vadd.f32 0.0, %v4092
  %v4094 = vpop.f32.mrf.mxu0
  %v4095 = vadd.f32 0.0, %v4094
  %4096 = vmatmul.bf16.gmra.mxu0 %v2750
  %v4097 = vpop.f32.mrf.mxu0
  %v4098 = vadd.f32 0.0, %v4097
  %v4099 = vpop.f32.mrf.mxu0
  %v4100 = vadd.f32 0.0, %v4099
  %4101 = vmatmul.bf16.gmra.mxu0 %v2753
  %v4102 = vpop.f32.mrf.mxu0
  %v4103 = vadd.f32 0.0, %v4102
  %v4104 = vpop.f32.mrf.mxu0
  %v4105 = vadd.f32 0.0, %v4104
  %4106 = vmatmul.bf16.gmra.mxu0 %v2756
  %v4107 = vpop.f32.mrf.mxu0
  %v4108 = vadd.f32 0.0, %v4107
  %v4109 = vpop.f32.mrf.mxu0
  %v4110 = vadd.f32 0.0, %v4109
  %4111 = vmatmul.bf16.gmra.mxu0 %v2759
  %v4112 = vpop.f32.mrf.mxu0
  %v4113 = vadd.f32 0.0, %v4112
  %v4114 = vpop.f32.mrf.mxu0
  %v4115 = vadd.f32 0.0, %v4114
  %4116 = vmatmul.bf16.gmra.mxu0 %v2762
  %v4117 = vpop.f32.mrf.mxu0
  %v4118 = vadd.f32 0.0, %v4117
  %v4119 = vpop.f32.mrf.mxu0
  %v4120 = vadd.f32 0.0, %v4119
  %4121 = vmatmul.bf16.gmra.mxu0 %v2765
  %v4122 = vpop.f32.mrf.mxu0
  %v4123 = vadd.f32 0.0, %v4122
  %v4124 = vpop.f32.mrf.mxu0
  %v4125 = vadd.f32 0.0, %v4124
  %4126 = vmatmul.bf16.gmra.mxu0 %v2768
  %v4127 = vpop.f32.mrf.mxu0
  %v4128 = vadd.f32 0.0, %v4127
  %v4129 = vpop.f32.mrf.mxu0
  %v4130 = vadd.f32 0.0, %v4129
  %4131 = vmatmul.bf16.gmra.mxu0 %v2771
  %v4132 = vpop.f32.mrf.mxu0
  %v4133 = vadd.f32 0.0, %v4132
  %v4134 = vpop.f32.mrf.mxu0
  %v4135 = vadd.f32 0.0, %v4134
  %4136 = vmatmul.bf16.gmra.mxu0 %v2774
  %v4137 = vpop.f32.mrf.mxu0
  %v4138 = vadd.f32 0.0, %v4137
  %v4139 = vpop.f32.mrf.mxu0
  %v4140 = vadd.f32 0.0, %v4139
  %4141 = vmatmul.bf16.gmra.mxu0 %v2777
  %v4142 = vpop.f32.mrf.mxu0
  %v4143 = vadd.f32 0.0, %v4142
  %v4144 = vpop.f32.mrf.mxu0
  %v4145 = vadd.f32 0.0, %v4144
  %4146 = vmatmul.bf16.gmra.mxu0 %v2780
  %v4147 = vpop.f32.mrf.mxu0
  %v4148 = vadd.f32 0.0, %v4147
  %v4149 = vpop.f32.mrf.mxu0
  %v4150 = vadd.f32 0.0, %v4149
  %4151 = vmatmul.bf16.gmra.mxu0 %v2783
  %v4152 = vpop.f32.mrf.mxu0
  %v4153 = vadd.f32 0.0, %v4152
  %v4154 = vpop.f32.mrf.mxu0
  %v4155 = vadd.f32 0.0, %v4154
  %4156 = vmatmul.bf16.gmra.mxu0 %v2786
  %v4157 = vpop.f32.mrf.mxu0
  %v4158 = vadd.f32 0.0, %v4157
  %v4159 = vpop.f32.mrf.mxu0
  %v4160 = vadd.f32 0.0, %v4159
  %4161 = vmatmul.bf16.gmra.mxu0 %v2789
  %v4162 = vpop.f32.mrf.mxu0
  %v4163 = vadd.f32 0.0, %v4162
  %v4164 = vpop.f32.mrf.mxu0
  %v4165 = vadd.f32 0.0, %v4164
  %4166 = vmatmul.bf16.gmra.mxu0 %v2792
  %v4167 = vpop.f32.mrf.mxu0
  %v4168 = vadd.f32 0.0, %v4167
  %v4169 = vpop.f32.mrf.mxu0
  %v4170 = vadd.f32 0.0, %v4169
  %4171 = vmatmul.bf16.gmra.mxu0 %v2795
  %v4172 = vpop.f32.mrf.mxu0
  %v4173 = vadd.f32 0.0, %v4172
  %v4174 = vpop.f32.mrf.mxu0
  %v4175 = vadd.f32 0.0, %v4174
  %4176 = vmatmul.bf16.gmra.mxu0 %v2798
  %v4177 = vpop.f32.mrf.mxu0
  %v4178 = vadd.f32 0.0, %v4177
  %v4179 = vpop.f32.mrf.mxu0
  %v4180 = vadd.f32 0.0, %v4179
  %4181 = vmatmul.bf16.gmra.mxu0 %v2801
  %v4182 = vpop.f32.mrf.mxu0
  %v4183 = vadd.f32 0.0, %v4182
  %v4184 = vpop.f32.mrf.mxu0
  %v4185 = vadd.f32 0.0, %v4184
  %4186 = vmatmul.bf16.gmra.mxu0 %v2804
  %v4187 = vpop.f32.mrf.mxu0
  %v4188 = vadd.f32 0.0, %v4187
  %v4189 = vpop.f32.mrf.mxu0
  %v4190 = vadd.f32 0.0, %v4189
  %4191 = vmatmul.bf16.gmra.mxu0 %v2807
  %v4192 = vpop.f32.mrf.mxu0
  %v4193 = vadd.f32 0.0, %v4192
  %v4194 = vpop.f32.mrf.mxu0
  %v4195 = vadd.f32 0.0, %v4194
  %4196 = vmatmul.bf16.gmra.mxu0 %v2810
  %v4197 = vpop.f32.mrf.mxu0
  %v4198 = vadd.f32 0.0, %v4197
  %v4199 = vpop.f32.mrf.mxu0
  %v4200 = vadd.f32 0.0, %v4199
  %4201 = vmatmul.bf16.gmra.mxu0 %v2813
  %v4202 = vpop.f32.mrf.mxu0
  %v4203 = vadd.f32 0.0, %v4202
  %v4204 = vpop.f32.mrf.mxu0
  %v4205 = vadd.f32 0.0, %v4204
  %4206 = vmatmul.bf16.gmra.mxu0 %v2816
  %v4207 = vpop.f32.mrf.mxu0
  %v4208 = vadd.f32 0.0, %v4207
  %v4209 = vpop.f32.mrf.mxu0
  %v4210 = vadd.f32 0.0, %v4209
  %4211 = vmatmul.bf16.gmra.mxu0 %v2819
  %v4212 = vpop.f32.mrf.mxu0
  %v4213 = vadd.f32 0.0, %v4212
  %v4214 = vpop.f32.mrf.mxu0
  %v4215 = vadd.f32 0.0, %v4214
  %4216 = vmatmul.bf16.gmra.mxu0 %v2822
  %v4217 = vpop.f32.mrf.mxu0
  %v4218 = vadd.f32 0.0, %v4217
  %v4219 = vpop.f32.mrf.mxu0
  %v4220 = vadd.f32 0.0, %v4219
  %4221 = vmatmul.bf16.gmra.mxu0 %v2825
  %v4222 = vpop.f32.mrf.mxu0
  %v4223 = vadd.f32 0.0, %v4222
  %v4224 = vpop.f32.mrf.mxu0
  %v4225 = vadd.f32 0.0, %v4224
  %4226 = vmatmul.bf16.gmra.mxu0 %v2828
  %v4227 = vpop.f32.mrf.mxu0
  %v4228 = vadd.f32 0.0, %v4227
  %v4229 = vpop.f32.mrf.mxu0
  %v4230 = vadd.f32 0.0, %v4229
  %4231 = vmatmul.bf16.gmra.mxu0 %v2831
  %v4232 = vpop.f32.mrf.mxu0
  %v4233 = vadd.f32 0.0, %v4232
  %v4234 = vpop.f32.mrf.mxu0
  %v4235 = vadd.f32 0.0, %v4234
  %4236 = vmatmul.bf16.gmra.mxu0 %v2834
  %v4237 = vpop.f32.mrf.mxu0
  %v4238 = vadd.f32 0.0, %v4237
  %v4239 = vpop.f32.mrf.mxu0
  %v4240 = vadd.f32 0.0, %v4239
  %4241 = vmatmul.bf16.gmra.mxu0 %v2837
  %v4242 = vpop.f32.mrf.mxu0
  %v4243 = vadd.f32 0.0, %v4242
  %v4244 = vpop.f32.mrf.mxu0
  %v4245 = vadd.f32 0.0, %v4244
  %4246 = vmatmul.bf16.gmra.mxu0 %v2840
  %v4247 = vpop.f32.mrf.mxu0
  %v4248 = vadd.f32 0.0, %v4247
  %v4249 = vpop.f32.mrf.mxu0
  %v4250 = vadd.f32 0.0, %v4249
  %4251 = vmatmul.bf16.gmra.mxu0 %v2843
  %v4252 = vpop.f32.mrf.mxu0
  %v4253 = vadd.f32 0.0, %v4252
  %v4254 = vpop.f32.mrf.mxu0
  %v4255 = vadd.f32 0.0, %v4254
  %4256 = vmatmul.bf16.gmra.mxu0 %v2846
  %v4257 = vpop.f32.mrf.mxu0
  %v4258 = vadd.f32 0.0, %v4257
  %v4259 = vpop.f32.mrf.mxu0
  %v4260 = vadd.f32 0.0, %v4259
  %4261 = vmatmul.bf16.gmra.mxu0 %v2849
  %v4262 = vpop.f32.mrf.mxu0
  %v4263 = vadd.f32 0.0, %v4262
  %v4264 = vpop.f32.mrf.mxu0
  %v4265 = vadd.f32 0.0, %v4264
  %4266 = vmatmul.bf16.gmra.mxu0 %v2852
  %v4267 = vpop.f32.mrf.mxu0
  %v4268 = vadd.f32 0.0, %v4267
  %v4269 = vpop.f32.mrf.mxu0
  %v4270 = vadd.f32 0.0, %v4269
  %4271 = vmatmul.bf16.gmra.mxu0 %v2855
  %v4272 = vpop.f32.mrf.mxu0
  %v4273 = vadd.f32 0.0, %v4272
  %v4274 = vpop.f32.mrf.mxu0
  %v4275 = vadd.f32 0.0, %v4274
  %4276 = vmatmul.bf16.gmra.mxu0 %v2858
  %v4277 = vpop.f32.mrf.mxu0
  %v4278 = vadd.f32 0.0, %v4277
  %v4279 = vpop.f32.mrf.mxu0
  %v4280 = vadd.f32 0.0, %v4279
  %4281 = vmatmul.bf16.gmra.mxu0 %v2861
  %v4282 = vpop.f32.mrf.mxu0
  %v4283 = vadd.f32 0.0, %v4282
  %v4284 = vpop.f32.mrf.mxu0
  %v4285 = vadd.f32 0.0, %v4284
  %4286 = vmatmul.bf16.gmra.mxu0 %v2864
  %v4287 = vpop.f32.mrf.mxu0
  %v4288 = vadd.f32 0.0, %v4287
  %v4289 = vpop.f32.mrf.mxu0
  %v4290 = vadd.f32 0.0, %v4289
  %4291 = vmatmul.bf16.gmra.mxu0 %v2867
  %v4292 = vpop.f32.mrf.mxu0
  %v4293 = vadd.f32 0.0, %v4292
  %v4294 = vpop.f32.mrf.mxu0
  %v4295 = vadd.f32 0.0, %v4294
  %4296 = vmatmul.bf16.gmra.mxu0 %v2870
  %v4297 = vpop.f32.mrf.mxu0
  %v4298 = vadd.f32 0.0, %v4297
  %v4299 = vpop.f32.mrf.mxu0
  %v4300 = vadd.f32 0.0, %v4299
  %4301 = vmatmul.bf16.gmra.mxu0 %v2873
  %v4302 = vpop.f32.mrf.mxu0
  %v4303 = vadd.f32 0.0, %v4302
  %v4304 = vpop.f32.mrf.mxu0
  %v4305 = vadd.f32 0.0, %v4304
  %4306 = vmatmul.bf16.gmra.mxu0 %v2876
  %v4307 = vpop.f32.mrf.mxu0
  %v4308 = vadd.f32 0.0, %v4307
  %v4309 = vpop.f32.mrf.mxu0
  %v4310 = vadd.f32 0.0, %v4309
  %4311 = vmatmul.bf16.gmra.mxu0 %v2879
  %v4312 = vpop.f32.mrf.mxu0
  %v4313 = vadd.f32 0.0, %v4312
  %v4314 = vpop.f32.mrf.mxu0
  %v4315 = vadd.f32 0.0, %v4314
  %4316 = vmatmul.bf16.gmra.mxu0 %v2882
  %v4317 = vpop.f32.mrf.mxu0
  %v4318 = vadd.f32 0.0, %v4317
  %v4319 = vpop.f32.mrf.mxu0
  %v4320 = vadd.f32 0.0, %v4319
  %4321 = vmatmul.bf16.gmra.mxu0 %v2885
  %v4322 = vpop.f32.mrf.mxu0
  %v4323 = vadd.f32 0.0, %v4322
  %v4324 = vpop.f32.mrf.mxu0
  %v4325 = vadd.f32 0.0, %v4324
  %4326 = vmatmul.bf16.gmra.mxu0 %v2888
  %v4327 = vpop.f32.mrf.mxu0
  %v4328 = vadd.f32 0.0, %v4327
  %v4329 = vpop.f32.mrf.mxu0
  %v4330 = vadd.f32 0.0, %v4329
  %4331 = vmatmul.bf16.gmra.mxu0 %v2891
  %v4332 = vpop.f32.mrf.mxu0
  %v4333 = vadd.f32 0.0, %v4332
  %v4334 = vpop.f32.mrf.mxu0
  %v4335 = vadd.f32 0.0, %v4334
  %4336 = vmatmul.bf16.gmra.mxu0 %v2894
  %v4337 = vpop.f32.mrf.mxu0
  %v4338 = vadd.f32 0.0, %v4337
  %v4339 = vpop.f32.mrf.mxu0
  %v4340 = vadd.f32 0.0, %v4339
  %4341 = vmatmul.bf16.gmra.mxu0 %v2897
  %v4342 = vpop.f32.mrf.mxu0
  %v4343 = vadd.f32 0.0, %v4342
  %v4344 = vpop.f32.mrf.mxu0
  %v4345 = vadd.f32 0.0, %v4344
  %4346 = vmatmul.bf16.gmra.mxu0 %v2900
  %v4347 = vpop.f32.mrf.mxu0
  %v4348 = vadd.f32 0.0, %v4347
  %v4349 = vpop.f32.mrf.mxu0
  %v4350 = vadd.f32 0.0, %v4349
  %4351 = vmatmul.bf16.gmra.mxu0 %v2903
  %v4352 = vpop.f32.mrf.mxu0
  %v4353 = vadd.f32 0.0, %v4352
  %v4354 = vpop.f32.mrf.mxu0
  %v4355 = vadd.f32 0.0, %v4354
  %4356 = vmatmul.bf16.gmra.mxu0 %v2906
  %v4357 = vpop.f32.mrf.mxu0
  %v4358 = vadd.f32 0.0, %v4357
  %v4359 = vpop.f32.mrf.mxu0
  %v4360 = vadd.f32 0.0, %v4359
  %4361 = vmatmul.bf16.gmra.mxu0 %v2909
  %v4362 = vpop.f32.mrf.mxu0
  %v4363 = vadd.f32 0.0, %v4362
  %v4364 = vpop.f32.mrf.mxu0
  %v4365 = vadd.f32 0.0, %v4364
  %4366 = vdwg.mxu0
  %v4367 = vmax.f32 %v2928, %v2973
  %v4368 = vmax.f32 %v2930, %v2975
  %v4369 = vmax.f32 %v2933, %v2978
  %v4370 = vmax.f32 %v2935, %v2980
  %v4371 = vmax.f32 %v2938, %v2983
  %v4372 = vmax.f32 %v2940, %v2985
  %v4373 = vmax.f32 %v2943, %v2988
  %v4374 = vmax.f32 %v2945, %v2990
  %v4375 = vmax.f32 %v2948, %v2993
  %v4376 = vmax.f32 %v2950, %v2995
  %v4377 = vmax.f32 %v2953, %v2998
  %v4378 = vmax.f32 %v2955, %v3000
  %v4379 = vmax.f32 %v2958, %v3003
  %v4380 = vmax.f32 %v2960, %v3005
  %v4381 = vmax.f32 %v2963, %v3008
  %v4382 = vmax.f32 %v2965, %v3010
  %v4383 = vmax.f32 %v2968, %v3013
  %v4384 = vmax.f32 %v2970, %v3015
  %v4385 = vmax.f32 %v3108, %v3153
  %v4386 = vmax.f32 %v3110, %v3155
  %v4387 = vmax.f32 %v3113, %v3158
  %v4388 = vmax.f32 %v3115, %v3160
  %v4389 = vmax.f32 %v3118, %v3163
  %v4390 = vmax.f32 %v3120, %v3165
  %v4391 = vmax.f32 %v3123, %v3168
  %v4392 = vmax.f32 %v3125, %v3170
  %v4393 = vmax.f32 %v3128, %v3173
  %v4394 = vmax.f32 %v3130, %v3175
  %v4395 = vmax.f32 %v3133, %v3178
  %v4396 = vmax.f32 %v3135, %v3180
  %v4397 = vmax.f32 %v3138, %v3183
  %v4398 = vmax.f32 %v3140, %v3185
  %v4399 = vmax.f32 %v3143, %v3188
  %v4400 = vmax.f32 %v3145, %v3190
  %v4401 = vmax.f32 %v3148, %v3193
  %v4402 = vmax.f32 %v3150, %v3195
  %v4403 = vmax.f32 %v3288, %v3333
  %v4404 = vmax.f32 %v3290, %v3335
  %v4405 = vmax.f32 %v3293, %v3338
  %v4406 = vmax.f32 %v3295, %v3340
  %v4407 = vmax.f32 %v3298, %v3343
  %v4408 = vmax.f32 %v3300, %v3345
  %v4409 = vmax.f32 %v3303, %v3348
  %v4410 = vmax.f32 %v3305, %v3350
  %v4411 = vmax.f32 %v3308, %v3353
  %v4412 = vmax.f32 %v3310, %v3355
  %v4413 = vmax.f32 %v3313, %v3358
  %v4414 = vmax.f32 %v3315, %v3360
  %v4415 = vmax.f32 %v3318, %v3363
  %v4416 = vmax.f32 %v3320, %v3365
  %v4417 = vmax.f32 %v3323, %v3368
  %v4418 = vmax.f32 %v3325, %v3370
  %v4419 = vmax.f32 %v3328, %v3373
  %v4420 = vmax.f32 %v3330, %v3375
  %v4421 = vmax.f32 %v3468, %v3513
  %v4422 = vmax.f32 %v3470, %v3515
  %v4423 = vmax.f32 %v3473, %v3518
  %v4424 = vmax.f32 %v3475, %v3520
  %v4425 = vmax.f32 %v3478, %v3523
  %v4426 = vmax.f32 %v3480, %v3525
  %v4427 = vmax.f32 %v3483, %v3528
  %v4428 = vmax.f32 %v3485, %v3530
  %v4429 = vmax.f32 %v3488, %v3533
  %v4430 = vmax.f32 %v3490, %v3535
  %v4431 = vmax.f32 %v3493, %v3538
  %v4432 = vmax.f32 %v3495, %v3540
  %v4433 = vmax.f32 %v3498, %v3543
  %v4434 = vmax.f32 %v3500, %v3545
  %v4435 = vmax.f32 %v3503, %v3548
  %v4436 = vmax.f32 %v3505, %v3550
  %v4437 = vmax.f32 %v3508, %v3553
  %v4438 = vmax.f32 %v3510, %v3555
  %v4439 = vmax.f32 %v3648, %v3693
  %v4440 = vmax.f32 %v3650, %v3695
  %v4441 = vmax.f32 %v3653, %v3698
  %v4442 = vmax.f32 %v3655, %v3700
  %v4443 = vmax.f32 %v3658, %v3703
  %v4444 = vmax.f32 %v3660, %v3705
  %v4445 = vmax.f32 %v3663, %v3708
  %v4446 = vmax.f32 %v3665, %v3710
  %v4447 = vmax.f32 %v3668, %v3713
  %v4448 = vmax.f32 %v3670, %v3715
  %v4449 = vmax.f32 %v3673, %v3718
  %v4450 = vmax.f32 %v3675, %v3720
  %v4451 = vmax.f32 %v3678, %v3723
  %v4452 = vmax.f32 %v3680, %v3725
  %v4453 = vmax.f32 %v3683, %v3728
  %v4454 = vmax.f32 %v3685, %v3730
  %v4455 = vmax.f32 %v3688, %v3733
  %v4456 = vmax.f32 %v3690, %v3735
  %v4457 = vmax.f32 %v3828, %v3873
  %v4458 = vmax.f32 %v3830, %v3875
  %v4459 = vmax.f32 %v3833, %v3878
  %v4460 = vmax.f32 %v3835, %v3880
  %v4461 = vmax.f32 %v3838, %v3883
  %v4462 = vmax.f32 %v3840, %v3885
  %v4463 = vmax.f32 %v3843, %v3888
  %v4464 = vmax.f32 %v3845, %v3890
  %v4465 = vmax.f32 %v3848, %v3893
  %v4466 = vmax.f32 %v3850, %v3895
  %v4467 = vmax.f32 %v3853, %v3898
  %v4468 = vmax.f32 %v3855, %v3900
  %v4469 = vmax.f32 %v3858, %v3903
  %v4470 = vmax.f32 %v3860, %v3905
  %v4471 = vmax.f32 %v3863, %v3908
  %v4472 = vmax.f32 %v3865, %v3910
  %v4473 = vmax.f32 %v3868, %v3913
  %v4474 = vmax.f32 %v3870, %v3915
  %v4475 = vmax.f32 %v4008, %v4053
  %v4476 = vmax.f32 %v4010, %v4055
  %v4477 = vmax.f32 %v4013, %v4058
  %v4478 = vmax.f32 %v4015, %v4060
  %v4479 = vmax.f32 %v4018, %v4063
  %v4480 = vmax.f32 %v4020, %v4065
  %v4481 = vmax.f32 %v4023, %v4068
  %v4482 = vmax.f32 %v4025, %v4070
  %v4483 = vmax.f32 %v4028, %v4073
  %v4484 = vmax.f32 %v4030, %v4075
  %v4485 = vmax.f32 %v4033, %v4078
  %v4486 = vmax.f32 %v4035, %v4080
  %v4487 = vmax.f32 %v4038, %v4083
  %v4488 = vmax.f32 %v4040, %v4085
  %v4489 = vmax.f32 %v4043, %v4088
  %v4490 = vmax.f32 %v4045, %v4090
  %v4491 = vmax.f32 %v4048, %v4093
  %v4492 = vmax.f32 %v4050, %v4095
  %v4493 = vmax.f32 %v4188, %v4233
  %v4494 = vmax.f32 %v4190, %v4235
  %v4495 = vmax.f32 %v4193, %v4238
  %v4496 = vmax.f32 %v4195, %v4240
  %v4497 = vmax.f32 %v4198, %v4243
  %v4498 = vmax.f32 %v4200, %v4245
  %v4499 = vmax.f32 %v4203, %v4248
  %v4500 = vmax.f32 %v4205, %v4250
  %v4501 = vmax.f32 %v4208, %v4253
  %v4502 = vmax.f32 %v4210, %v4255
  %v4503 = vmax.f32 %v4213, %v4258
  %v4504 = vmax.f32 %v4215, %v4260
  %v4505 = vmax.f32 %v4218, %v4263
  %v4506 = vmax.f32 %v4220, %v4265
  %v4507 = vmax.f32 %v4223, %v4268
  %v4508 = vmax.f32 %v4225, %v4270
  %v4509 = vmax.f32 %v4228, %v4273
  %v4510 = vmax.f32 %v4230, %v4275
  %v4511 = vmax.f32 %v4367, %v3018
  %v4512 = vmax.f32 %v4368, %v3020
  %v4513 = vmax.f32 %v4369, %v3023
  %v4514 = vmax.f32 %v4370, %v3025
  %v4515 = vmax.f32 %v4371, %v3028
  %v4516 = vmax.f32 %v4372, %v3030
  %v4517 = vmax.f32 %v4373, %v3033
  %v4518 = vmax.f32 %v4374, %v3035
  %v4519 = vmax.f32 %v4375, %v3038
  %v4520 = vmax.f32 %v4376, %v3040
  %v4521 = vmax.f32 %v4377, %v3043
  %v4522 = vmax.f32 %v4378, %v3045
  %v4523 = vmax.f32 %v4379, %v3048
  %v4524 = vmax.f32 %v4380, %v3050
  %v4525 = vmax.f32 %v4381, %v3053
  %v4526 = vmax.f32 %v4382, %v3055
  %v4527 = vmax.f32 %v4383, %v3058
  %v4528 = vmax.f32 %v4384, %v3060
  %v4529 = vmax.f32 %v4385, %v3198
  %v4530 = vmax.f32 %v4386, %v3200
  %v4531 = vmax.f32 %v4387, %v3203
  %v4532 = vmax.f32 %v4388, %v3205
  %v4533 = vmax.f32 %v4389, %v3208
  %v4534 = vmax.f32 %v4390, %v3210
  %v4535 = vmax.f32 %v4391, %v3213
  %v4536 = vmax.f32 %v4392, %v3215
  %v4537 = vmax.f32 %v4393, %v3218
  %v4538 = vmax.f32 %v4394, %v3220
  %v4539 = vmax.f32 %v4395, %v3223
  %v4540 = vmax.f32 %v4396, %v3225
  %v4541 = vmax.f32 %v4397, %v3228
  %v4542 = vmax.f32 %v4398, %v3230
  %v4543 = vmax.f32 %v4399, %v3233
  %v4544 = vmax.f32 %v4400, %v3235
  %v4545 = vmax.f32 %v4401, %v3238
  %v4546 = vmax.f32 %v4402, %v3240
  %v4547 = vmax.f32 %v4403, %v3378
  %v4548 = vmax.f32 %v4404, %v3380
  %v4549 = vmax.f32 %v4405, %v3383
  %v4550 = vmax.f32 %v4406, %v3385
  %v4551 = vmax.f32 %v4407, %v3388
  %v4552 = vmax.f32 %v4408, %v3390
  %v4553 = vmax.f32 %v4409, %v3393
  %v4554 = vmax.f32 %v4410, %v3395
  %v4555 = vmax.f32 %v4411, %v3398
  %v4556 = vmax.f32 %v4412, %v3400
  %v4557 = vmax.f32 %v4413, %v3403
  %v4558 = vmax.f32 %v4414, %v3405
  %v4559 = vmax.f32 %v4415, %v3408
  %v4560 = vmax.f32 %v4416, %v3410
  %v4561 = vmax.f32 %v4417, %v3413
  %v4562 = vmax.f32 %v4418, %v3415
  %v4563 = vmax.f32 %v4419, %v3418
  %v4564 = vmax.f32 %v4420, %v3420
  %v4565 = vmax.f32 %v4421, %v3558
  %v4566 = vmax.f32 %v4422, %v3560
  %v4567 = vmax.f32 %v4423, %v3563
  %v4568 = vmax.f32 %v4424, %v3565
  %v4569 = vmax.f32 %v4425, %v3568
  %v4570 = vmax.f32 %v4426, %v3570
  %v4571 = vmax.f32 %v4427, %v3573
  %v4572 = vmax.f32 %v4428, %v3575
  %v4573 = vmax.f32 %v4429, %v3578
  %v4574 = vmax.f32 %v4430, %v3580
  %v4575 = vmax.f32 %v4431, %v3583
  %v4576 = vmax.f32 %v4432, %v3585
  %v4577 = vmax.f32 %v4433, %v3588
  %v4578 = vmax.f32 %v4434, %v3590
  %v4579 = vmax.f32 %v4435, %v3593
  %v4580 = vmax.f32 %v4436, %v3595
  %v4581 = vmax.f32 %v4437, %v3598
  %v4582 = vmax.f32 %v4438, %v3600
  %v4583 = vmax.f32 %v4439, %v3738
  %v4584 = vmax.f32 %v4440, %v3740
  %v4585 = vmax.f32 %v4441, %v3743
  %v4586 = vmax.f32 %v4442, %v3745
  %v4587 = vmax.f32 %v4443, %v3748
  %v4588 = vmax.f32 %v4444, %v3750
  %v4589 = vmax.f32 %v4445, %v3753
  %v4590 = vmax.f32 %v4446, %v3755
  %v4591 = vmax.f32 %v4447, %v3758
  %v4592 = vmax.f32 %v4448, %v3760
  %v4593 = vmax.f32 %v4449, %v3763
  %v4594 = vmax.f32 %v4450, %v3765
  %v4595 = vmax.f32 %v4451, %v3768
  %v4596 = vmax.f32 %v4452, %v3770
  %v4597 = vmax.f32 %v4453, %v3773
  %v4598 = vmax.f32 %v4454, %v3775
  %v4599 = vmax.f32 %v4455, %v3778
  %v4600 = vmax.f32 %v4456, %v3780
  %v4601 = vmax.f32 %v4457, %v3918
  %v4602 = vmax.f32 %v4458, %v3920
  %v4603 = vmax.f32 %v4459, %v3923
  %v4604 = vmax.f32 %v4460, %v3925
  %v4605 = vmax.f32 %v4461, %v3928
  %v4606 = vmax.f32 %v4462, %v3930
  %v4607 = vmax.f32 %v4463, %v3933
  %v4608 = vmax.f32 %v4464, %v3935
  %v4609 = vmax.f32 %v4465, %v3938
  %v4610 = vmax.f32 %v4466, %v3940
  %v4611 = vmax.f32 %v4467, %v3943
  %v4612 = vmax.f32 %v4468, %v3945
  %v4613 = vmax.f32 %v4469, %v3948
  %v4614 = vmax.f32 %v4470, %v3950
  %v4615 = vmax.f32 %v4471, %v3953
  %v4616 = vmax.f32 %v4472, %v3955
  %v4617 = vmax.f32 %v4473, %v3958
  %v4618 = vmax.f32 %v4474, %v3960
  %v4619 = vmax.f32 %v4475, %v4098
  %v4620 = vmax.f32 %v4476, %v4100
  %v4621 = vmax.f32 %v4477, %v4103
  %v4622 = vmax.f32 %v4478, %v4105
  %v4623 = vmax.f32 %v4479, %v4108
  %v4624 = vmax.f32 %v4480, %v4110
  %v4625 = vmax.f32 %v4481, %v4113
  %v4626 = vmax.f32 %v4482, %v4115
  %v4627 = vmax.f32 %v4483, %v4118
  %v4628 = vmax.f32 %v4484, %v4120
  %v4629 = vmax.f32 %v4485, %v4123
  %v4630 = vmax.f32 %v4486, %v4125
  %v4631 = vmax.f32 %v4487, %v4128
  %v4632 = vmax.f32 %v4488, %v4130
  %v4633 = vmax.f32 %v4489, %v4133
  %v4634 = vmax.f32 %v4490, %v4135
  %v4635 = vmax.f32 %v4491, %v4138
  %v4636 = vmax.f32 %v4492, %v4140
  %v4637 = vmax.f32 %v4493, %v4278
  %v4638 = vmax.f32 %v4494, %v4280
  %v4639 = vmax.f32 %v4495, %v4283
  %v4640 = vmax.f32 %v4496, %v4285
  %v4641 = vmax.f32 %v4497, %v4288
  %v4642 = vmax.f32 %v4498, %v4290
  %v4643 = vmax.f32 %v4499, %v4293
  %v4644 = vmax.f32 %v4500, %v4295
  %v4645 = vmax.f32 %v4501, %v4298
  %v4646 = vmax.f32 %v4502, %v4300
  %v4647 = vmax.f32 %v4503, %v4303
  %v4648 = vmax.f32 %v4504, %v4305
  %v4649 = vmax.f32 %v4505, %v4308
  %v4650 = vmax.f32 %v4506, %v4310
  %v4651 = vmax.f32 %v4507, %v4313
  %v4652 = vmax.f32 %v4508, %v4315
  %v4653 = vmax.f32 %v4509, %v4318
  %v4654 = vmax.f32 %v4510, %v4320
  %v4655 = vmax.f32 %v4511, %v3063
  %v4656 = vmax.f32 %v4512, %v3065
  %v4657 = vmax.f32 %v4513, %v3068
  %v4658 = vmax.f32 %v4514, %v3070
  %v4659 = vmax.f32 %v4515, %v3073
  %v4660 = vmax.f32 %v4516, %v3075
  %v4661 = vmax.f32 %v4517, %v3078
  %v4662 = vmax.f32 %v4518, %v3080
  %v4663 = vmax.f32 %v4519, %v3083
  %v4664 = vmax.f32 %v4520, %v3085
  %v4665 = vmax.f32 %v4521, %v3088
  %v4666 = vmax.f32 %v4522, %v3090
  %v4667 = vmax.f32 %v4523, %v3093
  %v4668 = vmax.f32 %v4524, %v3095
  %v4669 = vmax.f32 %v4525, %v3098
  %v4670 = vmax.f32 %v4526, %v3100
  %v4671 = vmax.f32 %v4527, %v3103
  %v4672 = vmax.f32 %v4528, %v3105
  %v4673 = vmax.f32 %v4529, %v3243
  %v4674 = vmax.f32 %v4530, %v3245
  %v4675 = vmax.f32 %v4531, %v3248
  %v4676 = vmax.f32 %v4532, %v3250
  %v4677 = vmax.f32 %v4533, %v3253
  %v4678 = vmax.f32 %v4534, %v3255
  %v4679 = vmax.f32 %v4535, %v3258
  %v4680 = vmax.f32 %v4536, %v3260
  %v4681 = vmax.f32 %v4537, %v3263
  %v4682 = vmax.f32 %v4538, %v3265
  %v4683 = vmax.f32 %v4539, %v3268
  %v4684 = vmax.f32 %v4540, %v3270
  %v4685 = vmax.f32 %v4541, %v3273
  %v4686 = vmax.f32 %v4542, %v3275
  %v4687 = vmax.f32 %v4543, %v3278
  %v4688 = vmax.f32 %v4544, %v3280
  %v4689 = vmax.f32 %v4545, %v3283
  %v4690 = vmax.f32 %v4546, %v3285
  %v4691 = vmax.f32 %v4547, %v3423
  %v4692 = vmax.f32 %v4548, %v3425
  %v4693 = vmax.f32 %v4549, %v3428
  %v4694 = vmax.f32 %v4550, %v3430
  %v4695 = vmax.f32 %v4551, %v3433
  %v4696 = vmax.f32 %v4552, %v3435
  %v4697 = vmax.f32 %v4553, %v3438
  %v4698 = vmax.f32 %v4554, %v3440
  %v4699 = vmax.f32 %v4555, %v3443
  %v4700 = vmax.f32 %v4556, %v3445
  %v4701 = vmax.f32 %v4557, %v3448
  %v4702 = vmax.f32 %v4558, %v3450
  %v4703 = vmax.f32 %v4559, %v3453
  %v4704 = vmax.f32 %v4560, %v3455
  %v4705 = vmax.f32 %v4561, %v3458
  %v4706 = vmax.f32 %v4562, %v3460
  %v4707 = vmax.f32 %v4563, %v3463
  %v4708 = vmax.f32 %v4564, %v3465
  %v4709 = vmax.f32 %v4565, %v3603
  %v4710 = vmax.f32 %v4566, %v3605
  %v4711 = vmax.f32 %v4567, %v3608
  %v4712 = vmax.f32 %v4568, %v3610
  %v4713 = vmax.f32 %v4569, %v3613
  %v4714 = vmax.f32 %v4570, %v3615
  %v4715 = vmax.f32 %v4571, %v3618
  %v4716 = vmax.f32 %v4572, %v3620
  %v4717 = vmax.f32 %v4573, %v3623
  %v4718 = vmax.f32 %v4574, %v3625
  %v4719 = vmax.f32 %v4575, %v3628
  %v4720 = vmax.f32 %v4576, %v3630
  %v4721 = vmax.f32 %v4577, %v3633
  %v4722 = vmax.f32 %v4578, %v3635
  %v4723 = vmax.f32 %v4579, %v3638
  %v4724 = vmax.f32 %v4580, %v3640
  %v4725 = vmax.f32 %v4581, %v3643
  %v4726 = vmax.f32 %v4582, %v3645
  %v4727 = vmax.f32 %v4583, %v3783
  %v4728 = vmax.f32 %v4584, %v3785
  %v4729 = vmax.f32 %v4585, %v3788
  %v4730 = vmax.f32 %v4586, %v3790
  %v4731 = vmax.f32 %v4587, %v3793
  %v4732 = vmax.f32 %v4588, %v3795
  %v4733 = vmax.f32 %v4589, %v3798
  %v4734 = vmax.f32 %v4590, %v3800
  %v4735 = vmax.f32 %v4591, %v3803
  %v4736 = vmax.f32 %v4592, %v3805
  %v4737 = vmax.f32 %v4593, %v3808
  %v4738 = vmax.f32 %v4594, %v3810
  %v4739 = vmax.f32 %v4595, %v3813
  %v4740 = vmax.f32 %v4596, %v3815
  %v4741 = vmax.f32 %v4597, %v3818
  %v4742 = vmax.f32 %v4598, %v3820
  %v4743 = vmax.f32 %v4599, %v3823
  %v4744 = vmax.f32 %v4600, %v3825
  %v4745 = vmax.f32 %v4601, %v3963
  %v4746 = vmax.f32 %v4602, %v3965
  %v4747 = vmax.f32 %v4603, %v3968
  %v4748 = vmax.f32 %v4604, %v3970
  %v4749 = vmax.f32 %v4605, %v3973
  %v4750 = vmax.f32 %v4606, %v3975
  %v4751 = vmax.f32 %v4607, %v3978
  %v4752 = vmax.f32 %v4608, %v3980
  %v4753 = vmax.f32 %v4609, %v3983
  %v4754 = vmax.f32 %v4610, %v3985
  %v4755 = vmax.f32 %v4611, %v3988
  %v4756 = vmax.f32 %v4612, %v3990
  %v4757 = vmax.f32 %v4613, %v3993
  %v4758 = vmax.f32 %v4614, %v3995
  %v4759 = vmax.f32 %v4615, %v3998
  %v4760 = vmax.f32 %v4616, %v4000
  %v4761 = vmax.f32 %v4617, %v4003
  %v4762 = vmax.f32 %v4618, %v4005
  %v4763 = vmax.f32 %v4619, %v4143
  %v4764 = vmax.f32 %v4620, %v4145
  %v4765 = vmax.f32 %v4621, %v4148
  %v4766 = vmax.f32 %v4622, %v4150
  %v4767 = vmax.f32 %v4623, %v4153
  %v4768 = vmax.f32 %v4624, %v4155
  %v4769 = vmax.f32 %v4625, %v4158
  %v4770 = vmax.f32 %v4626, %v4160
  %v4771 = vmax.f32 %v4627, %v4163
  %v4772 = vmax.f32 %v4628, %v4165
  %v4773 = vmax.f32 %v4629, %v4168
  %v4774 = vmax.f32 %v4630, %v4170
  %v4775 = vmax.f32 %v4631, %v4173
  %v4776 = vmax.f32 %v4632, %v4175
  %v4777 = vmax.f32 %v4633, %v4178
  %v4778 = vmax.f32 %v4634, %v4180
  %v4779 = vmax.f32 %v4635, %v4183
  %v4780 = vmax.f32 %v4636, %v4185
  %v4781 = vmax.f32 %v4637, %v4323
  %v4782 = vmax.f32 %v4638, %v4325
  %v4783 = vmax.f32 %v4639, %v4328
  %v4784 = vmax.f32 %v4640, %v4330
  %v4785 = vmax.f32 %v4641, %v4333
  %v4786 = vmax.f32 %v4642, %v4335
  %v4787 = vmax.f32 %v4643, %v4338
  %v4788 = vmax.f32 %v4644, %v4340
  %v4789 = vmax.f32 %v4645, %v4343
  %v4790 = vmax.f32 %v4646, %v4345
  %v4791 = vmax.f32 %v4647, %v4348
  %v4792 = vmax.f32 %v4648, %v4350
  %v4793 = vmax.f32 %v4649, %v4353
  %v4794 = vmax.f32 %v4650, %v4355
  %v4795 = vmax.f32 %v4651, %v4358
  %v4796 = vmax.f32 %v4652, %v4360
  %v4797 = vmax.f32 %v4653, %v4363
  %v4798 = vmax.f32 %v4654, %v4365
  %v4799 = vld [vmem:[%s2] sm:$0x1]
  %v4801 = vperm.slane %v4799, 0
  %v4803 = vadd.f32 %v4655, %v4801
  %v4804 = vadd.f32 %v4656, %v4801
  %v4805 = vadd.f32 %v4657, %v4801
  %v4806 = vadd.f32 %v4658, %v4801
  %v4807 = vadd.f32 %v4659, %v4801
  %v4808 = vadd.f32 %v4660, %v4801
  %v4809 = vadd.f32 %v4661, %v4801
  %v4810 = vadd.f32 %v4662, %v4801
  %v4811 = vadd.f32 %v4663, %v4801
  %v4812 = vadd.f32 %v4664, %v4801
  %v4813 = vadd.f32 %v4665, %v4801
  %v4814 = vadd.f32 %v4666, %v4801
  %v4815 = vadd.f32 %v4667, %v4801
  %v4816 = vadd.f32 %v4668, %v4801
  %v4817 = vadd.f32 %v4669, %v4801
  %v4818 = vadd.f32 %v4670, %v4801
  %v4819 = vadd.f32 %v4671, %v4801
  %v4820 = vadd.f32 %v4672, %v4801
  %v4821 = vadd.f32 %v4673, %v4801
  %v4822 = vadd.f32 %v4674, %v4801
  %v4823 = vadd.f32 %v4675, %v4801
  %v4824 = vadd.f32 %v4676, %v4801
  %v4825 = vadd.f32 %v4677, %v4801
  %v4826 = vadd.f32 %v4678, %v4801
  %v4827 = vadd.f32 %v4679, %v4801
  %v4828 = vadd.f32 %v4680, %v4801
  %v4829 = vadd.f32 %v4681, %v4801
  %v4830 = vadd.f32 %v4682, %v4801
  %v4831 = vadd.f32 %v4683, %v4801
  %v4832 = vadd.f32 %v4684, %v4801
  %v4833 = vadd.f32 %v4685, %v4801
  %v4834 = vadd.f32 %v4686, %v4801
  %v4835 = vadd.f32 %v4687, %v4801
  %v4836 = vadd.f32 %v4688, %v4801
  %v4837 = vadd.f32 %v4689, %v4801
  %v4838 = vadd.f32 %v4690, %v4801
  %v4839 = vadd.f32 %v4691, %v4801
  %v4840 = vadd.f32 %v4692, %v4801
  %v4841 = vadd.f32 %v4693, %v4801
  %v4842 = vadd.f32 %v4694, %v4801
  %v4843 = vadd.f32 %v4695, %v4801
  %v4844 = vadd.f32 %v4696, %v4801
  %v4845 = vadd.f32 %v4697, %v4801
  %v4846 = vadd.f32 %v4698, %v4801
  %v4847 = vadd.f32 %v4699, %v4801
  %v4848 = vadd.f32 %v4700, %v4801
  %v4849 = vadd.f32 %v4701, %v4801
  %v4850 = vadd.f32 %v4702, %v4801
  %v4851 = vadd.f32 %v4703, %v4801
  %v4852 = vadd.f32 %v4704, %v4801
  %v4853 = vadd.f32 %v4705, %v4801
  %v4854 = vadd.f32 %v4706, %v4801
  %v4855 = vadd.f32 %v4707, %v4801
  %v4856 = vadd.f32 %v4708, %v4801
  %v4857 = vadd.f32 %v4709, %v4801
  %v4858 = vadd.f32 %v4710, %v4801
  %v4859 = vadd.f32 %v4711, %v4801
  %v4860 = vadd.f32 %v4712, %v4801
  %v4861 = vadd.f32 %v4713, %v4801
  %v4862 = vadd.f32 %v4714, %v4801
  %v4863 = vadd.f32 %v4715, %v4801
  %v4864 = vadd.f32 %v4716, %v4801
  %v4865 = vadd.f32 %v4717, %v4801
  %v4866 = vadd.f32 %v4718, %v4801
  %v4867 = vadd.f32 %v4719, %v4801
  %v4868 = vadd.f32 %v4720, %v4801
  %v4869 = vadd.f32 %v4721, %v4801
  %v4870 = vadd.f32 %v4722, %v4801
  %v4871 = vadd.f32 %v4723, %v4801
  %v4872 = vadd.f32 %v4724, %v4801
  %v4873 = vadd.f32 %v4725, %v4801
  %v4874 = vadd.f32 %v4726, %v4801
  %v4875 = vadd.f32 %v4727, %v4801
  %v4876 = vadd.f32 %v4728, %v4801
  %v4877 = vadd.f32 %v4729, %v4801
  %v4878 = vadd.f32 %v4730, %v4801
  %v4879 = vadd.f32 %v4731, %v4801
  %v4880 = vadd.f32 %v4732, %v4801
  %v4881 = vadd.f32 %v4733, %v4801
  %v4882 = vadd.f32 %v4734, %v4801
  %v4883 = vadd.f32 %v4735, %v4801
  %v4884 = vadd.f32 %v4736, %v4801
  %v4885 = vadd.f32 %v4737, %v4801
  %v4886 = vadd.f32 %v4738, %v4801
  %v4887 = vadd.f32 %v4739, %v4801
  %v4888 = vadd.f32 %v4740, %v4801
  %v4889 = vadd.f32 %v4741, %v4801
  %v4890 = vadd.f32 %v4742, %v4801
  %v4891 = vadd.f32 %v4743, %v4801
  %v4892 = vadd.f32 %v4744, %v4801
  %v4893 = vadd.f32 %v4745, %v4801
  %v4894 = vadd.f32 %v4746, %v4801
  %v4895 = vadd.f32 %v4747, %v4801
  %v4896 = vadd.f32 %v4748, %v4801
  %v4897 = vadd.f32 %v4749, %v4801
  %v4898 = vadd.f32 %v4750, %v4801
  %v4899 = vadd.f32 %v4751, %v4801
  %v4900 = vadd.f32 %v4752, %v4801
  %v4901 = vadd.f32 %v4753, %v4801
  %v4902 = vadd.f32 %v4754, %v4801
  %v4903 = vadd.f32 %v4755, %v4801
  %v4904 = vadd.f32 %v4756, %v4801
  %v4905 = vadd.f32 %v4757, %v4801
  %v4906 = vadd.f32 %v4758, %v4801
  %v4907 = vadd.f32 %v4759, %v4801
  %v4908 = vadd.f32 %v4760, %v4801
  %v4909 = vadd.f32 %v4761, %v4801
  %v4910 = vadd.f32 %v4762, %v4801
  %v4911 = vadd.f32 %v4763, %v4801
  %v4912 = vadd.f32 %v4764, %v4801
  %v4913 = vadd.f32 %v4765, %v4801
  %v4914 = vadd.f32 %v4766, %v4801
  %v4915 = vadd.f32 %v4767, %v4801
  %v4916 = vadd.f32 %v4768, %v4801
  %v4917 = vadd.f32 %v4769, %v4801
  %v4918 = vadd.f32 %v4770, %v4801
  %v4919 = vadd.f32 %v4771, %v4801
  %v4920 = vadd.f32 %v4772, %v4801
  %v4921 = vadd.f32 %v4773, %v4801
  %v4922 = vadd.f32 %v4774, %v4801
  %v4923 = vadd.f32 %v4775, %v4801
  %v4924 = vadd.f32 %v4776, %v4801
  %v4925 = vadd.f32 %v4777, %v4801
  %v4926 = vadd.f32 %v4778, %v4801
  %v4927 = vadd.f32 %v4779, %v4801
  %v4928 = vadd.f32 %v4780, %v4801
  %v4929 = vadd.f32 %v4781, %v4801
  %v4930 = vadd.f32 %v4782, %v4801
  %v4931 = vadd.f32 %v4783, %v4801
  %v4932 = vadd.f32 %v4784, %v4801
  %v4933 = vadd.f32 %v4785, %v4801
  %v4934 = vadd.f32 %v4786, %v4801
  %v4935 = vadd.f32 %v4787, %v4801
  %v4936 = vadd.f32 %v4788, %v4801
  %v4937 = vadd.f32 %v4789, %v4801
  %v4938 = vadd.f32 %v4790, %v4801
  %v4939 = vadd.f32 %v4791, %v4801
  %v4940 = vadd.f32 %v4792, %v4801
  %v4941 = vadd.f32 %v4793, %v4801
  %v4942 = vadd.f32 %v4794, %v4801
  %v4943 = vadd.f32 %v4795, %v4801
  %v4944 = vadd.f32 %v4796, %v4801
  %v4945 = vadd.f32 %v4797, %v4801
  %v4946 = vadd.f32 %v4798, %v4801
  %v4947 = vmax.f32 %v4803, 0.0
  %v4948 = vmax.f32 %v4804, 0.0
  %v4949 = vmax.f32 %v4805, 0.0
  %v4950 = vmax.f32 %v4806, 0.0
  %v4951 = vmax.f32 %v4807, 0.0
  %v4952 = vmax.f32 %v4808, 0.0
  %v4953 = vmax.f32 %v4809, 0.0
  %v4954 = vmax.f32 %v4810, 0.0
  %v4955 = vmax.f32 %v4811, 0.0
  %v4956 = vmax.f32 %v4812, 0.0
  %v4957 = vmax.f32 %v4813, 0.0
  %v4958 = vmax.f32 %v4814, 0.0
  %v4959 = vmax.f32 %v4815, 0.0
  %v4960 = vmax.f32 %v4816, 0.0
  %v4961 = vmax.f32 %v4817, 0.0
  %v4962 = vmax.f32 %v4818, 0.0
  %v4963 = vmax.f32 %v4819, 0.0
  %v4964 = vmax.f32 %v4820, 0.0
  %v4965 = vmax.f32 %v4821, 0.0
  %v4966 = vmax.f32 %v4822, 0.0
  %v4967 = vmax.f32 %v4823, 0.0
  %v4968 = vmax.f32 %v4824, 0.0
  %v4969 = vmax.f32 %v4825, 0.0
  %v4970 = vmax.f32 %v4826, 0.0
  %v4971 = vmax.f32 %v4827, 0.0
  %v4972 = vmax.f32 %v4828, 0.0
  %v4973 = vmax.f32 %v4829, 0.0
  %v4974 = vmax.f32 %v4830, 0.0
  %v4975 = vmax.f32 %v4831, 0.0
  %v4976 = vmax.f32 %v4832, 0.0
  %v4977 = vmax.f32 %v4833, 0.0
  %v4978 = vmax.f32 %v4834, 0.0
  %v4979 = vmax.f32 %v4835, 0.0
  %v4980 = vmax.f32 %v4836, 0.0
  %v4981 = vmax.f32 %v4837, 0.0
  %v4982 = vmax.f32 %v4838, 0.0
  %v4983 = vmax.f32 %v4839, 0.0
  %v4984 = vmax.f32 %v4840, 0.0
  %v4985 = vmax.f32 %v4841, 0.0
  %v4986 = vmax.f32 %v4842, 0.0
  %v4987 = vmax.f32 %v4843, 0.0
  %v4988 = vmax.f32 %v4844, 0.0
  %v4989 = vmax.f32 %v4845, 0.0
  %v4990 = vmax.f32 %v4846, 0.0
  %v4991 = vmax.f32 %v4847, 0.0
  %v4992 = vmax.f32 %v4848, 0.0
  %v4993 = vmax.f32 %v4849, 0.0
  %v4994 = vmax.f32 %v4850, 0.0
  %v4995 = vmax.f32 %v4851, 0.0
  %v4996 = vmax.f32 %v4852, 0.0
  %v4997 = vmax.f32 %v4853, 0.0
  %v4998 = vmax.f32 %v4854, 0.0
  %v4999 = vmax.f32 %v4855, 0.0
  %v5000 = vmax.f32 %v4856, 0.0
  %v5001 = vmax.f32 %v4857, 0.0
  %v5002 = vmax.f32 %v4858, 0.0
  %v5003 = vmax.f32 %v4859, 0.0
  %v5004 = vmax.f32 %v4860, 0.0
  %v5005 = vmax.f32 %v4861, 0.0
  %v5006 = vmax.f32 %v4862, 0.0
  %v5007 = vmax.f32 %v4863, 0.0
  %v5008 = vmax.f32 %v4864, 0.0
  %v5009 = vmax.f32 %v4865, 0.0
  %v5010 = vmax.f32 %v4866, 0.0
  %v5011 = vmax.f32 %v4867, 0.0
  %v5012 = vmax.f32 %v4868, 0.0
  %v5013 = vmax.f32 %v4869, 0.0
  %v5014 = vmax.f32 %v4870, 0.0
  %v5015 = vmax.f32 %v4871, 0.0
  %v5016 = vmax.f32 %v4872, 0.0
  %v5017 = vmax.f32 %v4873, 0.0
  %v5018 = vmax.f32 %v4874, 0.0
  %v5019 = vmax.f32 %v4875, 0.0
  %v5020 = vmax.f32 %v4876, 0.0
  %v5021 = vmax.f32 %v4877, 0.0
  %v5022 = vmax.f32 %v4878, 0.0
  %v5023 = vmax.f32 %v4879, 0.0
  %v5024 = vmax.f32 %v4880, 0.0
  %v5025 = vmax.f32 %v4881, 0.0
  %v5026 = vmax.f32 %v4882, 0.0
  %v5027 = vmax.f32 %v4883, 0.0
  %v5028 = vmax.f32 %v4884, 0.0
  %v5029 = vmax.f32 %v4885, 0.0
  %v5030 = vmax.f32 %v4886, 0.0
  %v5031 = vmax.f32 %v4887, 0.0
  %v5032 = vmax.f32 %v4888, 0.0
  %v5033 = vmax.f32 %v4889, 0.0
  %v5034 = vmax.f32 %v4890, 0.0
  %v5035 = vmax.f32 %v4891, 0.0
  %v5036 = vmax.f32 %v4892, 0.0
  %v5037 = vmax.f32 %v4893, 0.0
  %v5038 = vmax.f32 %v4894, 0.0
  %v5039 = vmax.f32 %v4895, 0.0
  %v5040 = vmax.f32 %v4896, 0.0
  %v5041 = vmax.f32 %v4897, 0.0
  %v5042 = vmax.f32 %v4898, 0.0
  %v5043 = vmax.f32 %v4899, 0.0
  %v5044 = vmax.f32 %v4900, 0.0
  %v5045 = vmax.f32 %v4901, 0.0
  %v5046 = vmax.f32 %v4902, 0.0
  %v5047 = vmax.f32 %v4903, 0.0
  %v5048 = vmax.f32 %v4904, 0.0
  %v5049 = vmax.f32 %v4905, 0.0
  %v5050 = vmax.f32 %v4906, 0.0
  %v5051 = vmax.f32 %v4907, 0.0
  %v5052 = vmax.f32 %v4908, 0.0
  %v5053 = vmax.f32 %v4909, 0.0
  %v5054 = vmax.f32 %v4910, 0.0
  %v5055 = vmax.f32 %v4911, 0.0
  %v5056 = vmax.f32 %v4912, 0.0
  %v5057 = vmax.f32 %v4913, 0.0
  %v5058 = vmax.f32 %v4914, 0.0
  %v5059 = vmax.f32 %v4915, 0.0
  %v5060 = vmax.f32 %v4916, 0.0
  %v5061 = vmax.f32 %v4917, 0.0
  %v5062 = vmax.f32 %v4918, 0.0
  %v5063 = vmax.f32 %v4919, 0.0
  %v5064 = vmax.f32 %v4920, 0.0
  %v5065 = vmax.f32 %v4921, 0.0
  %v5066 = vmax.f32 %v4922, 0.0
  %v5067 = vmax.f32 %v4923, 0.0
  %v5068 = vmax.f32 %v4924, 0.0
  %v5069 = vmax.f32 %v4925, 0.0
  %v5070 = vmax.f32 %v4926, 0.0
  %v5071 = vmax.f32 %v4927, 0.0
  %v5072 = vmax.f32 %v4928, 0.0
  %v5073 = vmax.f32 %v4929, 0.0
  %v5074 = vmax.f32 %v4930, 0.0
  %v5075 = vmax.f32 %v4931, 0.0
  %v5076 = vmax.f32 %v4932, 0.0
  %v5077 = vmax.f32 %v4933, 0.0
  %v5078 = vmax.f32 %v4934, 0.0
  %v5079 = vmax.f32 %v4935, 0.0
  %v5080 = vmax.f32 %v4936, 0.0
  %v5081 = vmax.f32 %v4937, 0.0
  %v5082 = vmax.f32 %v4938, 0.0
  %v5083 = vmax.f32 %v4939, 0.0
  %v5084 = vmax.f32 %v4940, 0.0
  %v5085 = vmax.f32 %v4941, 0.0
  %v5086 = vmax.f32 %v4942, 0.0
  %v5087 = vmax.f32 %v4943, 0.0
  %v5088 = vmax.f32 %v4944, 0.0
  %v5089 = vmax.f32 %v4945, 0.0
  %v5090 = vmax.f32 %v4946, 0.0
  %v5091 = vpack.c.bf16 %v4947, %v4947
  %v5092 = vpack.c.bf16 %v4948, %v4948
  %v5093 = vpack.c.bf16 %v4949, %v4949
  %v5094 = vpack.c.bf16 %v4950, %v4950
  %v5095 = vpack.c.bf16 %v4951, %v4951
  %v5096 = vpack.c.bf16 %v4952, %v4952
  %v5097 = vpack.c.bf16 %v4953, %v4953
  %v5098 = vpack.c.bf16 %v4954, %v4954
  %v5099 = vpack.c.bf16 %v4955, %v4955
  %v5100 = vpack.c.bf16 %v4956, %v4956
  %v5101 = vpack.c.bf16 %v4957, %v4957
  %v5102 = vpack.c.bf16 %v4958, %v4958
  %v5103 = vpack.c.bf16 %v4959, %v4959
  %v5104 = vpack.c.bf16 %v4960, %v4960
  %v5105 = vpack.c.bf16 %v4961, %v4961
  %v5106 = vpack.c.bf16 %v4962, %v4962
  %v5107 = vpack.c.bf16 %v4963, %v4963
  %v5108 = vpack.c.bf16 %v4964, %v4964
  %v5109 = vpack.c.bf16 %v4965, %v4965
  %v5110 = vpack.c.bf16 %v4966, %v4966
  %v5111 = vpack.c.bf16 %v4967, %v4967
  %v5112 = vpack.c.bf16 %v4968, %v4968
  %v5113 = vpack.c.bf16 %v4969, %v4969
  %v5114 = vpack.c.bf16 %v4970, %v4970
  %v5115 = vpack.c.bf16 %v4971, %v4971
  %v5116 = vpack.c.bf16 %v4972, %v4972
  %v5117 = vpack.c.bf16 %v4973, %v4973
  %v5118 = vpack.c.bf16 %v4974, %v4974
  %v5119 = vpack.c.bf16 %v4975, %v4975
  %v5120 = vpack.c.bf16 %v4976, %v4976
  %v5121 = vpack.c.bf16 %v4977, %v4977
  %v5122 = vpack.c.bf16 %v4978, %v4978
  %v5123 = vpack.c.bf16 %v4979, %v4979
  %v5124 = vpack.c.bf16 %v4980, %v4980
  %v5125 = vpack.c.bf16 %v4981, %v4981
  %v5126 = vpack.c.bf16 %v4982, %v4982
  %v5127 = vpack.c.bf16 %v4983, %v4983
  %v5128 = vpack.c.bf16 %v4984, %v4984
  %v5129 = vpack.c.bf16 %v4985, %v4985
  %v5130 = vpack.c.bf16 %v4986, %v4986
  %v5131 = vpack.c.bf16 %v4987, %v4987
  %v5132 = vpack.c.bf16 %v4988, %v4988
  %v5133 = vpack.c.bf16 %v4989, %v4989
  %v5134 = vpack.c.bf16 %v4990, %v4990
  %v5135 = vpack.c.bf16 %v4991, %v4991
  %v5136 = vpack.c.bf16 %v4992, %v4992
  %v5137 = vpack.c.bf16 %v4993, %v4993
  %v5138 = vpack.c.bf16 %v4994, %v4994
  %v5139 = vpack.c.bf16 %v4995, %v4995
  %v5140 = vpack.c.bf16 %v4996, %v4996
  %v5141 = vpack.c.bf16 %v4997, %v4997
  %v5142 = vpack.c.bf16 %v4998, %v4998
  %v5143 = vpack.c.bf16 %v4999, %v4999
  %v5144 = vpack.c.bf16 %v5000, %v5000
  %v5145 = vpack.c.bf16 %v5001, %v5001
  %v5146 = vpack.c.bf16 %v5002, %v5002
  %v5147 = vpack.c.bf16 %v5003, %v5003
  %v5148 = vpack.c.bf16 %v5004, %v5004
  %v5149 = vpack.c.bf16 %v5005, %v5005
  %v5150 = vpack.c.bf16 %v5006, %v5006
  %v5151 = vpack.c.bf16 %v5007, %v5007
  %v5152 = vpack.c.bf16 %v5008, %v5008
  %v5153 = vpack.c.bf16 %v5009, %v5009
  %v5154 = vpack.c.bf16 %v5010, %v5010
  %v5155 = vpack.c.bf16 %v5011, %v5011
  %v5156 = vpack.c.bf16 %v5012, %v5012
  %v5157 = vpack.c.bf16 %v5013, %v5013
  %v5158 = vpack.c.bf16 %v5014, %v5014
  %v5159 = vpack.c.bf16 %v5015, %v5015
  %v5160 = vpack.c.bf16 %v5016, %v5016
  %v5161 = vpack.c.bf16 %v5017, %v5017
  %v5162 = vpack.c.bf16 %v5018, %v5018
  %v5163 = vpack.c.bf16 %v5019, %v5019
  %v5164 = vpack.c.bf16 %v5020, %v5020
  %v5165 = vpack.c.bf16 %v5021, %v5021
  %v5166 = vpack.c.bf16 %v5022, %v5022
  %v5167 = vpack.c.bf16 %v5023, %v5023
  %v5168 = vpack.c.bf16 %v5024, %v5024
  %v5169 = vpack.c.bf16 %v5025, %v5025
  %v5170 = vpack.c.bf16 %v5026, %v5026
  %v5171 = vpack.c.bf16 %v5027, %v5027
  %v5172 = vpack.c.bf16 %v5028, %v5028
  %v5173 = vpack.c.bf16 %v5029, %v5029
  %v5174 = vpack.c.bf16 %v5030, %v5030
  %v5175 = vpack.c.bf16 %v5031, %v5031
  %v5176 = vpack.c.bf16 %v5032, %v5032
  %v5177 = vpack.c.bf16 %v5033, %v5033
  %v5178 = vpack.c.bf16 %v5034, %v5034
  %v5179 = vpack.c.bf16 %v5035, %v5035
  %v5180 = vpack.c.bf16 %v5036, %v5036
  %v5181 = vpack.c.bf16 %v5037, %v5037
  %v5182 = vpack.c.bf16 %v5038, %v5038
  %v5183 = vpack.c.bf16 %v5039, %v5039
  %v5184 = vpack.c.bf16 %v5040, %v5040
  %v5185 = vpack.c.bf16 %v5041, %v5041
  %v5186 = vpack.c.bf16 %v5042, %v5042
  %v5187 = vpack.c.bf16 %v5043, %v5043
  %v5188 = vpack.c.bf16 %v5044, %v5044
  %v5189 = vpack.c.bf16 %v5045, %v5045
  %v5190 = vpack.c.bf16 %v5046, %v5046
  %v5191 = vpack.c.bf16 %v5047, %v5047
  %v5192 = vpack.c.bf16 %v5048, %v5048
  %v5193 = vpack.c.bf16 %v5049, %v5049
  %v5194 = vpack.c.bf16 %v5050, %v5050
  %v5195 = vpack.c.bf16 %v5051, %v5051
  %v5196 = vpack.c.bf16 %v5052, %v5052
  %v5197 = vpack.c.bf16 %v5053, %v5053
  %v5198 = vpack.c.bf16 %v5054, %v5054
  %v5199 = vpack.c.bf16 %v5055, %v5055
  %v5200 = vpack.c.bf16 %v5056, %v5056
  %v5201 = vpack.c.bf16 %v5057, %v5057
  %v5202 = vpack.c.bf16 %v5058, %v5058
  %v5203 = vpack.c.bf16 %v5059, %v5059
  %v5204 = vpack.c.bf16 %v5060, %v5060
  %v5205 = vpack.c.bf16 %v5061, %v5061
  %v5206 = vpack.c.bf16 %v5062, %v5062
  %v5207 = vpack.c.bf16 %v5063, %v5063
  %v5208 = vpack.c.bf16 %v5064, %v5064
  %v5209 = vpack.c.bf16 %v5065, %v5065
  %v5210 = vpack.c.bf16 %v5066, %v5066
  %v5211 = vpack.c.bf16 %v5067, %v5067
  %v5212 = vpack.c.bf16 %v5068, %v5068
  %v5213 = vpack.c.bf16 %v5069, %v5069
  %v5214 = vpack.c.bf16 %v5070, %v5070
  %v5215 = vpack.c.bf16 %v5071, %v5071
  %v5216 = vpack.c.bf16 %v5072, %v5072
  %v5217 = vpack.c.bf16 %v5073, %v5073
  %v5218 = vpack.c.bf16 %v5074, %v5074
  %v5219 = vpack.c.bf16 %v5075, %v5075
  %v5220 = vpack.c.bf16 %v5076, %v5076
  %v5221 = vpack.c.bf16 %v5077, %v5077
  %v5222 = vpack.c.bf16 %v5078, %v5078
  %v5223 = vpack.c.bf16 %v5079, %v5079
  %v5224 = vpack.c.bf16 %v5080, %v5080
  %v5225 = vpack.c.bf16 %v5081, %v5081
  %v5226 = vpack.c.bf16 %v5082, %v5082
  %v5227 = vpack.c.bf16 %v5083, %v5083
  %v5228 = vpack.c.bf16 %v5084, %v5084
  %v5229 = vpack.c.bf16 %v5085, %v5085
  %v5230 = vpack.c.bf16 %v5086, %v5086
  %v5231 = vpack.c.bf16 %v5087, %v5087
  %v5232 = vpack.c.bf16 %v5088, %v5088
  %v5233 = vpack.c.bf16 %v5089, %v5089
  %v5234 = vpack.c.bf16 %v5090, %v5090
  %vm5235 = vcmask 76800
  %5236 = vst.msk [vmem:[%s3] sm:$0xf] %vm5235, %v5091
  %5237 = vst.msk [vmem:[%s3 + $0x4] sm:$0xf] %vm5235, %v5092
  %5238 = vst.msk [vmem:[%s3 + $0x8] sm:$0xf] %vm5235, %v5093
  %5239 = vst.msk [vmem:[%s3 + $0xc] sm:$0xf] %vm5235, %v5094
  %5240 = vst.msk [vmem:[%s3 + $0x10] sm:$0xf] %vm5235, %v5095
  %5241 = vst.msk [vmem:[%s3 + $0x14] sm:$0xf] %vm5235, %v5096
  %5242 = vst.msk [vmem:[%s3 + $0x18] sm:$0xf] %vm5235, %v5097
  %5243 = vst.msk [vmem:[%s3 + $0x1c] sm:$0xf] %vm5235, %v5098
  %5244 = vst.msk [vmem:[%s3 + $0x20] sm:$0xf] %vm5235, %v5099
  %5245 = vst.msk [vmem:[%s3 + $0x24] sm:$0xf] %vm5235, %v5100
  %5246 = vst.msk [vmem:[%s3 + $0x28] sm:$0xf] %vm5235, %v5101
  %5247 = vst.msk [vmem:[%s3 + $0x2c] sm:$0xf] %vm5235, %v5102
  %5248 = vst.msk [vmem:[%s3 + $0x30] sm:$0xf] %vm5235, %v5103
  %5249 = vst.msk [vmem:[%s3 + $0x34] sm:$0xf] %vm5235, %v5104
  %5250 = vst.msk [vmem:[%s3 + $0x38] sm:$0xf] %vm5235, %v5105
  %5251 = vst.msk [vmem:[%s3 + $0x3c] sm:$0xf] %vm5235, %v5106
  %5252 = vst.msk [vmem:[%s3 + $0x40] sm:$0xf] %vm5235, %v5107
  %5253 = vst.msk [vmem:[%s3 + $0x44] sm:$0xf] %vm5235, %v5108
  %5254 = vst.msk [vmem:[%s3 + $0x48] sm:$0xf] %vm5235, %v5109
  %5255 = vst.msk [vmem:[%s3 + $0x4c] sm:$0xf] %vm5235, %v5110
  %5256 = vst.msk [vmem:[%s3 + $0x50] sm:$0xf] %vm5235, %v5111
  %5257 = vst.msk [vmem:[%s3 + $0x54] sm:$0xf] %vm5235, %v5112
  %5258 = vst.msk [vmem:[%s3 + $0x58] sm:$0xf] %vm5235, %v5113
  %5259 = vst.msk [vmem:[%s3 + $0x5c] sm:$0xf] %vm5235, %v5114
  %5260 = vst.msk [vmem:[%s3 + $0x60] sm:$0xf] %vm5235, %v5115
  %5261 = vst.msk [vmem:[%s3 + $0x64] sm:$0xf] %vm5235, %v5116
  %5262 = vst.msk [vmem:[%s3 + $0x68] sm:$0xf] %vm5235, %v5117
  %5263 = vst.msk [vmem:[%s3 + $0x6c] sm:$0xf] %vm5235, %v5118
  %5264 = vst.msk [vmem:[%s3 + $0x70] sm:$0xf] %vm5235, %v5119
  %5265 = vst.msk [vmem:[%s3 + $0x74] sm:$0xf] %vm5235, %v5120
  %5266 = vst.msk [vmem:[%s3 + $0x78] sm:$0xf] %vm5235, %v5121
  %5267 = vst.msk [vmem:[%s3 + $0x7c] sm:$0xf] %vm5235, %v5122
  %5268 = vst.msk [vmem:[%s3 + $0x80] sm:$0xf] %vm5235, %v5123
  %5269 = vst.msk [vmem:[%s3 + $0x84] sm:$0xf] %vm5235, %v5124
  %5270 = vst.msk [vmem:[%s3 + $0x88] sm:$0xf] %vm5235, %v5125
  %5271 = vst.msk [vmem:[%s3 + $0x8c] sm:$0xf] %vm5235, %v5126
  %5272 = vst.msk [vmem:[%s3 + $0x90] sm:$0xf] %vm5235, %v5127
  %5273 = vst.msk [vmem:[%s3 + $0x94] sm:$0xf] %vm5235, %v5128
  %5274 = vst.msk [vmem:[%s3 + $0x98] sm:$0xf] %vm5235, %v5129
  %5275 = vst.msk [vmem:[%s3 + $0x9c] sm:$0xf] %vm5235, %v5130
  %5276 = vst.msk [vmem:[%s3 + $0xa0] sm:$0xf] %vm5235, %v5131
  %5277 = vst.msk [vmem:[%s3 + $0xa4] sm:$0xf] %vm5235, %v5132
  %5278 = vst.msk [vmem:[%s3 + $0xa8] sm:$0xf] %vm5235, %v5133
  %5279 = vst.msk [vmem:[%s3 + $0xac] sm:$0xf] %vm5235, %v5134
  %5280 = vst.msk [vmem:[%s3 + $0xb0] sm:$0xf] %vm5235, %v5135
  %5281 = vst.msk [vmem:[%s3 + $0xb4] sm:$0xf] %vm5235, %v5136
  %5282 = vst.msk [vmem:[%s3 + $0xb8] sm:$0xf] %vm5235, %v5137
  %5283 = vst.msk [vmem:[%s3 + $0xbc] sm:$0xf] %vm5235, %v5138
  %5284 = vst.msk [vmem:[%s3 + $0xc0] sm:$0xf] %vm5235, %v5139
  %5285 = vst.msk [vmem:[%s3 + $0xc4] sm:$0xf] %vm5235, %v5140
  %5286 = vst.msk [vmem:[%s3 + $0xc8] sm:$0xf] %vm5235, %v5141
  %5287 = vst.msk [vmem:[%s3 + $0xcc] sm:$0xf] %vm5235, %v5142
  %5288 = vst.msk [vmem:[%s3 + $0xd0] sm:$0xf] %vm5235, %v5143
  %5289 = vst.msk [vmem:[%s3 + $0xd4] sm:$0xf] %vm5235, %v5144
  %5290 = vst.msk [vmem:[%s3 + $0xd8] sm:$0xf] %vm5235, %v5145
  %5291 = vst.msk [vmem:[%s3 + $0xdc] sm:$0xf] %vm5235, %v5146
  %5292 = vst.msk [vmem:[%s3 + $0xe0] sm:$0xf] %vm5235, %v5147
  %5293 = vst.msk [vmem:[%s3 + $0xe4] sm:$0xf] %vm5235, %v5148
  %5294 = vst.msk [vmem:[%s3 + $0xe8] sm:$0xf] %vm5235, %v5149
  %5295 = vst.msk [vmem:[%s3 + $0xec] sm:$0xf] %vm5235, %v5150
  %5296 = vst.msk [vmem:[%s3 + $0xf0] sm:$0xf] %vm5235, %v5151
  %5297 = vst.msk [vmem:[%s3 + $0xf4] sm:$0xf] %vm5235, %v5152
  %5298 = vst.msk [vmem:[%s3 + $0xf8] sm:$0xf] %vm5235, %v5153
  %5299 = vst.msk [vmem:[%s3 + $0xfc] sm:$0xf] %vm5235, %v5154
  %5300 = vst.msk [vmem:[%s3 + $0x100] sm:$0xf] %vm5235, %v5155
  %5301 = vst.msk [vmem:[%s3 + $0x104] sm:$0xf] %vm5235, %v5156
  %5302 = vst.msk [vmem:[%s3 + $0x108] sm:$0xf] %vm5235, %v5157
  %5303 = vst.msk [vmem:[%s3 + $0x10c] sm:$0xf] %vm5235, %v5158
  %5304 = vst.msk [vmem:[%s3 + $0x110] sm:$0xf] %vm5235, %v5159
  %5305 = vst.msk [vmem:[%s3 + $0x114] sm:$0xf] %vm5235, %v5160
  %5306 = vst.msk [vmem:[%s3 + $0x118] sm:$0xf] %vm5235, %v5161
  %5307 = vst.msk [vmem:[%s3 + $0x11c] sm:$0xf] %vm5235, %v5162
  %5308 = vst.msk [vmem:[%s3 + $0x120] sm:$0xf] %vm5235, %v5163
  %5309 = vst.msk [vmem:[%s3 + $0x124] sm:$0xf] %vm5235, %v5164
  %5310 = vst.msk [vmem:[%s3 + $0x128] sm:$0xf] %vm5235, %v5165
  %5311 = vst.msk [vmem:[%s3 + $0x12c] sm:$0xf] %vm5235, %v5166
  %5312 = vst.msk [vmem:[%s3 + $0x130] sm:$0xf] %vm5235, %v5167
  %5313 = vst.msk [vmem:[%s3 + $0x134] sm:$0xf] %vm5235, %v5168
  %5314 = vst.msk [vmem:[%s3 + $0x138] sm:$0xf] %vm5235, %v5169
  %5315 = vst.msk [vmem:[%s3 + $0x13c] sm:$0xf] %vm5235, %v5170
  %5316 = vst.msk [vmem:[%s3 + $0x140] sm:$0xf] %vm5235, %v5171
  %5317 = vst.msk [vmem:[%s3 + $0x144] sm:$0xf] %vm5235, %v5172
  %5318 = vst.msk [vmem:[%s3 + $0x148] sm:$0xf] %vm5235, %v5173
  %5319 = vst.msk [vmem:[%s3 + $0x14c] sm:$0xf] %vm5235, %v5174
  %5320 = vst.msk [vmem:[%s3 + $0x150] sm:$0xf] %vm5235, %v5175
  %5321 = vst.msk [vmem:[%s3 + $0x154] sm:$0xf] %vm5235, %v5176
  %5322 = vst.msk [vmem:[%s3 + $0x158] sm:$0xf] %vm5235, %v5177
  %5323 = vst.msk [vmem:[%s3 + $0x15c] sm:$0xf] %vm5235, %v5178
  %5324 = vst.msk [vmem:[%s3 + $0x160] sm:$0xf] %vm5235, %v5179
  %5325 = vst.msk [vmem:[%s3 + $0x164] sm:$0xf] %vm5235, %v5180
  %5326 = vst.msk [vmem:[%s3 + $0x168] sm:$0xf] %vm5235, %v5181
  %5327 = vst.msk [vmem:[%s3 + $0x16c] sm:$0xf] %vm5235, %v5182
  %5328 = vst.msk [vmem:[%s3 + $0x170] sm:$0xf] %vm5235, %v5183
  %5329 = vst.msk [vmem:[%s3 + $0x174] sm:$0xf] %vm5235, %v5184
  %5330 = vst.msk [vmem:[%s3 + $0x178] sm:$0xf] %vm5235, %v5185
  %5331 = vst.msk [vmem:[%s3 + $0x17c] sm:$0xf] %vm5235, %v5186
  %5332 = vst.msk [vmem:[%s3 + $0x180] sm:$0xf] %vm5235, %v5187
  %5333 = vst.msk [vmem:[%s3 + $0x184] sm:$0xf] %vm5235, %v5188
  %5334 = vst.msk [vmem:[%s3 + $0x188] sm:$0xf] %vm5235, %v5189
  %5335 = vst.msk [vmem:[%s3 + $0x18c] sm:$0xf] %vm5235, %v5190
  %5336 = vst.msk [vmem:[%s3 + $0x190] sm:$0xf] %vm5235, %v5191
  %5337 = vst.msk [vmem:[%s3 + $0x194] sm:$0xf] %vm5235, %v5192
  %5338 = vst.msk [vmem:[%s3 + $0x198] sm:$0xf] %vm5235, %v5193
  %5339 = vst.msk [vmem:[%s3 + $0x19c] sm:$0xf] %vm5235, %v5194
  %5340 = vst.msk [vmem:[%s3 + $0x1a0] sm:$0xf] %vm5235, %v5195
  %5341 = vst.msk [vmem:[%s3 + $0x1a4] sm:$0xf] %vm5235, %v5196
  %5342 = vst.msk [vmem:[%s3 + $0x1a8] sm:$0xf] %vm5235, %v5197
  %5343 = vst.msk [vmem:[%s3 + $0x1ac] sm:$0xf] %vm5235, %v5198
  %5344 = vst.msk [vmem:[%s3 + $0x1b0] sm:$0xf] %vm5235, %v5199
  %5345 = vst.msk [vmem:[%s3 + $0x1b4] sm:$0xf] %vm5235, %v5200
  %5346 = vst.msk [vmem:[%s3 + $0x1b8] sm:$0xf] %vm5235, %v5201
  %5347 = vst.msk [vmem:[%s3 + $0x1bc] sm:$0xf] %vm5235, %v5202
  %5348 = vst.msk [vmem:[%s3 + $0x1c0] sm:$0xf] %vm5235, %v5203
  %5349 = vst.msk [vmem:[%s3 + $0x1c4] sm:$0xf] %vm5235, %v5204
  %5350 = vst.msk [vmem:[%s3 + $0x1c8] sm:$0xf] %vm5235, %v5205
  %5351 = vst.msk [vmem:[%s3 + $0x1cc] sm:$0xf] %vm5235, %v5206
  %5352 = vst.msk [vmem:[%s3 + $0x1d0] sm:$0xf] %vm5235, %v5207
  %5353 = vst.msk [vmem:[%s3 + $0x1d4] sm:$0xf] %vm5235, %v5208
  %5354 = vst.msk [vmem:[%s3 + $0x1d8] sm:$0xf] %vm5235, %v5209
  %5355 = vst.msk [vmem:[%s3 + $0x1dc] sm:$0xf] %vm5235, %v5210
  %5356 = vst.msk [vmem:[%s3 + $0x1e0] sm:$0xf] %vm5235, %v5211
  %5357 = vst.msk [vmem:[%s3 + $0x1e4] sm:$0xf] %vm5235, %v5212
  %5358 = vst.msk [vmem:[%s3 + $0x1e8] sm:$0xf] %vm5235, %v5213
  %5359 = vst.msk [vmem:[%s3 + $0x1ec] sm:$0xf] %vm5235, %v5214
  %5360 = vst.msk [vmem:[%s3 + $0x1f0] sm:$0xf] %vm5235, %v5215
  %5361 = vst.msk [vmem:[%s3 + $0x1f4] sm:$0xf] %vm5235, %v5216
  %5362 = vst.msk [vmem:[%s3 + $0x1f8] sm:$0xf] %vm5235, %v5217
  %5363 = vst.msk [vmem:[%s3 + $0x1fc] sm:$0xf] %vm5235, %v5218
  %5364 = vst.msk [vmem:[%s3 + $0x200] sm:$0xf] %vm5235, %v5219
  %5365 = vst.msk [vmem:[%s3 + $0x204] sm:$0xf] %vm5235, %v5220
  %5366 = vst.msk [vmem:[%s3 + $0x208] sm:$0xf] %vm5235, %v5221
  %5367 = vst.msk [vmem:[%s3 + $0x20c] sm:$0xf] %vm5235, %v5222
  %5368 = vst.msk [vmem:[%s3 + $0x210] sm:$0xf] %vm5235, %v5223
  %5369 = vst.msk [vmem:[%s3 + $0x214] sm:$0xf] %vm5235, %v5224
  %5370 = vst.msk [vmem:[%s3 + $0x218] sm:$0xf] %vm5235, %v5225
  %5371 = vst.msk [vmem:[%s3 + $0x21c] sm:$0xf] %vm5235, %v5226
  %5372 = vst.msk [vmem:[%s3 + $0x220] sm:$0xf] %vm5235, %v5227
  %5373 = vst.msk [vmem:[%s3 + $0x224] sm:$0xf] %vm5235, %v5228
  %5374 = vst.msk [vmem:[%s3 + $0x228] sm:$0xf] %vm5235, %v5229
  %5375 = vst.msk [vmem:[%s3 + $0x22c] sm:$0xf] %vm5235, %v5230
  %5376 = vst.msk [vmem:[%s3 + $0x230] sm:$0xf] %vm5235, %v5231
  %5377 = vst.msk [vmem:[%s3 + $0x234] sm:$0xf] %vm5235, %v5232
  %5378 = vst.msk [vmem:[%s3 + $0x238] sm:$0xf] %vm5235, %v5233
  %5379 = vst.msk [vmem:[%s3 + $0x23c] sm:$0xf] %vm5235, %v5234
  // Predicated region
  $region14: #{cnn_forward.2} parent=0 // pred_check
    _
  $region15: #{cnn_forward.2} parent=0 // pred_check_branch
    %5381 = sbr.rel (0) target = $region17
  $region16: #{cnn_forward.2} parent=0 // pred_region
    _
  $region17: #{cnn_forward.2} parent=0 // pred_fallthru
    _
  // Predicated region
  $region18: #{cnn_forward.2} parent=0 // pred_check
    _
  $region19: #{cnn_forward.2} parent=0 // pred_check_branch
    %5383 = sbr.rel (0) target = $region21
  $region20: #{cnn_forward.2} parent=0 // pred_region
    _
  $region21: #{cnn_forward.2} parent=0 // pred_fallthru
    _

// kernel: cnn_forward.3
$region0: #{cnn_forward.3}
  #allocation0 [shape = 'u32[]', space=smem, size = 0x4, offset = 0x4, fixed_abs, tag = 'smem constant byte address 0x4 - core index']
  #allocation1 [shape = 'u32[72,128]{1,0:T(1,128)}', space=vmem, size = 0x9000, scoped, tag = 'internal scratch']
  %s0 = inlined_call_operand.vmem [shape: bf16[16,4,8,250], index: 0, kind: input, shape index: {}]
  %s1 = inlined_call_operand.vmem [shape: bf16[250,20], index: 1, kind: input, shape index: {}]
  %s2 = inlined_call_operand.vmem [shape: f32[1,20], index: 2, kind: input, shape index: {}]
  %s3 = inlined_call_operand.vmem [shape: bf16[16,20,50], index: 3, kind: input, shape index: {}]
  %s4 = inlined_call_operand.vmem [shape: f32[1,50], index: 4, kind: input, shape index: {}]
  %s5 = inlined_call_operand.vmem [shape: bf16[50,10], index: 5, kind: input, shape index: {}]
  %s6 = inlined_call_operand.vmem [shape: f32[1,10], index: 6, kind: input, shape index: {}]
  %s7 = inlined_call_operand.vmem [shape: f32[8,10], index: 7, kind: output, shape index: {}]
  %s8 = sld [smem:[#allocation0]]
  $region38: #{cnn_forward.3} parent=0
    _
  %s10 = ssub.s32 1, %s8
  %s11 = scalar_select 0, %s10, %s8
  // Predicated region
  $region2: #{cnn_forward.3} parent=0 // pred_check
    _
  $region3: #{cnn_forward.3} parent=0 // pred_check_branch
    %13 = sbr.rel (0) target = $region5
  $region4: #{cnn_forward.3} parent=0 // pred_region
    _
  $region5: #{cnn_forward.3} parent=0 // pred_fallthru
    _
  // Predicated region
  $region6: #{cnn_forward.3} parent=0 // pred_check
    _
  $region7: #{cnn_forward.3} parent=0 // pred_check_branch
    %15 = sbr.rel (0) target = $region9
  $region8: #{cnn_forward.3} parent=0 // pred_region
    _
  $region9: #{cnn_forward.3} parent=0 // pred_fallthru
    _
  // Predicated region
  $region10: #{cnn_forward.3} parent=0 // pred_check
    _
  $region11: #{cnn_forward.3} parent=0 // pred_check_branch
    %17 = sbr.rel (0) target = $region13
  $region12: #{cnn_forward.3} parent=0 // pred_region
    _
  $region13: #{cnn_forward.3} parent=0 // pred_fallthru
    _
  // Predicated region
  $region14: #{cnn_forward.3} parent=0 // pred_check
    _
  $region15: #{cnn_forward.3} parent=0 // pred_check_branch
    %19 = sbr.rel (0) target = $region17
  $region16: #{cnn_forward.3} parent=0 // pred_region
    _
  $region17: #{cnn_forward.3} parent=0 // pred_fallthru
    _
  // Predicated region
  $region18: #{cnn_forward.3} parent=0 // pred_check
    _
  $region19: #{cnn_forward.3} parent=0 // pred_check_branch
    %21 = sbr.rel (0) target = $region21
  $region20: #{cnn_forward.3} parent=0 // pred_region
    _
  $region21: #{cnn_forward.3} parent=0 // pred_fallthru
    _
  // Predicated region
  $region22: #{cnn_forward.3} parent=0 // pred_check
    _
  $region23: #{cnn_forward.3} parent=0 // pred_check_branch
    %23 = sbr.rel (0) target = $region25
  $region24: #{cnn_forward.3} parent=0 // pred_region
    _
  $region25: #{cnn_forward.3} parent=0 // pred_fallthru
    _
  // Predicated region
  $region26: #{cnn_forward.3} parent=0 // pred_check
    _
  $region27: #{cnn_forward.3} parent=0 // pred_check_branch
    %25 = sbr.rel (0) target = $region29
  $region28: #{cnn_forward.3} parent=0 // pred_region
    _
  $region29: #{cnn_forward.3} parent=0 // pred_fallthru
    _
  %v27 = vld [vmem:[%s0] sm:$0xff]
  %v28 = vld [vmem:[%s0 + $0x8] sm:$0xff]
  %v29 = vld [vmem:[%s0 + $0x10] sm:$0xff]
  %v30 = vld [vmem:[%s0 + $0x18] sm:$0xff]
  %v31 = vld [vmem:[%s0 + $0x20] sm:$0xff]
  %v32 = vld [vmem:[%s0 + $0x28] sm:$0xff]
  %v33 = vld [vmem:[%s0 + $0x30] sm:$0xff]
  %v34 = vld [vmem:[%s0 + $0x38] sm:$0xff]
  %v35 = vld [vmem:[%s0 + $0x40] sm:$0xff]
  %v36 = vld [vmem:[%s0 + $0x48] sm:$0xff]
  %v37 = vld [vmem:[%s0 + $0x50] sm:$0xff]
  %v38 = vld [vmem:[%s0 + $0x58] sm:$0xff]
  %v39 = vld [vmem:[%s0 + $0x60] sm:$0xff]
  %v40 = vld [vmem:[%s0 + $0x68] sm:$0xff]
  %v41 = vld [vmem:[%s0 + $0x70] sm:$0xff]
  %v42 = vld [vmem:[%s0 + $0x78] sm:$0xff]
  %v43 = vld [vmem:[%s0 + $0x80] sm:$0xff]
  %v44 = vld [vmem:[%s0 + $0x88] sm:$0xff]
  %v45 = vld [vmem:[%s0 + $0x90] sm:$0xff]
  %v46 = vld [vmem:[%s0 + $0x98] sm:$0xff]
  %v47 = vld [vmem:[%s0 + $0xa0] sm:$0xff]
  %v48 = vld [vmem:[%s0 + $0xa8] sm:$0xff]
  %v49 = vld [vmem:[%s0 + $0xb0] sm:$0xff]
  %v50 = vld [vmem:[%s0 + $0xb8] sm:$0xff]
  %v51 = vld [vmem:[%s0 + $0xc0] sm:$0xff]
  %v52 = vld [vmem:[%s0 + $0xc8] sm:$0xff]
  %v53 = vld [vmem:[%s0 + $0xd0] sm:$0xff]
  %v54 = vld [vmem:[%s0 + $0xd8] sm:$0xff]
  %v55 = vld [vmem:[%s0 + $0xe0] sm:$0xff]
  %v56 = vld [vmem:[%s0 + $0xe8] sm:$0xff]
  %v57 = vld [vmem:[%s0 + $0xf0] sm:$0xff]
  %v58 = vld [vmem:[%s0 + $0xf8] sm:$0xff]
  %v59 = vld [vmem:[%s0 + $0x100] sm:$0xff]
  %v60 = vld [vmem:[%s0 + $0x108] sm:$0xff]
  %v61 = vld [vmem:[%s0 + $0x110] sm:$0xff]
  %v62 = vld [vmem:[%s0 + $0x118] sm:$0xff]
  %v63 = vld [vmem:[%s0 + $0x120] sm:$0xff]
  %v64 = vld [vmem:[%s0 + $0x128] sm:$0xff]
  %v65 = vld [vmem:[%s0 + $0x130] sm:$0xff]
  %v66 = vld [vmem:[%s0 + $0x138] sm:$0xff]
  %v67 = vld [vmem:[%s0 + $0x140] sm:$0xff]
  %v68 = vld [vmem:[%s0 + $0x148] sm:$0xff]
  %v69 = vld [vmem:[%s0 + $0x150] sm:$0xff]
  %v70 = vld [vmem:[%s0 + $0x158] sm:$0xff]
  %v71 = vld [vmem:[%s0 + $0x160] sm:$0xff]
  %v72 = vld [vmem:[%s0 + $0x168] sm:$0xff]
  %v73 = vld [vmem:[%s0 + $0x170] sm:$0xff]
  %v74 = vld [vmem:[%s0 + $0x178] sm:$0xff]
  %v75 = vld [vmem:[%s0 + $0x180] sm:$0xff]
  %v76 = vld [vmem:[%s0 + $0x188] sm:$0xff]
  %v77 = vld [vmem:[%s0 + $0x190] sm:$0xff]
  %v78 = vld [vmem:[%s0 + $0x198] sm:$0xff]
  %v79 = vld [vmem:[%s0 + $0x1a0] sm:$0xff]
  %v80 = vld [vmem:[%s0 + $0x1a8] sm:$0xff]
  %v81 = vld [vmem:[%s0 + $0x1b0] sm:$0xff]
  %v82 = vld [vmem:[%s0 + $0x1b8] sm:$0xff]
  %v83 = vld [vmem:[%s0 + $0x1c0] sm:$0xff]
  %v84 = vld [vmem:[%s0 + $0x1c8] sm:$0xff]
  %v85 = vld [vmem:[%s0 + $0x1d0] sm:$0xff]
  %v86 = vld [vmem:[%s0 + $0x1d8] sm:$0xff]
  %v87 = vld [vmem:[%s0 + $0x1e0] sm:$0xff]
  %v88 = vld [vmem:[%s0 + $0x1e8] sm:$0xff]
  %v89 = vld [vmem:[%s0 + $0x1f0] sm:$0xff]
  %v90 = vld [vmem:[%s0 + $0x1f8] sm:$0xff]
  %v91 = vld [vmem:[%s1] sm:$0xf]
  %v92 = vld [vmem:[%s1 + $0x4] sm:$0xf]
  %v93 = vld [vmem:[%s1 + $0x8] sm:$0xf]
  %v94 = vld [vmem:[%s1 + $0xc] sm:$0xf]
  %v95 = vld [vmem:[%s1 + $0x10] sm:$0xf]
  %v96 = vld [vmem:[%s1 + $0x14] sm:$0xf]
  %v97 = vld [vmem:[%s1 + $0x18] sm:$0xf]
  %v98 = vld [vmem:[%s1 + $0x1c] sm:$0xf]
  %v99 = vld [vmem:[%s1 + $0x20] sm:$0xf]
  %v100 = vld [vmem:[%s1 + $0x24] sm:$0xf]
  %v101 = vld [vmem:[%s1 + $0x28] sm:$0xf]
  %v102 = vld [vmem:[%s1 + $0x2c] sm:$0xf]
  %v103 = vld [vmem:[%s1 + $0x30] sm:$0xf]
  %v104 = vld [vmem:[%s1 + $0x34] sm:$0xf]
  %v105 = vld [vmem:[%s1 + $0x38] sm:$0xf]
  %v106 = vld [vmem:[%s1 + $0x3c] sm:$0xf]
  %v107 = vld [vmem:[%s1 + $0x40] sm:$0xf]
  %v108 = vld [vmem:[%s1 + $0x44] sm:$0xf]
  %v109 = vld [vmem:[%s1 + $0x48] sm:$0xf]
  %v110 = vld [vmem:[%s1 + $0x4c] sm:$0xf]
  %v111 = vld [vmem:[%s1 + $0x50] sm:$0xf]
  %v112 = vld [vmem:[%s1 + $0x54] sm:$0xf]
  %v113 = vld [vmem:[%s1 + $0x58] sm:$0xf]
  %v114 = vld [vmem:[%s1 + $0x5c] sm:$0xf]
  %v115 = vld [vmem:[%s1 + $0x60] sm:$0xf]
  %v116 = vld [vmem:[%s1 + $0x64] sm:$0xf]
  %v117 = vld [vmem:[%s1 + $0x68] sm:$0xf]
  %v118 = vld [vmem:[%s1 + $0x6c] sm:$0xf]
  %v119 = vld [vmem:[%s1 + $0x70] sm:$0xf]
  %v120 = vld [vmem:[%s1 + $0x74] sm:$0xf]
  %v121 = vld [vmem:[%s1 + $0x78] sm:$0xf]
  %v122 = vld [vmem:[%s1 + $0x7c] sm:$0x1]
  %v187 = vunpack.c.l.b16 %v27
  %v188 = vunpack.c.h.b16 %v27
  %v189 = vunpack.c.l.b16 %v28
  %v190 = vunpack.c.h.b16 %v28
  %v191 = vunpack.c.l.b16 %v29
  %v192 = vunpack.c.h.b16 %v29
  %v193 = vunpack.c.l.b16 %v30
  %v194 = vunpack.c.h.b16 %v30
  %v195 = vunpack.c.l.b16 %v31
  %v196 = vunpack.c.h.b16 %v31
  %v197 = vunpack.c.l.b16 %v32
  %v198 = vunpack.c.h.b16 %v32
  %v199 = vunpack.c.l.b16 %v33
  %v200 = vunpack.c.h.b16 %v33
  %v201 = vunpack.c.l.b16 %v34
  %v202 = vunpack.c.h.b16 %v34
  %v203 = vunpack.c.l.b16 %v35
  %v204 = vunpack.c.h.b16 %v35
  %v205 = vunpack.c.l.b16 %v36
  %v206 = vunpack.c.h.b16 %v36
  %v207 = vunpack.c.l.b16 %v37
  %v208 = vunpack.c.h.b16 %v37
  %v209 = vunpack.c.l.b16 %v38
  %v210 = vunpack.c.h.b16 %v38
  %v211 = vunpack.c.l.b16 %v39
  %v212 = vunpack.c.h.b16 %v39
  %v213 = vunpack.c.l.b16 %v40
  %v214 = vunpack.c.h.b16 %v40
  %v215 = vunpack.c.l.b16 %v41
  %v216 = vunpack.c.h.b16 %v41
  %v217 = vunpack.c.l.b16 %v42
  %v218 = vunpack.c.h.b16 %v42
  %v219 = vunpack.c.l.b16 %v43
  %v220 = vunpack.c.h.b16 %v43
  %v221 = vunpack.c.l.b16 %v44
  %v222 = vunpack.c.h.b16 %v44
  %v223 = vunpack.c.l.b16 %v45
  %v224 = vunpack.c.h.b16 %v45
  %v225 = vunpack.c.l.b16 %v46
  %v226 = vunpack.c.h.b16 %v46
  %v227 = vunpack.c.l.b16 %v47
  %v228 = vunpack.c.h.b16 %v47
  %v229 = vunpack.c.l.b16 %v48
  %v230 = vunpack.c.h.b16 %v48
  %v231 = vunpack.c.l.b16 %v49
  %v232 = vunpack.c.h.b16 %v49
  %v233 = vunpack.c.l.b16 %v50
  %v234 = vunpack.c.h.b16 %v50
  %v235 = vunpack.c.l.b16 %v51
  %v236 = vunpack.c.h.b16 %v51
  %v237 = vunpack.c.l.b16 %v52
  %v238 = vunpack.c.h.b16 %v52
  %v239 = vunpack.c.l.b16 %v53
  %v240 = vunpack.c.h.b16 %v53
  %v241 = vunpack.c.l.b16 %v54
  %v242 = vunpack.c.h.b16 %v54
  %v243 = vunpack.c.l.b16 %v55
  %v244 = vunpack.c.h.b16 %v55
  %v245 = vunpack.c.l.b16 %v56
  %v246 = vunpack.c.h.b16 %v56
  %v247 = vunpack.c.l.b16 %v57
  %v248 = vunpack.c.h.b16 %v57
  %v249 = vunpack.c.l.b16 %v58
  %v250 = vunpack.c.h.b16 %v58
  %v251 = vunpack.c.l.b16 %v59
  %v252 = vunpack.c.h.b16 %v59
  %v253 = vunpack.c.l.b16 %v60
  %v254 = vunpack.c.h.b16 %v60
  %v255 = vunpack.c.l.b16 %v61
  %v256 = vunpack.c.h.b16 %v61
  %v257 = vunpack.c.l.b16 %v62
  %v258 = vunpack.c.h.b16 %v62
  %v259 = vunpack.c.l.b16 %v63
  %v260 = vunpack.c.h.b16 %v63
  %v261 = vunpack.c.l.b16 %v64
  %v262 = vunpack.c.h.b16 %v64
  %v263 = vunpack.c.l.b16 %v65
  %v264 = vunpack.c.h.b16 %v65
  %v265 = vunpack.c.l.b16 %v66
  %v266 = vunpack.c.h.b16 %v66
  %v267 = vunpack.c.l.b16 %v67
  %v268 = vunpack.c.h.b16 %v67
  %v269 = vunpack.c.l.b16 %v68
  %v270 = vunpack.c.h.b16 %v68
  %v271 = vunpack.c.l.b16 %v69
  %v272 = vunpack.c.h.b16 %v69
  %v273 = vunpack.c.l.b16 %v70
  %v274 = vunpack.c.h.b16 %v70
  %v275 = vunpack.c.l.b16 %v71
  %v276 = vunpack.c.h.b16 %v71
  %v277 = vunpack.c.l.b16 %v72
  %v278 = vunpack.c.h.b16 %v72
  %v279 = vunpack.c.l.b16 %v73
  %v280 = vunpack.c.h.b16 %v73
  %v281 = vunpack.c.l.b16 %v74
  %v282 = vunpack.c.h.b16 %v74
  %v283 = vunpack.c.l.b16 %v75
  %v284 = vunpack.c.h.b16 %v75
  %v285 = vunpack.c.l.b16 %v76
  %v286 = vunpack.c.h.b16 %v76
  %v287 = vunpack.c.l.b16 %v77
  %v288 = vunpack.c.h.b16 %v77
  %v289 = vunpack.c.l.b16 %v78
  %v290 = vunpack.c.h.b16 %v78
  %v291 = vunpack.c.l.b16 %v79
  %v292 = vunpack.c.h.b16 %v79
  %v293 = vunpack.c.l.b16 %v80
  %v294 = vunpack.c.h.b16 %v80
  %v295 = vunpack.c.l.b16 %v81
  %v296 = vunpack.c.h.b16 %v81
  %v297 = vunpack.c.l.b16 %v82
  %v298 = vunpack.c.h.b16 %v82
  %v299 = vunpack.c.l.b16 %v83
  %v300 = vunpack.c.h.b16 %v83
  %v301 = vunpack.c.l.b16 %v84
  %v302 = vunpack.c.h.b16 %v84
  %v303 = vunpack.c.l.b16 %v85
  %v304 = vunpack.c.h.b16 %v85
  %v305 = vunpack.c.l.b16 %v86
  %v306 = vunpack.c.h.b16 %v86
  %v307 = vunpack.c.l.b16 %v87
  %v308 = vunpack.c.h.b16 %v87
  %v309 = vunpack.c.l.b16 %v88
  %v310 = vunpack.c.h.b16 %v88
  %v311 = vunpack.c.l.b16 %v89
  %v312 = vunpack.c.h.b16 %v89
  %v313 = vunpack.c.l.b16 %v90
  %v314 = vunpack.c.h.b16 %v90
  %v315 = vpack.c.b16 %v189, %v187
  %v316 = vpack.c.b16 %v190, %v188
  %v317 = vpack.c.b16 %v193, %v191
  %v318 = vpack.c.b16 %v194, %v192
  %v319 = vpack.c.b16 %v197, %v195
  %v320 = vpack.c.b16 %v198, %v196
  %v321 = vpack.c.b16 %v201, %v199
  %v322 = vpack.c.b16 %v202, %v200
  %v323 = vpack.c.b16 %v205, %v203
  %v324 = vpack.c.b16 %v206, %v204
  %v325 = vpack.c.b16 %v209, %v207
  %v326 = vpack.c.b16 %v210, %v208
  %v327 = vpack.c.b16 %v213, %v211
  %v328 = vpack.c.b16 %v214, %v212
  %v329 = vpack.c.b16 %v217, %v215
  %v330 = vpack.c.b16 %v218, %v216
  %v331 = vpack.c.b16 %v221, %v219
  %v332 = vpack.c.b16 %v222, %v220
  %v333 = vpack.c.b16 %v225, %v223
  %v334 = vpack.c.b16 %v226, %v224
  %v335 = vpack.c.b16 %v229, %v227
  %v336 = vpack.c.b16 %v230, %v228
  %v337 = vpack.c.b16 %v233, %v231
  %v338 = vpack.c.b16 %v234, %v232
  %v339 = vpack.c.b16 %v237, %v235
  %v340 = vpack.c.b16 %v238, %v236
  %v341 = vpack.c.b16 %v241, %v239
  %v342 = vpack.c.b16 %v242, %v240
  %v343 = vpack.c.b16 %v245, %v243
  %v344 = vpack.c.b16 %v246, %v244
  %v345 = vpack.c.b16 %v249, %v247
  %v346 = vpack.c.b16 %v250, %v248
  %v347 = vpack.c.b16 %v253, %v251
  %v348 = vpack.c.b16 %v254, %v252
  %v349 = vpack.c.b16 %v257, %v255
  %v350 = vpack.c.b16 %v258, %v256
  %v351 = vpack.c.b16 %v261, %v259
  %v352 = vpack.c.b16 %v262, %v260
  %v353 = vpack.c.b16 %v265, %v263
  %v354 = vpack.c.b16 %v266, %v264
  %v355 = vpack.c.b16 %v269, %v267
  %v356 = vpack.c.b16 %v270, %v268
  %v357 = vpack.c.b16 %v273, %v271
  %v358 = vpack.c.b16 %v274, %v272
  %v359 = vpack.c.b16 %v277, %v275
  %v360 = vpack.c.b16 %v278, %v276
  %v361 = vpack.c.b16 %v281, %v279
  %v362 = vpack.c.b16 %v282, %v280
  %v363 = vpack.c.b16 %v285, %v283
  %v364 = vpack.c.b16 %v286, %v284
  %v365 = vpack.c.b16 %v289, %v287
  %v366 = vpack.c.b16 %v290, %v288
  %v367 = vpack.c.b16 %v293, %v291
  %v368 = vpack.c.b16 %v294, %v292
  %v369 = vpack.c.b16 %v297, %v295
  %v370 = vpack.c.b16 %v298, %v296
  %v371 = vpack.c.b16 %v301, %v299
  %v372 = vpack.c.b16 %v302, %v300
  %v373 = vpack.c.b16 %v305, %v303
  %v374 = vpack.c.b16 %v306, %v304
  %v375 = vpack.c.b16 %v309, %v307
  %v376 = vpack.c.b16 %v310, %v308
  %v377 = vpack.c.b16 %v313, %v311
  %v378 = vpack.c.b16 %v314, %v312
  %v443 = vunpack.c.l.b16 %v91
  %v444 = vunpack.c.l.b16 %v92
  %v445 = vunpack.c.l.b16 %v93
  %v446 = vunpack.c.l.b16 %v94
  %v447 = vunpack.c.l.b16 %v95
  %v448 = vunpack.c.l.b16 %v96
  %v449 = vunpack.c.l.b16 %v97
  %v450 = vunpack.c.l.b16 %v98
  %v451 = vunpack.c.l.b16 %v99
  %v452 = vunpack.c.l.b16 %v100
  %v453 = vunpack.c.l.b16 %v101
  %v454 = vunpack.c.l.b16 %v102
  %v455 = vunpack.c.l.b16 %v103
  %v456 = vunpack.c.l.b16 %v104
  %v457 = vunpack.c.l.b16 %v105
  %v458 = vunpack.c.l.b16 %v106
  %v459 = vunpack.c.l.b16 %v107
  %v460 = vunpack.c.l.b16 %v108
  %v461 = vunpack.c.l.b16 %v109
  %v462 = vunpack.c.l.b16 %v110
  %v463 = vunpack.c.l.b16 %v111
  %v464 = vunpack.c.l.b16 %v112
  %v465 = vunpack.c.l.b16 %v113
  %v466 = vunpack.c.l.b16 %v114
  %v467 = vunpack.c.l.b16 %v115
  %v468 = vunpack.c.l.b16 %v116
  %v469 = vunpack.c.l.b16 %v117
  %v470 = vunpack.c.l.b16 %v118
  %v471 = vunpack.c.l.b16 %v119
  %v472 = vunpack.c.l.b16 %v120
  %v473 = vunpack.c.l.b16 %v121
  %v474 = vunpack.c.l.b16 %v122
  %v475 = vpack.c.b16 %v444, %v443
  %v476 = vpack.c.b16 %v446, %v445
  %v477 = vpack.c.b16 %v448, %v447
  %v478 = vpack.c.b16 %v450, %v449
  %v479 = vpack.c.b16 %v452, %v451
  %v480 = vpack.c.b16 %v454, %v453
  %v481 = vpack.c.b16 %v456, %v455
  %v482 = vpack.c.b16 %v458, %v457
  %v483 = vpack.c.b16 %v460, %v459
  %v484 = vpack.c.b16 %v462, %v461
  %v485 = vpack.c.b16 %v464, %v463
  %v486 = vpack.c.b16 %v466, %v465
  %v487 = vpack.c.b16 %v468, %v467
  %v488 = vpack.c.b16 %v470, %v469
  %v489 = vpack.c.b16 %v472, %v471
  %v490 = vpack.c.b16 %v474, %v473
  %vm506 = vcmask 998400
  %v508 = vsel %vm506, %v316, 0
  %v511 = vsel %vm506, %v318, 0
  %v514 = vsel %vm506, %v320, 0
  %v517 = vsel %vm506, %v322, 0
  %v520 = vsel %vm506, %v324, 0
  %v523 = vsel %vm506, %v326, 0
  %v526 = vsel %vm506, %v328, 0
  %v529 = vsel %vm506, %v330, 0
  %v532 = vsel %vm506, %v332, 0
  %v535 = vsel %vm506, %v334, 0
  %v538 = vsel %vm506, %v336, 0
  %v541 = vsel %vm506, %v338, 0
  %v544 = vsel %vm506, %v340, 0
  %v547 = vsel %vm506, %v342, 0
  %v550 = vsel %vm506, %v344, 0
  %v553 = vsel %vm506, %v346, 0
  %v556 = vsel %vm506, %v348, 0
  %v559 = vsel %vm506, %v350, 0
  %v562 = vsel %vm506, %v352, 0
  %v565 = vsel %vm506, %v354, 0
  %v568 = vsel %vm506, %v356, 0
  %v571 = vsel %vm506, %v358, 0
  %v574 = vsel %vm506, %v360, 0
  %v577 = vsel %vm506, %v362, 0
  %v580 = vsel %vm506, %v364, 0
  %v583 = vsel %vm506, %v366, 0
  %v586 = vsel %vm506, %v368, 0
  %v589 = vsel %vm506, %v370, 0
  %v592 = vsel %vm506, %v372, 0
  %v595 = vsel %vm506, %v374, 0
  %v598 = vsel %vm506, %v376, 0
  %v601 = vsel %vm506, %v378, 0
  %vm603 = vcmask 1044480
  %v605 = vsel %vm603, %v490, 0
  %607 = vmatpush.bf16.msra.mxu0 %v482
  %608 = vmatpush.bf16.msra.mxu0 %v481
  %609 = vmatpush.bf16.msra.mxu0 %v480
  %610 = vmatpush.bf16.msra.mxu0 %v479
  %611 = vmatpush.bf16.msra.mxu0 %v478
  %612 = vmatpush.bf16.msra.mxu0 %v477
  %613 = vmatpush.bf16.msra.mxu0 %v476
  %614 = vmatpush.bf16.msra.mxu0 %v475
  %615 = vmatmul.bf16.gmra.mxu0 %v315
  %v616 = vpop.f32.mrf.mxu0
  %v617 = vadd.f32 0.0, %v616
  %v618 = vpop.f32.mrf.mxu0
  %v619 = vadd.f32 0.0, %v618
  %620 = vmatmul.bf16.gmra.mxu0 %v317
  %v621 = vpop.f32.mrf.mxu0
  %v622 = vadd.f32 0.0, %v621
  %v623 = vpop.f32.mrf.mxu0
  %v624 = vadd.f32 0.0, %v623
  %625 = vmatmul.bf16.gmra.mxu0 %v319
  %v626 = vpop.f32.mrf.mxu0
  %v627 = vadd.f32 0.0, %v626
  %v628 = vpop.f32.mrf.mxu0
  %v629 = vadd.f32 0.0, %v628
  %630 = vmatmul.bf16.gmra.mxu0 %v321
  %v631 = vpop.f32.mrf.mxu0
  %v632 = vadd.f32 0.0, %v631
  %v633 = vpop.f32.mrf.mxu0
  %v634 = vadd.f32 0.0, %v633
  %635 = vmatmul.bf16.gmra.mxu0 %v323
  %v636 = vpop.f32.mrf.mxu0
  %v637 = vadd.f32 0.0, %v636
  %v638 = vpop.f32.mrf.mxu0
  %v639 = vadd.f32 0.0, %v638
  %640 = vmatmul.bf16.gmra.mxu0 %v325
  %v641 = vpop.f32.mrf.mxu0
  %v642 = vadd.f32 0.0, %v641
  %v643 = vpop.f32.mrf.mxu0
  %v644 = vadd.f32 0.0, %v643
  %645 = vmatmul.bf16.gmra.mxu0 %v327
  %v646 = vpop.f32.mrf.mxu0
  %v647 = vadd.f32 0.0, %v646
  %v648 = vpop.f32.mrf.mxu0
  %v649 = vadd.f32 0.0, %v648
  %650 = vmatmul.bf16.gmra.mxu0 %v329
  %v651 = vpop.f32.mrf.mxu0
  %v652 = vadd.f32 0.0, %v651
  %v653 = vpop.f32.mrf.mxu0
  %v654 = vadd.f32 0.0, %v653
  %655 = vmatmul.bf16.gmra.mxu0 %v331
  %v656 = vpop.f32.mrf.mxu0
  %v657 = vadd.f32 0.0, %v656
  %v658 = vpop.f32.mrf.mxu0
  %v659 = vadd.f32 0.0, %v658
  %660 = vmatmul.bf16.gmra.mxu0 %v333
  %v661 = vpop.f32.mrf.mxu0
  %v662 = vadd.f32 0.0, %v661
  %v663 = vpop.f32.mrf.mxu0
  %v664 = vadd.f32 0.0, %v663
  %665 = vmatmul.bf16.gmra.mxu0 %v335
  %v666 = vpop.f32.mrf.mxu0
  %v667 = vadd.f32 0.0, %v666
  %v668 = vpop.f32.mrf.mxu0
  %v669 = vadd.f32 0.0, %v668
  %670 = vmatmul.bf16.gmra.mxu0 %v337
  %v671 = vpop.f32.mrf.mxu0
  %v672 = vadd.f32 0.0, %v671
  %v673 = vpop.f32.mrf.mxu0
  %v674 = vadd.f32 0.0, %v673
  %675 = vmatmul.bf16.gmra.mxu0 %v339
  %v676 = vpop.f32.mrf.mxu0
  %v677 = vadd.f32 0.0, %v676
  %v678 = vpop.f32.mrf.mxu0
  %v679 = vadd.f32 0.0, %v678
  %680 = vmatmul.bf16.gmra.mxu0 %v341
  %v681 = vpop.f32.mrf.mxu0
  %v682 = vadd.f32 0.0, %v681
  %v683 = vpop.f32.mrf.mxu0
  %v684 = vadd.f32 0.0, %v683
  %685 = vmatmul.bf16.gmra.mxu0 %v343
  %v686 = vpop.f32.mrf.mxu0
  %v687 = vadd.f32 0.0, %v686
  %v688 = vpop.f32.mrf.mxu0
  %v689 = vadd.f32 0.0, %v688
  %690 = vmatmul.bf16.gmra.mxu0 %v345
  %v691 = vpop.f32.mrf.mxu0
  %v692 = vadd.f32 0.0, %v691
  %v693 = vpop.f32.mrf.mxu0
  %v694 = vadd.f32 0.0, %v693
  %695 = vmatmul.bf16.gmra.mxu0 %v347
  %v696 = vpop.f32.mrf.mxu0
  %v697 = vadd.f32 0.0, %v696
  %v698 = vpop.f32.mrf.mxu0
  %v699 = vadd.f32 0.0, %v698
  %700 = vmatmul.bf16.gmra.mxu0 %v349
  %v701 = vpop.f32.mrf.mxu0
  %v702 = vadd.f32 0.0, %v701
  %v703 = vpop.f32.mrf.mxu0
  %v704 = vadd.f32 0.0, %v703
  %705 = vmatmul.bf16.gmra.mxu0 %v351
  %v706 = vpop.f32.mrf.mxu0
  %v707 = vadd.f32 0.0, %v706
  %v708 = vpop.f32.mrf.mxu0
  %v709 = vadd.f32 0.0, %v708
  %710 = vmatmul.bf16.gmra.mxu0 %v353
  %v711 = vpop.f32.mrf.mxu0
  %v712 = vadd.f32 0.0, %v711
  %v713 = vpop.f32.mrf.mxu0
  %v714 = vadd.f32 0.0, %v713
  %715 = vmatmul.bf16.gmra.mxu0 %v355
  %v716 = vpop.f32.mrf.mxu0
  %v717 = vadd.f32 0.0, %v716
  %v718 = vpop.f32.mrf.mxu0
  %v719 = vadd.f32 0.0, %v718
  %720 = vmatmul.bf16.gmra.mxu0 %v357
  %v721 = vpop.f32.mrf.mxu0
  %v722 = vadd.f32 0.0, %v721
  %v723 = vpop.f32.mrf.mxu0
  %v724 = vadd.f32 0.0, %v723
  %725 = vmatmul.bf16.gmra.mxu0 %v359
  %v726 = vpop.f32.mrf.mxu0
  %v727 = vadd.f32 0.0, %v726
  %v728 = vpop.f32.mrf.mxu0
  %v729 = vadd.f32 0.0, %v728
  %730 = vmatmul.bf16.gmra.mxu0 %v361
  %v731 = vpop.f32.mrf.mxu0
  %v732 = vadd.f32 0.0, %v731
  %v733 = vpop.f32.mrf.mxu0
  %v734 = vadd.f32 0.0, %v733
  %735 = vmatmul.bf16.gmra.mxu0 %v363
  %v736 = vpop.f32.mrf.mxu0
  %v737 = vadd.f32 0.0, %v736
  %v738 = vpop.f32.mrf.mxu0
  %v739 = vadd.f32 0.0, %v738
  %740 = vmatmul.bf16.gmra.mxu0 %v365
  %v741 = vpop.f32.mrf.mxu0
  %v742 = vadd.f32 0.0, %v741
  %v743 = vpop.f32.mrf.mxu0
  %v744 = vadd.f32 0.0, %v743
  %745 = vmatmul.bf16.gmra.mxu0 %v367
  %v746 = vpop.f32.mrf.mxu0
  %v747 = vadd.f32 0.0, %v746
  %v748 = vpop.f32.mrf.mxu0
  %v749 = vadd.f32 0.0, %v748
  %750 = vmatmul.bf16.gmra.mxu0 %v369
  %v751 = vpop.f32.mrf.mxu0
  %v752 = vadd.f32 0.0, %v751
  %v753 = vpop.f32.mrf.mxu0
  %v754 = vadd.f32 0.0, %v753
  %755 = vmatmul.bf16.gmra.mxu0 %v371
  %v756 = vpop.f32.mrf.mxu0
  %v757 = vadd.f32 0.0, %v756
  %v758 = vpop.f32.mrf.mxu0
  %v759 = vadd.f32 0.0, %v758
  %760 = vmatmul.bf16.gmra.mxu0 %v373
  %v761 = vpop.f32.mrf.mxu0
  %v762 = vadd.f32 0.0, %v761
  %v763 = vpop.f32.mrf.mxu0
  %v764 = vadd.f32 0.0, %v763
  %765 = vmatmul.bf16.gmra.mxu0 %v375
  %v766 = vpop.f32.mrf.mxu0
  %v767 = vadd.f32 0.0, %v766
  %v768 = vpop.f32.mrf.mxu0
  %v769 = vadd.f32 0.0, %v768
  %770 = vmatmul.bf16.gmra.mxu0 %v377
  %v771 = vpop.f32.mrf.mxu0
  %v772 = vadd.f32 0.0, %v771
  %v773 = vpop.f32.mrf.mxu0
  %v774 = vadd.f32 0.0, %v773
  %775 = vdwg.mxu0
  %776 = vmatpush.bf16.msra.mxu0 %v605
  %777 = vmatpush.bf16.msra.mxu0 %v489
  %778 = vmatpush.bf16.msra.mxu0 %v488
  %779 = vmatpush.bf16.msra.mxu0 %v487
  %780 = vmatpush.bf16.msra.mxu0 %v486
  %781 = vmatpush.bf16.msra.mxu0 %v485
  %782 = vmatpush.bf16.msra.mxu0 %v484
  %783 = vmatpush.bf16.msra.mxu0 %v483
  %784 = vmatmul.bf16.gmra.mxu0 %v508
  %v785 = vpop.f32.mrf.mxu0
  %v786 = vadd.f32 %v617, %v785
  %v787 = vpop.f32.mrf.mxu0
  %v788 = vadd.f32 %v619, %v787
  %789 = vmatmul.bf16.gmra.mxu0 %v511
  %v790 = vpop.f32.mrf.mxu0
  %v791 = vadd.f32 %v622, %v790
  %v792 = vpop.f32.mrf.mxu0
  %v793 = vadd.f32 %v624, %v792
  %794 = vmatmul.bf16.gmra.mxu0 %v514
  %v795 = vpop.f32.mrf.mxu0
  %v796 = vadd.f32 %v627, %v795
  %v797 = vpop.f32.mrf.mxu0
  %v798 = vadd.f32 %v629, %v797
  %799 = vmatmul.bf16.gmra.mxu0 %v517
  %v800 = vpop.f32.mrf.mxu0
  %v801 = vadd.f32 %v632, %v800
  %v802 = vpop.f32.mrf.mxu0
  %v803 = vadd.f32 %v634, %v802
  %804 = vmatmul.bf16.gmra.mxu0 %v520
  %v805 = vpop.f32.mrf.mxu0
  %v806 = vadd.f32 %v637, %v805
  %v807 = vpop.f32.mrf.mxu0
  %v808 = vadd.f32 %v639, %v807
  %809 = vmatmul.bf16.gmra.mxu0 %v523
  %v810 = vpop.f32.mrf.mxu0
  %v811 = vadd.f32 %v642, %v810
  %v812 = vpop.f32.mrf.mxu0
  %v813 = vadd.f32 %v644, %v812
  %814 = vmatmul.bf16.gmra.mxu0 %v526
  %v815 = vpop.f32.mrf.mxu0
  %v816 = vadd.f32 %v647, %v815
  %v817 = vpop.f32.mrf.mxu0
  %v818 = vadd.f32 %v649, %v817
  %819 = vmatmul.bf16.gmra.mxu0 %v529
  %v820 = vpop.f32.mrf.mxu0
  %v821 = vadd.f32 %v652, %v820
  %v822 = vpop.f32.mrf.mxu0
  %v823 = vadd.f32 %v654, %v822
  %824 = vmatmul.bf16.gmra.mxu0 %v532
  %v825 = vpop.f32.mrf.mxu0
  %v826 = vadd.f32 %v657, %v825
  %v827 = vpop.f32.mrf.mxu0
  %v828 = vadd.f32 %v659, %v827
  %829 = vmatmul.bf16.gmra.mxu0 %v535
  %v830 = vpop.f32.mrf.mxu0
  %v831 = vadd.f32 %v662, %v830
  %v832 = vpop.f32.mrf.mxu0
  %v833 = vadd.f32 %v664, %v832
  %834 = vmatmul.bf16.gmra.mxu0 %v538
  %v835 = vpop.f32.mrf.mxu0
  %v836 = vadd.f32 %v667, %v835
  %v837 = vpop.f32.mrf.mxu0
  %v838 = vadd.f32 %v669, %v837
  %839 = vmatmul.bf16.gmra.mxu0 %v541
  %v840 = vpop.f32.mrf.mxu0
  %v841 = vadd.f32 %v672, %v840
  %v842 = vpop.f32.mrf.mxu0
  %v843 = vadd.f32 %v674, %v842
  %844 = vmatmul.bf16.gmra.mxu0 %v544
  %v845 = vpop.f32.mrf.mxu0
  %v846 = vadd.f32 %v677, %v845
  %v847 = vpop.f32.mrf.mxu0
  %v848 = vadd.f32 %v679, %v847
  %849 = vmatmul.bf16.gmra.mxu0 %v547
  %v850 = vpop.f32.mrf.mxu0
  %v851 = vadd.f32 %v682, %v850
  %v852 = vpop.f32.mrf.mxu0
  %v853 = vadd.f32 %v684, %v852
  %854 = vmatmul.bf16.gmra.mxu0 %v550
  %v855 = vpop.f32.mrf.mxu0
  %v856 = vadd.f32 %v687, %v855
  %v857 = vpop.f32.mrf.mxu0
  %v858 = vadd.f32 %v689, %v857
  %859 = vmatmul.bf16.gmra.mxu0 %v553
  %v860 = vpop.f32.mrf.mxu0
  %v861 = vadd.f32 %v692, %v860
  %v862 = vpop.f32.mrf.mxu0
  %v863 = vadd.f32 %v694, %v862
  %864 = vmatmul.bf16.gmra.mxu0 %v556
  %v865 = vpop.f32.mrf.mxu0
  %v866 = vadd.f32 %v697, %v865
  %v867 = vpop.f32.mrf.mxu0
  %v868 = vadd.f32 %v699, %v867
  %869 = vmatmul.bf16.gmra.mxu0 %v559
  %v870 = vpop.f32.mrf.mxu0
  %v871 = vadd.f32 %v702, %v870
  %v872 = vpop.f32.mrf.mxu0
  %v873 = vadd.f32 %v704, %v872
  %874 = vmatmul.bf16.gmra.mxu0 %v562
  %v875 = vpop.f32.mrf.mxu0
  %v876 = vadd.f32 %v707, %v875
  %v877 = vpop.f32.mrf.mxu0
  %v878 = vadd.f32 %v709, %v877
  %879 = vmatmul.bf16.gmra.mxu0 %v565
  %v880 = vpop.f32.mrf.mxu0
  %v881 = vadd.f32 %v712, %v880
  %v882 = vpop.f32.mrf.mxu0
  %v883 = vadd.f32 %v714, %v882
  %884 = vmatmul.bf16.gmra.mxu0 %v568
  %v885 = vpop.f32.mrf.mxu0
  %v886 = vadd.f32 %v717, %v885
  %v887 = vpop.f32.mrf.mxu0
  %v888 = vadd.f32 %v719, %v887
  %889 = vmatmul.bf16.gmra.mxu0 %v571
  %v890 = vpop.f32.mrf.mxu0
  %v891 = vadd.f32 %v722, %v890
  %v892 = vpop.f32.mrf.mxu0
  %v893 = vadd.f32 %v724, %v892
  %894 = vmatmul.bf16.gmra.mxu0 %v574
  %v895 = vpop.f32.mrf.mxu0
  %v896 = vadd.f32 %v727, %v895
  %v897 = vpop.f32.mrf.mxu0
  %v898 = vadd.f32 %v729, %v897
  %899 = vmatmul.bf16.gmra.mxu0 %v577
  %v900 = vpop.f32.mrf.mxu0
  %v901 = vadd.f32 %v732, %v900
  %v902 = vpop.f32.mrf.mxu0
  %v903 = vadd.f32 %v734, %v902
  %904 = vmatmul.bf16.gmra.mxu0 %v580
  %v905 = vpop.f32.mrf.mxu0
  %v906 = vadd.f32 %v737, %v905
  %v907 = vpop.f32.mrf.mxu0
  %v908 = vadd.f32 %v739, %v907
  %909 = vmatmul.bf16.gmra.mxu0 %v583
  %v910 = vpop.f32.mrf.mxu0
  %v911 = vadd.f32 %v742, %v910
  %v912 = vpop.f32.mrf.mxu0
  %v913 = vadd.f32 %v744, %v912
  %914 = vmatmul.bf16.gmra.mxu0 %v586
  %v915 = vpop.f32.mrf.mxu0
  %v916 = vadd.f32 %v747, %v915
  %v917 = vpop.f32.mrf.mxu0
  %v918 = vadd.f32 %v749, %v917
  %919 = vmatmul.bf16.gmra.mxu0 %v589
  %v920 = vpop.f32.mrf.mxu0
  %v921 = vadd.f32 %v752, %v920
  %v922 = vpop.f32.mrf.mxu0
  %v923 = vadd.f32 %v754, %v922
  %924 = vmatmul.bf16.gmra.mxu0 %v592
  %v925 = vpop.f32.mrf.mxu0
  %v926 = vadd.f32 %v757, %v925
  %v927 = vpop.f32.mrf.mxu0
  %v928 = vadd.f32 %v759, %v927
  %929 = vmatmul.bf16.gmra.mxu0 %v595
  %v930 = vpop.f32.mrf.mxu0
  %v931 = vadd.f32 %v762, %v930
  %v932 = vpop.f32.mrf.mxu0
  %v933 = vadd.f32 %v764, %v932
  %934 = vmatmul.bf16.gmra.mxu0 %v598
  %v935 = vpop.f32.mrf.mxu0
  %v936 = vadd.f32 %v767, %v935
  %v937 = vpop.f32.mrf.mxu0
  %v938 = vadd.f32 %v769, %v937
  %939 = vmatmul.bf16.gmra.mxu0 %v601
  %v940 = vpop.f32.mrf.mxu0
  %v941 = vadd.f32 %v772, %v940
  %v942 = vpop.f32.mrf.mxu0
  %v943 = vadd.f32 %v774, %v942
  %944 = vdwg.mxu0
  %v945 = vmax.f32 %v786, %v788
  %v946 = vmax.f32 %v796, %v798
  %v947 = vmax.f32 %v806, %v808
  %v948 = vmax.f32 %v816, %v818
  %v949 = vmax.f32 %v826, %v828
  %v950 = vmax.f32 %v836, %v838
  %v951 = vmax.f32 %v846, %v848
  %v952 = vmax.f32 %v856, %v858
  %v953 = vmax.f32 %v866, %v868
  %v954 = vmax.f32 %v876, %v878
  %v955 = vmax.f32 %v886, %v888
  %v956 = vmax.f32 %v896, %v898
  %v957 = vmax.f32 %v906, %v908
  %v958 = vmax.f32 %v916, %v918
  %v959 = vmax.f32 %v926, %v928
  %v960 = vmax.f32 %v936, %v938
  %v961 = vmax.f32 %v945, %v791
  %v962 = vmax.f32 %v946, %v801
  %v963 = vmax.f32 %v947, %v811
  %v964 = vmax.f32 %v948, %v821
  %v965 = vmax.f32 %v949, %v831
  %v966 = vmax.f32 %v950, %v841
  %v967 = vmax.f32 %v951, %v851
  %v968 = vmax.f32 %v952, %v861
  %v969 = vmax.f32 %v953, %v871
  %v970 = vmax.f32 %v954, %v881
  %v971 = vmax.f32 %v955, %v891
  %v972 = vmax.f32 %v956, %v901
  %v973 = vmax.f32 %v957, %v911
  %v974 = vmax.f32 %v958, %v921
  %v975 = vmax.f32 %v959, %v931
  %v976 = vmax.f32 %v960, %v941
  %v977 = vmax.f32 %v961, %v793
  %v978 = vmax.f32 %v962, %v803
  %v979 = vmax.f32 %v963, %v813
  %v980 = vmax.f32 %v964, %v823
  %v981 = vmax.f32 %v965, %v833
  %v982 = vmax.f32 %v966, %v843
  %v983 = vmax.f32 %v967, %v853
  %v984 = vmax.f32 %v968, %v863
  %v985 = vmax.f32 %v969, %v873
  %v986 = vmax.f32 %v970, %v883
  %v987 = vmax.f32 %v971, %v893
  %v988 = vmax.f32 %v972, %v903
  %v989 = vmax.f32 %v973, %v913
  %v990 = vmax.f32 %v974, %v923
  %v991 = vmax.f32 %v975, %v933
  %v992 = vmax.f32 %v976, %v943
  %v993 = vld [vmem:[%s2] sm:$0x1]
  %v995 = vperm.slane %v993, 0
  %v997 = vadd.f32 %v977, %v995
  %v998 = vadd.f32 %v978, %v995
  %v999 = vadd.f32 %v979, %v995
  %v1000 = vadd.f32 %v980, %v995
  %v1001 = vadd.f32 %v981, %v995
  %v1002 = vadd.f32 %v982, %v995
  %v1003 = vadd.f32 %v983, %v995
  %v1004 = vadd.f32 %v984, %v995
  %v1005 = vadd.f32 %v985, %v995
  %v1006 = vadd.f32 %v986, %v995
  %v1007 = vadd.f32 %v987, %v995
  %v1008 = vadd.f32 %v988, %v995
  %v1009 = vadd.f32 %v989, %v995
  %v1010 = vadd.f32 %v990, %v995
  %v1011 = vadd.f32 %v991, %v995
  %v1012 = vadd.f32 %v992, %v995
  %v1013 = vmax.f32 %v997, 0.0
  %v1014 = vmax.f32 %v998, 0.0
  %v1015 = vmax.f32 %v999, 0.0
  %v1016 = vmax.f32 %v1000, 0.0
  %v1017 = vmax.f32 %v1001, 0.0
  %v1018 = vmax.f32 %v1002, 0.0
  %v1019 = vmax.f32 %v1003, 0.0
  %v1020 = vmax.f32 %v1004, 0.0
  %v1021 = vmax.f32 %v1005, 0.0
  %v1022 = vmax.f32 %v1006, 0.0
  %v1023 = vmax.f32 %v1007, 0.0
  %v1024 = vmax.f32 %v1008, 0.0
  %v1025 = vmax.f32 %v1009, 0.0
  %v1026 = vmax.f32 %v1010, 0.0
  %v1027 = vmax.f32 %v1011, 0.0
  %v1028 = vmax.f32 %v1012, 0.0
  %v1029 = vpack.c.bf16 %v1013, %v1013
  %v1030 = vpack.c.bf16 %v1014, %v1014
  %v1031 = vpack.c.bf16 %v1015, %v1015
  %v1032 = vpack.c.bf16 %v1016, %v1016
  %v1033 = vpack.c.bf16 %v1017, %v1017
  %v1034 = vpack.c.bf16 %v1018, %v1018
  %v1035 = vpack.c.bf16 %v1019, %v1019
  %v1036 = vpack.c.bf16 %v1020, %v1020
  %v1037 = vpack.c.bf16 %v1021, %v1021
  %v1038 = vpack.c.bf16 %v1022, %v1022
  %v1039 = vpack.c.bf16 %v1023, %v1023
  %v1040 = vpack.c.bf16 %v1024, %v1024
  %v1041 = vpack.c.bf16 %v1025, %v1025
  %v1042 = vpack.c.bf16 %v1026, %v1026
  %v1043 = vpack.c.bf16 %v1027, %v1027
  %v1044 = vpack.c.bf16 %v1028, %v1028
  %v1045 = vld [vmem:[%s3] sm:$0xf]
  %v1046 = vld [vmem:[%s3 + $0x4] sm:$0xf]
  %v1047 = vld [vmem:[%s3 + $0x8] sm:$0x3]
  %s1048 = scalar_lea.vmem %s3, 12
  %v1049 = vld [vmem:[%s1048] sm:$0xf]
  %v1050 = vld [vmem:[%s1048 + $0x4] sm:$0xf]
  %v1051 = vld [vmem:[%s1048 + $0x8] sm:$0x3]
  %v1055 = vunpack.c.l.b16 %v1049
  %v1056 = vunpack.c.l.b16 %v1050
  %v1057 = vunpack.c.l.b16 %v1051
  %v1058 = vpack.c.b16 %v1056, %v1055
  %v1059 = vpack.c.b16 %v1057, %v1057
  %vm1061 = vcmask 162816
  %v1063 = vsel %vm1061, %v1030, 0
  %vm1065 = vcmask 1041408
  %v1067 = vsel %vm1065, %v1059, 0
  %1069 = vmatpush.bf16.msra.mxu0 0
  %1070 = vmatpush.bf16.msra.mxu0 0
  %1071 = vmatpush.bf16.msra.mxu0 0
  %1072 = vmatpush.bf16.msra.mxu0 0
  %1073 = vmatpush.bf16.msra.mxu0 0
  %1074 = vmatpush.bf16.msra.mxu0 0
  %1075 = vmatpush.bf16.msra.mxu0 %v1067
  %1076 = vmatpush.bf16.msra.mxu0 %v1058
  %1077 = vmatmul.bf16.gmra.mxu0 %v1063
  %v1078 = vpop.f32.mrf.mxu0
  %v1079 = vadd.f32 0.0, %v1078
  %v1080 = vpop.f32.mrf.mxu0
  %1081 = vdwg.mxu0
  %v1085 = vunpack.c.l.b16 %v1045
  %v1086 = vunpack.c.l.b16 %v1046
  %v1087 = vunpack.c.l.b16 %v1047
  %v1088 = vpack.c.b16 %v1086, %v1085
  %v1089 = vpack.c.b16 %v1087, %v1087
  %v1092 = vsel %vm1061, %v1029, 0
  %v1095 = vsel %vm1065, %v1089, 0
  %1097 = vmatpush.bf16.msra.mxu0 0
  %1098 = vmatpush.bf16.msra.mxu0 0
  %1099 = vmatpush.bf16.msra.mxu0 0
  %1100 = vmatpush.bf16.msra.mxu0 0
  %1101 = vmatpush.bf16.msra.mxu0 0
  %1102 = vmatpush.bf16.msra.mxu0 0
  %1103 = vmatpush.bf16.msra.mxu0 %v1095
  %1104 = vmatpush.bf16.msra.mxu0 %v1088
  %1105 = vmatmul.bf16.gmra.mxu0 %v1092
  %v1106 = vpop.f32.mrf.mxu0
  %v1107 = vadd.f32 %v1079, %v1106
  %v1108 = vpop.f32.mrf.mxu0
  %1109 = vdwg.mxu0
  %s1110 = scalar_lea.vmem %s3, 24
  %v1111 = vld [vmem:[%s1110] sm:$0xf]
  %v1112 = vld [vmem:[%s1110 + $0x4] sm:$0xf]
  %v1113 = vld [vmem:[%s1110 + $0x8] sm:$0x3]
  %v1117 = vunpack.c.l.b16 %v1111
  %v1118 = vunpack.c.l.b16 %v1112
  %v1119 = vunpack.c.l.b16 %v1113
  %v1120 = vpack.c.b16 %v1118, %v1117
  %v1121 = vpack.c.b16 %v1119, %v1119
  %v1124 = vsel %vm1061, %v1031, 0
  %v1127 = vsel %vm1065, %v1121, 0
  %1129 = vmatpush.bf16.msra.mxu0 0
  %1130 = vmatpush.bf16.msra.mxu0 0
  %1131 = vmatpush.bf16.msra.mxu0 0
  %1132 = vmatpush.bf16.msra.mxu0 0
  %1133 = vmatpush.bf16.msra.mxu0 0
  %1134 = vmatpush.bf16.msra.mxu0 0
  %1135 = vmatpush.bf16.msra.mxu0 %v1127
  %1136 = vmatpush.bf16.msra.mxu0 %v1120
  %1137 = vmatmul.bf16.gmra.mxu0 %v1124
  %v1138 = vpop.f32.mrf.mxu0
  %v1139 = vadd.f32 0.0, %v1138
  %v1140 = vpop.f32.mrf.mxu0
  %1141 = vdwg.mxu0
  %v1142 = vadd.f32 %v1107, %v1139
  %s1143 = scalar_lea.vmem %s3, 36
  %v1144 = vld [vmem:[%s1143] sm:$0xf]
  %v1145 = vld [vmem:[%s1143 + $0x4] sm:$0xf]
  %v1146 = vld [vmem:[%s1143 + $0x8] sm:$0x3]
  %v1150 = vunpack.c.l.b16 %v1144
  %v1151 = vunpack.c.l.b16 %v1145
  %v1152 = vunpack.c.l.b16 %v1146
  %v1153 = vpack.c.b16 %v1151, %v1150
  %v1154 = vpack.c.b16 %v1152, %v1152
  %v1157 = vsel %vm1061, %v1032, 0
  %v1160 = vsel %vm1065, %v1154, 0
  %1162 = vmatpush.bf16.msra.mxu0 0
  %1163 = vmatpush.bf16.msra.mxu0 0
  %1164 = vmatpush.bf16.msra.mxu0 0
  %1165 = vmatpush.bf16.msra.mxu0 0
  %1166 = vmatpush.bf16.msra.mxu0 0
  %1167 = vmatpush.bf16.msra.mxu0 0
  %1168 = vmatpush.bf16.msra.mxu0 %v1160
  %1169 = vmatpush.bf16.msra.mxu0 %v1153
  %1170 = vmatmul.bf16.gmra.mxu0 %v1157
  %v1171 = vpop.f32.mrf.mxu0
  %v1172 = vadd.f32 0.0, %v1171
  %v1173 = vpop.f32.mrf.mxu0
  %1174 = vdwg.mxu0
  %v1175 = vadd.f32 %v1142, %v1172
  %s1176 = scalar_lea.vmem %s3, 48
  %v1177 = vld [vmem:[%s1176] sm:$0xf]
  %v1178 = vld [vmem:[%s1176 + $0x4] sm:$0xf]
  %v1179 = vld [vmem:[%s1176 + $0x8] sm:$0x3]
  %v1183 = vunpack.c.l.b16 %v1177
  %v1184 = vunpack.c.l.b16 %v1178
  %v1185 = vunpack.c.l.b16 %v1179
  %v1186 = vpack.c.b16 %v1184, %v1183
  %v1187 = vpack.c.b16 %v1185, %v1185
  %v1190 = vsel %vm1061, %v1033, 0
  %v1193 = vsel %vm1065, %v1187, 0
  %1195 = vmatpush.bf16.msra.mxu0 0
  %1196 = vmatpush.bf16.msra.mxu0 0
  %1197 = vmatpush.bf16.msra.mxu0 0
  %1198 = vmatpush.bf16.msra.mxu0 0
  %1199 = vmatpush.bf16.msra.mxu0 0
  %1200 = vmatpush.bf16.msra.mxu0 0
  %1201 = vmatpush.bf16.msra.mxu0 %v1193
  %1202 = vmatpush.bf16.msra.mxu0 %v1186
  %1203 = vmatmul.bf16.gmra.mxu0 %v1190
  %v1204 = vpop.f32.mrf.mxu0
  %v1205 = vadd.f32 0.0, %v1204
  %v1206 = vpop.f32.mrf.mxu0
  %1207 = vdwg.mxu0
  %v1208 = vadd.f32 %v1175, %v1205
  %s1209 = scalar_lea.vmem %s3, 60
  %v1210 = vld [vmem:[%s1209] sm:$0xf]
  %v1211 = vld [vmem:[%s1209 + $0x4] sm:$0xf]
  %v1212 = vld [vmem:[%s1209 + $0x8] sm:$0x3]
  %v1216 = vunpack.c.l.b16 %v1210
  %v1217 = vunpack.c.l.b16 %v1211
  %v1218 = vunpack.c.l.b16 %v1212
  %v1219 = vpack.c.b16 %v1217, %v1216
  %v1220 = vpack.c.b16 %v1218, %v1218
  %v1223 = vsel %vm1061, %v1034, 0
  %v1226 = vsel %vm1065, %v1220, 0
  %1228 = vmatpush.bf16.msra.mxu0 0
  %1229 = vmatpush.bf16.msra.mxu0 0
  %1230 = vmatpush.bf16.msra.mxu0 0
  %1231 = vmatpush.bf16.msra.mxu0 0
  %1232 = vmatpush.bf16.msra.mxu0 0
  %1233 = vmatpush.bf16.msra.mxu0 0
  %1234 = vmatpush.bf16.msra.mxu0 %v1226
  %1235 = vmatpush.bf16.msra.mxu0 %v1219
  %1236 = vmatmul.bf16.gmra.mxu0 %v1223
  %v1237 = vpop.f32.mrf.mxu0
  %v1238 = vadd.f32 0.0, %v1237
  %v1239 = vpop.f32.mrf.mxu0
  %1240 = vdwg.mxu0
  %v1241 = vadd.f32 %v1208, %v1238
  %s1242 = scalar_lea.vmem %s3, 72
  %v1243 = vld [vmem:[%s1242] sm:$0xf]
  %v1244 = vld [vmem:[%s1242 + $0x4] sm:$0xf]
  %v1245 = vld [vmem:[%s1242 + $0x8] sm:$0x3]
  %v1249 = vunpack.c.l.b16 %v1243
  %v1250 = vunpack.c.l.b16 %v1244
  %v1251 = vunpack.c.l.b16 %v1245
  %v1252 = vpack.c.b16 %v1250, %v1249
  %v1253 = vpack.c.b16 %v1251, %v1251
  %v1256 = vsel %vm1061, %v1035, 0
  %v1259 = vsel %vm1065, %v1253, 0
  %1261 = vmatpush.bf16.msra.mxu0 0
  %1262 = vmatpush.bf16.msra.mxu0 0
  %1263 = vmatpush.bf16.msra.mxu0 0
  %1264 = vmatpush.bf16.msra.mxu0 0
  %1265 = vmatpush.bf16.msra.mxu0 0
  %1266 = vmatpush.bf16.msra.mxu0 0
  %1267 = vmatpush.bf16.msra.mxu0 %v1259
  %1268 = vmatpush.bf16.msra.mxu0 %v1252
  %1269 = vmatmul.bf16.gmra.mxu0 %v1256
  %v1270 = vpop.f32.mrf.mxu0
  %v1271 = vadd.f32 0.0, %v1270
  %v1272 = vpop.f32.mrf.mxu0
  %1273 = vdwg.mxu0
  %v1274 = vadd.f32 %v1241, %v1271
  %s1275 = scalar_lea.vmem %s3, 84
  %v1276 = vld [vmem:[%s1275] sm:$0xf]
  %v1277 = vld [vmem:[%s1275 + $0x4] sm:$0xf]
  %v1278 = vld [vmem:[%s1275 + $0x8] sm:$0x3]
  %v1282 = vunpack.c.l.b16 %v1276
  %v1283 = vunpack.c.l.b16 %v1277
  %v1284 = vunpack.c.l.b16 %v1278
  %v1285 = vpack.c.b16 %v1283, %v1282
  %v1286 = vpack.c.b16 %v1284, %v1284
  %v1289 = vsel %vm1061, %v1036, 0
  %v1292 = vsel %vm1065, %v1286, 0
  %1294 = vmatpush.bf16.msra.mxu0 0
  %1295 = vmatpush.bf16.msra.mxu0 0
  %1296 = vmatpush.bf16.msra.mxu0 0
  %1297 = vmatpush.bf16.msra.mxu0 0
  %1298 = vmatpush.bf16.msra.mxu0 0
  %1299 = vmatpush.bf16.msra.mxu0 0
  %1300 = vmatpush.bf16.msra.mxu0 %v1292
  %1301 = vmatpush.bf16.msra.mxu0 %v1285
  %1302 = vmatmul.bf16.gmra.mxu0 %v1289
  %v1303 = vpop.f32.mrf.mxu0
  %v1304 = vadd.f32 0.0, %v1303
  %v1305 = vpop.f32.mrf.mxu0
  %1306 = vdwg.mxu0
  %v1307 = vadd.f32 %v1274, %v1304
  %s1308 = scalar_lea.vmem %s3, 96
  %v1309 = vld [vmem:[%s1308] sm:$0xf]
  %v1310 = vld [vmem:[%s1308 + $0x4] sm:$0xf]
  %v1311 = vld [vmem:[%s1308 + $0x8] sm:$0x3]
  %v1315 = vunpack.c.l.b16 %v1309
  %v1316 = vunpack.c.l.b16 %v1310
  %v1317 = vunpack.c.l.b16 %v1311
  %v1318 = vpack.c.b16 %v1316, %v1315
  %v1319 = vpack.c.b16 %v1317, %v1317
  %v1322 = vsel %vm1061, %v1037, 0
  %v1325 = vsel %vm1065, %v1319, 0
  %1327 = vmatpush.bf16.msra.mxu0 0
  %1328 = vmatpush.bf16.msra.mxu0 0
  %1329 = vmatpush.bf16.msra.mxu0 0
  %1330 = vmatpush.bf16.msra.mxu0 0
  %1331 = vmatpush.bf16.msra.mxu0 0
  %1332 = vmatpush.bf16.msra.mxu0 0
  %1333 = vmatpush.bf16.msra.mxu0 %v1325
  %1334 = vmatpush.bf16.msra.mxu0 %v1318
  %1335 = vmatmul.bf16.gmra.mxu0 %v1322
  %v1336 = vpop.f32.mrf.mxu0
  %v1337 = vadd.f32 0.0, %v1336
  %v1338 = vpop.f32.mrf.mxu0
  %1339 = vdwg.mxu0
  %v1340 = vadd.f32 %v1307, %v1337
  %s1341 = scalar_lea.vmem %s3, 108
  %v1342 = vld [vmem:[%s1341] sm:$0xf]
  %v1343 = vld [vmem:[%s1341 + $0x4] sm:$0xf]
  %v1344 = vld [vmem:[%s1341 + $0x8] sm:$0x3]
  %v1348 = vunpack.c.l.b16 %v1342
  %v1349 = vunpack.c.l.b16 %v1343
  %v1350 = vunpack.c.l.b16 %v1344
  %v1351 = vpack.c.b16 %v1349, %v1348
  %v1352 = vpack.c.b16 %v1350, %v1350
  %v1355 = vsel %vm1061, %v1038, 0
  %v1358 = vsel %vm1065, %v1352, 0
  %1360 = vmatpush.bf16.msra.mxu0 0
  %1361 = vmatpush.bf16.msra.mxu0 0
  %1362 = vmatpush.bf16.msra.mxu0 0
  %1363 = vmatpush.bf16.msra.mxu0 0
  %1364 = vmatpush.bf16.msra.mxu0 0
  %1365 = vmatpush.bf16.msra.mxu0 0
  %1366 = vmatpush.bf16.msra.mxu0 %v1358
  %1367 = vmatpush.bf16.msra.mxu0 %v1351
  %1368 = vmatmul.bf16.gmra.mxu0 %v1355
  %v1369 = vpop.f32.mrf.mxu0
  %v1370 = vadd.f32 0.0, %v1369
  %v1371 = vpop.f32.mrf.mxu0
  %1372 = vdwg.mxu0
  %v1373 = vadd.f32 %v1340, %v1370
  %s1374 = scalar_lea.vmem %s3, 120
  %v1375 = vld [vmem:[%s1374] sm:$0xf]
  %v1376 = vld [vmem:[%s1374 + $0x4] sm:$0xf]
  %v1377 = vld [vmem:[%s1374 + $0x8] sm:$0x3]
  %v1381 = vunpack.c.l.b16 %v1375
  %v1382 = vunpack.c.l.b16 %v1376
  %v1383 = vunpack.c.l.b16 %v1377
  %v1384 = vpack.c.b16 %v1382, %v1381
  %v1385 = vpack.c.b16 %v1383, %v1383
  %v1388 = vsel %vm1061, %v1039, 0
  %v1391 = vsel %vm1065, %v1385, 0
  %1393 = vmatpush.bf16.msra.mxu0 0
  %1394 = vmatpush.bf16.msra.mxu0 0
  %1395 = vmatpush.bf16.msra.mxu0 0
  %1396 = vmatpush.bf16.msra.mxu0 0
  %1397 = vmatpush.bf16.msra.mxu0 0
  %1398 = vmatpush.bf16.msra.mxu0 0
  %1399 = vmatpush.bf16.msra.mxu0 %v1391
  %1400 = vmatpush.bf16.msra.mxu0 %v1384
  %1401 = vmatmul.bf16.gmra.mxu0 %v1388
  %v1402 = vpop.f32.mrf.mxu0
  %v1403 = vadd.f32 0.0, %v1402
  %v1404 = vpop.f32.mrf.mxu0
  %1405 = vdwg.mxu0
  %v1406 = vadd.f32 %v1373, %v1403
  %s1407 = scalar_lea.vmem %s3, 132
  %v1408 = vld [vmem:[%s1407] sm:$0xf]
  %v1409 = vld [vmem:[%s1407 + $0x4] sm:$0xf]
  %v1410 = vld [vmem:[%s1407 + $0x8] sm:$0x3]
  %v1414 = vunpack.c.l.b16 %v1408
  %v1415 = vunpack.c.l.b16 %v1409
  %v1416 = vunpack.c.l.b16 %v1410
  %v1417 = vpack.c.b16 %v1415, %v1414
  %v1418 = vpack.c.b16 %v1416, %v1416
  %v1421 = vsel %vm1061, %v1040, 0
  %v1424 = vsel %vm1065, %v1418, 0
  %1426 = vmatpush.bf16.msra.mxu0 0
  %1427 = vmatpush.bf16.msra.mxu0 0
  %1428 = vmatpush.bf16.msra.mxu0 0
  %1429 = vmatpush.bf16.msra.mxu0 0
  %1430 = vmatpush.bf16.msra.mxu0 0
  %1431 = vmatpush.bf16.msra.mxu0 0
  %1432 = vmatpush.bf16.msra.mxu0 %v1424
  %1433 = vmatpush.bf16.msra.mxu0 %v1417
  %1434 = vmatmul.bf16.gmra.mxu0 %v1421
  %v1435 = vpop.f32.mrf.mxu0
  %v1436 = vadd.f32 0.0, %v1435
  %v1437 = vpop.f32.mrf.mxu0
  %1438 = vdwg.mxu0
  %v1439 = vadd.f32 %v1406, %v1436
  %s1440 = scalar_lea.vmem %s3, 144
  %v1441 = vld [vmem:[%s1440] sm:$0xf]
  %v1442 = vld [vmem:[%s1440 + $0x4] sm:$0xf]
  %v1443 = vld [vmem:[%s1440 + $0x8] sm:$0x3]
  %v1447 = vunpack.c.l.b16 %v1441
  %v1448 = vunpack.c.l.b16 %v1442
  %v1449 = vunpack.c.l.b16 %v1443
  %v1450 = vpack.c.b16 %v1448, %v1447
  %v1451 = vpack.c.b16 %v1449, %v1449
  %v1454 = vsel %vm1061, %v1041, 0
  %v1457 = vsel %vm1065, %v1451, 0
  %1459 = vmatpush.bf16.msra.mxu0 0
  %1460 = vmatpush.bf16.msra.mxu0 0
  %1461 = vmatpush.bf16.msra.mxu0 0
  %1462 = vmatpush.bf16.msra.mxu0 0
  %1463 = vmatpush.bf16.msra.mxu0 0
  %1464 = vmatpush.bf16.msra.mxu0 0
  %1465 = vmatpush.bf16.msra.mxu0 %v1457
  %1466 = vmatpush.bf16.msra.mxu0 %v1450
  %1467 = vmatmul.bf16.gmra.mxu0 %v1454
  %v1468 = vpop.f32.mrf.mxu0
  %v1469 = vadd.f32 0.0, %v1468
  %v1470 = vpop.f32.mrf.mxu0
  %1471 = vdwg.mxu0
  %v1472 = vadd.f32 %v1439, %v1469
  %s1473 = scalar_lea.vmem %s3, 156
  %v1474 = vld [vmem:[%s1473] sm:$0xf]
  %v1475 = vld [vmem:[%s1473 + $0x4] sm:$0xf]
  %v1476 = vld [vmem:[%s1473 + $0x8] sm:$0x3]
  %v1480 = vunpack.c.l.b16 %v1474
  %v1481 = vunpack.c.l.b16 %v1475
  %v1482 = vunpack.c.l.b16 %v1476
  %v1483 = vpack.c.b16 %v1481, %v1480
  %v1484 = vpack.c.b16 %v1482, %v1482
  %v1487 = vsel %vm1061, %v1042, 0
  %v1490 = vsel %vm1065, %v1484, 0
  %1492 = vmatpush.bf16.msra.mxu0 0
  %1493 = vmatpush.bf16.msra.mxu0 0
  %1494 = vmatpush.bf16.msra.mxu0 0
  %1495 = vmatpush.bf16.msra.mxu0 0
  %1496 = vmatpush.bf16.msra.mxu0 0
  %1497 = vmatpush.bf16.msra.mxu0 0
  %1498 = vmatpush.bf16.msra.mxu0 %v1490
  %1499 = vmatpush.bf16.msra.mxu0 %v1483
  %1500 = vmatmul.bf16.gmra.mxu0 %v1487
  %v1501 = vpop.f32.mrf.mxu0
  %v1502 = vadd.f32 0.0, %v1501
  %v1503 = vpop.f32.mrf.mxu0
  %1504 = vdwg.mxu0
  %v1505 = vadd.f32 %v1472, %v1502
  %s1506 = scalar_lea.vmem %s3, 168
  %v1507 = vld [vmem:[%s1506] sm:$0xf]
  %v1508 = vld [vmem:[%s1506 + $0x4] sm:$0xf]
  %v1509 = vld [vmem:[%s1506 + $0x8] sm:$0x3]
  %v1513 = vunpack.c.l.b16 %v1507
  %v1514 = vunpack.c.l.b16 %v1508
  %v1515 = vunpack.c.l.b16 %v1509
  %v1516 = vpack.c.b16 %v1514, %v1513
  %v1517 = vpack.c.b16 %v1515, %v1515
  %v1520 = vsel %vm1061, %v1043, 0
  %v1523 = vsel %vm1065, %v1517, 0
  %1525 = vmatpush.bf16.msra.mxu0 0
  %1526 = vmatpush.bf16.msra.mxu0 0
  %1527 = vmatpush.bf16.msra.mxu0 0
  %1528 = vmatpush.bf16.msra.mxu0 0
  %1529 = vmatpush.bf16.msra.mxu0 0
  %1530 = vmatpush.bf16.msra.mxu0 0
  %1531 = vmatpush.bf16.msra.mxu0 %v1523
  %1532 = vmatpush.bf16.msra.mxu0 %v1516
  %1533 = vmatmul.bf16.gmra.mxu0 %v1520
  %v1534 = vpop.f32.mrf.mxu0
  %v1535 = vadd.f32 0.0, %v1534
  %v1536 = vpop.f32.mrf.mxu0
  %1537 = vdwg.mxu0
  %v1538 = vadd.f32 %v1505, %v1535
  %s1539 = scalar_lea.vmem %s3, 180
  %v1540 = vld [vmem:[%s1539] sm:$0xf]
  %v1541 = vld [vmem:[%s1539 + $0x4] sm:$0xf]
  %v1542 = vld [vmem:[%s1539 + $0x8] sm:$0x3]
  %v1546 = vunpack.c.l.b16 %v1540
  %v1547 = vunpack.c.l.b16 %v1541
  %v1548 = vunpack.c.l.b16 %v1542
  %v1549 = vpack.c.b16 %v1547, %v1546
  %v1550 = vpack.c.b16 %v1548, %v1548
  %v1553 = vsel %vm1061, %v1044, 0
  %v1556 = vsel %vm1065, %v1550, 0
  %1558 = vmatpush.bf16.msra.mxu0 0
  %1559 = vmatpush.bf16.msra.mxu0 0
  %1560 = vmatpush.bf16.msra.mxu0 0
  %1561 = vmatpush.bf16.msra.mxu0 0
  %1562 = vmatpush.bf16.msra.mxu0 0
  %1563 = vmatpush.bf16.msra.mxu0 0
  %1564 = vmatpush.bf16.msra.mxu0 %v1556
  %1565 = vmatpush.bf16.msra.mxu0 %v1549
  %1566 = vmatmul.bf16.gmra.mxu0 %v1553
  %v1567 = vpop.f32.mrf.mxu0
  %v1568 = vadd.f32 0.0, %v1567
  %v1569 = vpop.f32.mrf.mxu0
  %1570 = vdwg.mxu0
  %v1571 = vadd.f32 %v1538, %v1568
  %v1572 = vld [vmem:[%s4] sm:$0x1]
  %v1574 = vperm.slane %v1572, 0
  %v1576 = vadd.f32 %v1571, %v1574
  %v1577 = vmax.f32 %v1576, 0.0
  %v1578 = vpack.c.bf16 %v1577, %v1577
  %v1579 = vld [vmem:[%s5] sm:$0xf]
  %v1580 = vld [vmem:[%s5 + $0x4] sm:$0xf]
  %v1581 = vld [vmem:[%s5 + $0x8] sm:$0xf]
  %v1582 = vld [vmem:[%s5 + $0xc] sm:$0xf]
  %v1583 = vld [vmem:[%s5 + $0x10] sm:$0xf]
  %v1584 = vld [vmem:[%s5 + $0x14] sm:$0xf]
  %v1585 = vld [vmem:[%s5 + $0x18] sm:$0x1]
  %v1586 = vld [vmem:[%s6] sm:$0x1]
  %v1588 = vperm.slane %v1586, 0
  %v1597 = vunpack.c.l.b16 %v1579
  %v1598 = vunpack.c.l.b16 %v1580
  %v1599 = vunpack.c.l.b16 %v1581
  %v1600 = vunpack.c.l.b16 %v1582
  %v1601 = vunpack.c.l.b16 %v1583
  %v1602 = vunpack.c.l.b16 %v1584
  %v1603 = vunpack.c.l.b16 %v1585
  %v1604 = vpack.c.b16 %v1598, %v1597
  %v1605 = vpack.c.b16 %v1600, %v1599
  %v1606 = vpack.c.b16 %v1602, %v1601
  %v1607 = vpack.c.b16 %v1603, %v1603
  %vm1611 = vcmask 408576
  %v1613 = vsel %vm1611, %v1578, 0
  %vm1615 = vcmask 1040384
  %v1617 = vsel %vm1615, %v1607, 0
  %1619 = vmatpush.bf16.msra.mxu0 0
  %1620 = vmatpush.bf16.msra.mxu0 0
  %1621 = vmatpush.bf16.msra.mxu0 0
  %1622 = vmatpush.bf16.msra.mxu0 0
  %1623 = vmatpush.bf16.msra.mxu0 %v1617
  %1624 = vmatpush.bf16.msra.mxu0 %v1606
  %1625 = vmatpush.bf16.msra.mxu0 %v1605
  %1626 = vmatpush.bf16.msra.mxu0 %v1604
  %1627 = vmatmul.bf16.gmra.mxu0 %v1613
  %v1628 = vpop.f32.mrf.mxu0
  %v1629 = vadd.f32 %v1588, %v1628
  %v1630 = vpop.f32.mrf.mxu0
  %1631 = vdwg.mxu0
  %vm1632 = vcmask 80896
  %v1633 = vsel %vm1632, %v1629, -inf
  %1634 = vmax.xlane.f32.xlu0 %v1633
  %v1635 = vpop.xlane.xlu0 %1634
  %v1636 = vsub.f32 %v1629, %v1635
  %v1637 = vmul.f32 %v1636, 1.442695
  %v1638 = vpow.pop %v1637
  %v1639 = vsel %vm1632, %v1638, 0.0
  %1640 = vadd.xlane.f32.xlu0 %v1639
  %v1641 = vpop.xlane.xlu0 %1640
  %v1642 = vlog2.pop %v1641
  %v1643 = vmul.f32 %v1642, 0.6931472
  %v1644 = vsub.f32 %v1636, %v1643
  %1645 = vst.msk [vmem:[%s7] sm:$0xff] %vm1632, %v1644
  // Predicated region
  $region30: #{cnn_forward.3} parent=0 // pred_check
    _
  $region31: #{cnn_forward.3} parent=0 // pred_check_branch
    %1647 = sbr.rel (0) target = $region33
  $region32: #{cnn_forward.3} parent=0 // pred_region
    _
  $region33: #{cnn_forward.3} parent=0 // pred_fallthru
    _
  // Predicated region
  $region34: #{cnn_forward.3} parent=0 // pred_check
    _
  $region35: #{cnn_forward.3} parent=0 // pred_check_branch
    %1649 = sbr.rel (0) target = $region37
  $region36: #{cnn_forward.3} parent=0 // pred_region
    _
  $region37: #{cnn_forward.3} parent=0 // pred_fallthru
    _

</llo_original>
